<compile_context>
chip_gen: v7x
topology: tpu7x:2x2x1
jax: 0.10.0
libtpu: 0.0.40
codegen_flags: <defaults>
</compile_context>

<pallas_src>
import numpy as np

import jax
import jax.numpy as jnp
from jax.experimental import pallas as pl
from jax.experimental.pallas import tpu as pltpu


# Fixed problem size.  The PyTorch module bakes the flatten length (and hence the
# batch size) into fc1, so the kernel is specialised the same way.
N_IMG = 2                       # batch
C_IN = 3                        # conv1 input channels
H = W = 16                      # input spatial size
C1 = 16                         # conv1 output channels
C2 = 32                         # conv2 output channels
H1, W1 = H - 2, W - 2           # 14x14 after conv1 (valid 3x3, stride 1)
H2, W2 = H1 - 2, W1 - 2         # 12x12 after conv2
HP, WP = H2 // 2, W2 // 2       # 6x6 after MaxPool2d(2, 2)
NUM_CLASSES = 10                # EuroSAT '2750' has 10 class folders
FC1_IN = N_IMG * C2 * HP * WP   # 2304 -- batch baked in (original torch behaviour)
FC1_OUT = 128

NH = N_IMG * H                  # 32 rows in the flat (n, h) layout
ROW_PAD = 8                     # zero rows so row-shifted reads stay in-bounds

# Advisory cost estimate (flops / bytes) for XLA's scheduler.
_FLOPS = 2 * (NH * (3 * W * C_IN) * (W * C1)          # conv1 as one matmul
              + 3 * NH * (W * C1) * (W * C2)          # conv2 as 3 matmuls
              + N_IMG * HP * (WP * C2) * FC1_OUT      # fc1
              + FC1_OUT * NUM_CLASSES)                # fc2
_BYTES = (NH * 3 * W * C_IN * 2                       # x_cat (bf16)
          + 3 * W * C_IN * W * C1 * 2 + W * C1 * 4    # w1cat (bf16) + b1
          + 3 * W * C1 * W * C2 * 2 + W * C2 * 4      # w2big (bf16) + b2
          + N_IMG * HP * WP * C2 * FC1_OUT * 2        # wfb (bf16)
          + FC1_OUT * 4                               # fc1 bias
          + FC1_OUT * NUM_CLASSES * 4 + NUM_CLASSES * 4  # fc2 w + b
          + NUM_CLASSES * 4)                          # output


# ---------------- the fused Pallas kernel ----------------

def _fused_forward_kernel(x_ref, w1_ref, b1_ref, w2_ref, b2_ref,
                          wf_ref, fb_ref, ow_ref, ob_ref,
                          o_ref, y1_sc, y2_sc):
    """Whole Net_drop_0dot9 forward on one grid point; everything in VMEM.

    Layouts (rows = sublanes, cols = lanes):
      x_ref : (NH, 3*W*C_IN) bf16   x_cat[n*H + h, di*W*C_IN + w*C_IN + ci]
      y1_sc : (NH+8, W*C1)   f32    relu(conv1)[n*H + h, w*C1 + c]
      y2_sc : (NH+8, W*C2)   f32    relu(conv2)[n*H + h, w*C2 + c]
    Positions outside the valid conv output range hold FINITE garbage that no
    valid downstream element ever reads (or that hits zero weight entries).
    """
    f32 = jnp.float32
    bf16 = jnp.bfloat16

    # ---- conv1 + ReLU: ONE K=144 bf16 matmul vs the concatenated banded weight.
    acc1 = jnp.dot(x_ref[...], w1_ref[...], preferred_element_type=f32)   # (NH, 256)
    y1_sc[pl.ds(0, NH), :] = jnp.maximum(acc1 + b1_ref[...], 0.0)
    y1_sc[pl.ds(NH, ROW_PAD), :] = jnp.zeros((ROW_PAD, W * C1), f32)      # finite pad

    # ---- conv2 + ReLU: 3 row-shifted bf16 matmuls (each K=256 -> one MXU pass).
    acc2 = jnp.dot(y1_sc[pl.ds(0, NH), :].astype(bf16), w2_ref[0],
                   preferred_element_type=f32)
    for di in range(1, 3):
        acc2 += jnp.dot(y1_sc[pl.ds(di, NH), :].astype(bf16), w2_ref[di],
                        preferred_element_type=f32)
    y2_sc[pl.ds(0, NH), :] = jnp.maximum(acc2 + b2_ref[...], 0.0)
    y2_sc[pl.ds(NH, ROW_PAD), :] = jnp.zeros((ROW_PAD, W * C2), f32)      # finite pad

    # ---- 2x2 max pool, entirely on register values (no masked partial stores).
    # h direction: max(row h, row h+1).
    mh = jnp.maximum(y2_sc[pl.ds(0, NH), :], y2_sc[pl.ds(1, NH), :])      # (NH, W*C2)
    # w direction: per-wp lane-block max, compacted lane-dense with ONE concat.
    pooled = jnp.concatenate(
        [jnp.maximum(mh[:, 2 * wp * C2:(2 * wp + 1) * C2],
                     mh[:, (2 * wp + 1) * C2:(2 * wp + 2) * C2])
         for wp in range(WP)], axis=1)                                    # (NH, WP*C2)

    # ---- flatten + fc1 + ReLU   (Dropout(p=0.9) is the identity at inference).
    # fc1 weights were pre-permuted host-side to (N*HP, WP*C2, 128): each pooled
    # row (n, hp) multiplies its own (WP*C2, 128) slice.  The 12 M=1 matmuls are
    # INDEPENDENT (streamable) and summed with a log-depth tree (no serial chain).
    # TODO(synk): training-mode dropout mask (pltpu.prng_random_bits) not reproduced.
    parts = []
    for n in range(N_IMG):
        for hp_i in range(HP):
            row = pooled[n * H + 2 * hp_i:n * H + 2 * hp_i + 1, :].astype(bf16)
            parts.append(jnp.dot(row, wf_ref[n * HP + hp_i],
                                 preferred_element_type=f32))             # (1, 128)
    while len(parts) > 1:                                                 # tree sum
        nxt = [parts[i] + parts[i + 1] for i in range(0, len(parts) - 1, 2)]
        if len(parts) % 2:
            nxt.append(parts[-1])
        parts = nxt
    h1 = jnp.maximum(parts[0] + fb_ref[...], 0.0)                         # (1, 128)

    # ---- fc2 (output head), kept in f32 (tiny).
    o_ref[...] = jnp.dot(h1, ow_ref[...], preferred_element_type=f32) + ob_ref[...]


# ---------------- wrapper ----------------

@jax.jit
def net_forward(prep, x_nchw):
    """Forward pass of Net_drop_0dot9.  x_nchw:(N,3,H,W) -> (NUM_CLASSES,)."""
    n, c, h, w = x_nchw.shape
    # NCHW -> flat (n*H, W*C_IN) rows=(n,h), lanes=(w,ci), then build the conv1
    # LHS directly: lane-concatenate the 3 row-shifted views (K = 3*W*C_IN = 144)
    # and cast to bf16.  ~18 KB, all inside one XLA fusion; the kernel then does
    # conv1 as a single matmul with no in-kernel row shifts for x.
    x2d = jnp.transpose(x_nchw, (0, 2, 3, 1)).reshape(n * h, w * c)
    x2d = jnp.pad(x2d, ((0, 2), (0, 0)))                   # finite (zero) pad rows
    x_cat = jnp.concatenate([x2d[0:NH], x2d[1:NH + 1], x2d[2:NH + 2]], axis=1)
    x_cat = x_cat.astype(jnp.bfloat16)                     # (NH, 144)

    out = pl.pallas_call(
        _fused_forward_kernel,
        out_shape=jax.ShapeDtypeStruct((1, NUM_CLASSES), jnp.float32),
        in_specs=[pl.BlockSpec(memory_space=pltpu.MemorySpace.VMEM)] * 9,
        out_specs=pl.BlockSpec(memory_space=pltpu.MemorySpace.VMEM),
        scratch_shapes=[
            pltpu.VMEM((NH + ROW_PAD, W * C1), jnp.float32),   # relu(conv1)
            pltpu.VMEM((NH + ROW_PAD, W * C2), jnp.float32),   # relu(conv2)
        ],
        cost_estimate=pl.CostEstimate(flops=_FLOPS, transcendentals=0,
                                      bytes_accessed=_BYTES),
    )(x_cat, prep["w1cat"], prep["b1big"], prep["w2big"], prep["b2big"],
      prep["wfb"], prep["fc1_b"], prep["op_w"], prep["op_b"])
    return out[0]


# ---------------- host-side (one-time) weight repacking ----------------

def prepare_params(params):
    """Repack PyTorch-layout weights into the kernel's banded / pre-permuted
    bf16 layouts.  Runs once on the host; free at inference time."""
    w1 = np.asarray(params["conv1_w"])       # (3, 3, C_IN, C1)
    w2 = np.asarray(params["conv2_w"])       # (3, 3, C1, C2)
    fw = np.asarray(params["fc1_w"])         # (FC1_IN, 128)

    def banded(wk, cin, cout):
        # big[di, (w+dj)*cin + ci, w*cout + co] = wk[di, dj, ci, co]
        big = np.zeros((3, W * cin, W * cout), np.float32)
        for di in range(3):
            for dj in range(3):
                for wcol in range(W - dj):
                    big[di,
                        (wcol + dj) * cin:(wcol + dj + 1) * cin,
                        wcol * cout:(wcol + 1) * cout] = wk[di, dj]
        return big

    # conv1: fold the 3 row taps (di) into a single K=3*W*C_IN matmul weight.
    w1cat = banded(w1, C_IN, C1).reshape(3 * W * C_IN, W * C1)   # (144, 256)
    w2big = banded(w2, C1, C2)                                   # (3, 256, 512)

    # PyTorch flattens the pooled NCHW tensor: k = ((n*C2 + c)*HP + hp)*WP + wp.
    # The kernel produces pooled rows (n, hp) with lanes (wp, c); permute to match.
    wfb = np.zeros((N_IMG * HP, WP * C2, FC1_OUT), np.float32)
    cc = np.arange(C2)
    for n in range(N_IMG):
        for hp_i in range(HP):
            for wp_i in range(WP):
                k = ((n * C2 + cc) * HP + hp_i) * WP + wp_i
                wfb[n * HP + hp_i, wp_i * C2:(wp_i + 1) * C2, :] = fw[k, :]

    as_f32 = lambda a: jnp.asarray(a, jnp.float32)
    as_bf16 = lambda a: jnp.asarray(a, jnp.bfloat16)
    return {
        "w1cat": as_bf16(w1cat),                                        # (144, 256) bf16
        "b1big": as_f32(np.tile(np.asarray(params["conv1_b"]), W)[None, :]),
        "w2big": as_bf16(w2big),                                        # (3, 256, 512) bf16
        "b2big": as_f32(np.tile(np.asarray(params["conv2_b"]), W)[None, :]),
        "wfb":   as_bf16(wfb),                                          # (12, 192, 128) bf16
        "fc1_b": as_f32(np.asarray(params["fc1_b"])[None, :]),          # (1, 128)
        "op_w":  as_f32(params["op_w"]),                                # (128, 10)
        "op_b":  as_f32(np.asarray(params["op_b"])[None, :]),           # (1, 10)
    }


def init_params(key):
    """Deterministic synthetic params (PyTorch-style uniform fan-in init)."""
    ks = jax.random.split(key, 8)

    def u(k, shape, fan_in):
        lim = 1.0 / np.sqrt(float(fan_in))
        return jax.random.uniform(k, shape, jnp.float32, -lim, lim)

    return {
        "conv1_w": u(ks[0], (3, 3, C_IN, C1), 3 * 3 * C_IN),   # Conv2d(3, 16, 3)
        "conv1_b": u(ks[1], (C1,), 3 * 3 * C_IN),
        "conv2_w": u(ks[2], (3, 3, C1, C2), 3 * 3 * C1),       # Conv2d(16, 32, 3)
        "conv2_b": u(ks[3], (C2,), 3 * 3 * C1),
        "fc1_w":   u(ks[4], (FC1_IN, FC1_OUT), FC1_IN),        # Linear(2304, 128)
        "fc1_b":   u(ks[5], (FC1_OUT,), FC1_IN),
        "op_w":    u(ks[6], (FC1_OUT, NUM_CLASSES), FC1_OUT),  # Linear(128, 10)
        "op_b":    u(ks[7], (NUM_CLASSES,), FC1_OUT),
    }


def reference_forward(params, x_nchw):
    """Pure-JAX reference with the exact PyTorch module semantics."""
    dn = ("NCHW", "HWIO", "NCHW")
    hi = jax.lax.Precision.HIGHEST
    y = jax.lax.conv_general_dilated(x_nchw, params["conv1_w"], (1, 1), "VALID",
                                     dimension_numbers=dn, precision=hi)
    y = jax.nn.relu(y + params["conv1_b"][None, :, None, None])
    y = jax.lax.conv_general_dilated(y, params["conv2_w"], (1, 1), "VALID",
                                     dimension_numbers=dn, precision=hi)
    y = jax.nn.relu(y + params["conv2_b"][None, :, None, None])
    y = jax.lax.reduce_window(y, -jnp.inf, jax.lax.max,
                              (1, 1, 2, 2), (1, 1, 2, 2), "VALID")
    flat = y.reshape(-1)                      # torch.flatten over the FULL tensor
    h1 = jax.nn.relu(flat @ params["fc1_w"] + params["fc1_b"])
    return h1 @ params["op_w"] + params["op_b"]   # dropout(0.9) == identity here


if __name__ == "__main__":
    key = jax.random.PRNGKey(0)
    kx, kp = jax.random.split(key)
    x = jax.random.normal(kx, (N_IMG, C_IN, H, W), jnp.float32)

    params = init_params(kp)
    prep = prepare_params(params)             # one-time host-side repack

    out = net_forward(prep, x)
    jax.block_until_ready(out)
    assert out.shape == (NUM_CLASSES,) and out.dtype == jnp.float32

    ref = reference_forward(params, x)
    np.testing.assert_allclose(np.asarray(out), np.asarray(ref),
                               rtol=5e-2, atol=5e-2)
    print("KERNEL_OK")
</pallas_src>

<mosaic_0001>
module attributes {stable_mosaic.version = 11 : i64} {
  func.func @_fused_forward_kernel(%arg0: memref<32x144xbf16, #tpu.memory_space<vmem>>, %arg1: memref<144x256xbf16, #tpu.memory_space<vmem>>, %arg2: memref<1x256xf32, #tpu.memory_space<vmem>>, %arg3: memref<3x256x512xbf16, #tpu.memory_space<vmem>>, %arg4: memref<1x512xf32, #tpu.memory_space<vmem>>, %arg5: memref<12x192x128xbf16, #tpu.memory_space<vmem>>, %arg6: memref<1x128xf32, #tpu.memory_space<vmem>>, %arg7: memref<128x10xf32, #tpu.memory_space<vmem>>, %arg8: memref<1x10xf32, #tpu.memory_space<vmem>>, %arg9: memref<1x10xf32, #tpu.memory_space<vmem>>, %arg10: memref<40x256xf32, #tpu.memory_space<vmem>>, %arg11: memref<40x512xf32, #tpu.memory_space<vmem>>) attributes {dimension_semantics = [], scalar_prefetch = 0 : i64, scratch_operands = 2 : i64, tpu.core_type = #tpu.core_type<tc>} {
    %c0 = arith.constant 0 : index
    %c0_0 = arith.constant 0 : index
    %0 = vector.load %arg0[%c0, %c0_0] : memref<32x144xbf16, #tpu.memory_space<vmem>>, vector<32x144xbf16>
    %c0_1 = arith.constant 0 : index
    %c0_2 = arith.constant 0 : index
    %1 = vector.load %arg1[%c0_1, %c0_2] : memref<144x256xbf16, #tpu.memory_space<vmem>>, vector<144x256xbf16>
    %cst = arith.constant dense<0.000000e+00> : vector<32x256xf32>
    %2 = tpu.matmul %0, %1, %cst {dimension_numbers = #tpu.dot_dimension_numbers<[1], [0], [0], [1], [0, 0, 1, 1], [], []>} : vector<32x144xbf16>, vector<144x256xbf16>, vector<32x256xf32> -> vector<32x256xf32>
    %c0_3 = arith.constant 0 : index
    %c0_4 = arith.constant 0 : index
    %3 = vector.load %arg2[%c0_3, %c0_4] : memref<1x256xf32, #tpu.memory_space<vmem>>, vector<1x256xf32>
    %4 = vector.broadcast %3 : vector<1x256xf32> to vector<32x256xf32>
    %5 = arith.addf %2, %4 : vector<32x256xf32>
    %cst_5 = arith.constant 0.000000e+00 : f32
    %6 = vector.broadcast %cst_5 : f32 to vector<32x256xf32>
    %7 = arith.maximumf %5, %6 : vector<32x256xf32>
    %c0_6 = arith.constant 0 : index
    %c0_7 = arith.constant 0 : index
    %8 = vector.load %arg10[%c0_6, %c0_7] : memref<40x256xf32, #tpu.memory_space<vmem>>, vector<32x256xf32>
    tpu.vector_store %arg10[%c0_6, %c0_7], %7 {strides = array<i32>} : memref<40x256xf32, #tpu.memory_space<vmem>>, vector<32x256xf32>,
    %cst_8 = arith.constant 0.000000e+00 : f32
    %9 = vector.broadcast %cst_8 : f32 to vector<8x256xf32>
    %c32 = arith.constant 32 : index
    %c0_9 = arith.constant 0 : index
    %10 = vector.load %arg10[%c32, %c0_9] : memref<40x256xf32, #tpu.memory_space<vmem>>, vector<8x256xf32>
    tpu.vector_store %arg10[%c32, %c0_9], %9 {strides = array<i32>} : memref<40x256xf32, #tpu.memory_space<vmem>>, vector<8x256xf32>,
    %c0_10 = arith.constant 0 : index
    %c0_11 = arith.constant 0 : index
    %11 = vector.load %arg10[%c0_10, %c0_11] : memref<40x256xf32, #tpu.memory_space<vmem>>, vector<32x256xf32>
    %12 = arith.truncf %11 : vector<32x256xf32> to vector<32x256xbf16>
    %c0_12 = arith.constant 0 : index
    %c0_13 = arith.constant 0 : index
    %c0_14 = arith.constant 0 : index
    %13 = vector.load %arg3[%c0_12, %c0_13, %c0_14] : memref<3x256x512xbf16, #tpu.memory_space<vmem>>, vector<1x256x512xbf16>
    %14 = vector.shape_cast %13 : vector<1x256x512xbf16> to vector<256x512xbf16>
    %cst_15 = arith.constant dense<0.000000e+00> : vector<32x512xf32>
    %15 = tpu.matmul %12, %14, %cst_15 {dimension_numbers = #tpu.dot_dimension_numbers<[1], [0], [0], [1], [0, 0, 1, 1], [], []>} : vector<32x256xbf16>, vector<256x512xbf16>, vector<32x512xf32> -> vector<32x512xf32>
    %c1 = arith.constant 1 : index
    %c0_16 = arith.constant 0 : index
    %16 = vector.load %arg10[%c1, %c0_16] : memref<40x256xf32, #tpu.memory_space<vmem>>, vector<32x256xf32>
    %17 = arith.truncf %16 : vector<32x256xf32> to vector<32x256xbf16>
    %c1_17 = arith.constant 1 : index
    %c0_18 = arith.constant 0 : index
    %c0_19 = arith.constant 0 : index
    %18 = vector.load %arg3[%c1_17, %c0_18, %c0_19] : memref<3x256x512xbf16, #tpu.memory_space<vmem>>, vector<1x256x512xbf16>
    %19 = vector.shape_cast %18 : vector<1x256x512xbf16> to vector<256x512xbf16>
    %cst_20 = arith.constant dense<0.000000e+00> : vector<32x512xf32>
    %20 = tpu.matmul %17, %19, %cst_20 {dimension_numbers = #tpu.dot_dimension_numbers<[1], [0], [0], [1], [0, 0, 1, 1], [], []>} : vector<32x256xbf16>, vector<256x512xbf16>, vector<32x512xf32> -> vector<32x512xf32>
    %21 = arith.addf %15, %20 : vector<32x512xf32>
    %c2 = arith.constant 2 : index
    %c0_21 = arith.constant 0 : index
    %22 = vector.load %arg10[%c2, %c0_21] : memref<40x256xf32, #tpu.memory_space<vmem>>, vector<32x256xf32>
    %23 = arith.truncf %22 : vector<32x256xf32> to vector<32x256xbf16>
    %c2_22 = arith.constant 2 : index
    %c0_23 = arith.constant 0 : index
    %c0_24 = arith.constant 0 : index
    %24 = vector.load %arg3[%c2_22, %c0_23, %c0_24] : memref<3x256x512xbf16, #tpu.memory_space<vmem>>, vector<1x256x512xbf16>
    %25 = vector.shape_cast %24 : vector<1x256x512xbf16> to vector<256x512xbf16>
    %cst_25 = arith.constant dense<0.000000e+00> : vector<32x512xf32>
    %26 = tpu.matmul %23, %25, %cst_25 {dimension_numbers = #tpu.dot_dimension_numbers<[1], [0], [0], [1], [0, 0, 1, 1], [], []>} : vector<32x256xbf16>, vector<256x512xbf16>, vector<32x512xf32> -> vector<32x512xf32>
    %27 = arith.addf %21, %26 : vector<32x512xf32>
    %c0_26 = arith.constant 0 : index
    %c0_27 = arith.constant 0 : index
    %28 = vector.load %arg4[%c0_26, %c0_27] : memref<1x512xf32, #tpu.memory_space<vmem>>, vector<1x512xf32>
    %29 = vector.broadcast %28 : vector<1x512xf32> to vector<32x512xf32>
    %30 = arith.addf %27, %29 : vector<32x512xf32>
    %cst_28 = arith.constant 0.000000e+00 : f32
    %31 = vector.broadcast %cst_28 : f32 to vector<32x512xf32>
    %32 = arith.maximumf %30, %31 : vector<32x512xf32>
    %c0_29 = arith.constant 0 : index
    %c0_30 = arith.constant 0 : index
    %33 = vector.load %arg11[%c0_29, %c0_30] : memref<40x512xf32, #tpu.memory_space<vmem>>, vector<32x512xf32>
    tpu.vector_store %arg11[%c0_29, %c0_30], %32 {strides = array<i32>} : memref<40x512xf32, #tpu.memory_space<vmem>>, vector<32x512xf32>,
    %cst_31 = arith.constant 0.000000e+00 : f32
    %34 = vector.broadcast %cst_31 : f32 to vector<8x512xf32>
    %c32_32 = arith.constant 32 : index
    %c0_33 = arith.constant 0 : index
    %35 = vector.load %arg11[%c32_32, %c0_33] : memref<40x512xf32, #tpu.memory_space<vmem>>, vector<8x512xf32>
    tpu.vector_store %arg11[%c32_32, %c0_33], %34 {strides = array<i32>} : memref<40x512xf32, #tpu.memory_space<vmem>>, vector<8x512xf32>,
    %c0_34 = arith.constant 0 : index
    %c0_35 = arith.constant 0 : index
    %36 = vector.load %arg11[%c0_34, %c0_35] : memref<40x512xf32, #tpu.memory_space<vmem>>, vector<32x512xf32>
    %c1_36 = arith.constant 1 : index
    %c0_37 = arith.constant 0 : index
    %37 = vector.load %arg11[%c1_36, %c0_37] : memref<40x512xf32, #tpu.memory_space<vmem>>, vector<32x512xf32>
    %38 = arith.maximumf %36, %37 : vector<32x512xf32>
    %39 = vector.extract_strided_slice %38 {offsets = [0, 0], sizes = [32, 32], strides = [1, 1]} : vector<32x512xf32> to vector<32x32xf32>
    %40 = vector.extract_strided_slice %38 {offsets = [0, 32], sizes = [32, 32], strides = [1, 1]} : vector<32x512xf32> to vector<32x32xf32>
    %41 = arith.maximumf %39, %40 : vector<32x32xf32>
    %42 = vector.extract_strided_slice %38 {offsets = [0, 64], sizes = [32, 32], strides = [1, 1]} : vector<32x512xf32> to vector<32x32xf32>
    %43 = vector.extract_strided_slice %38 {offsets = [0, 96], sizes = [32, 32], strides = [1, 1]} : vector<32x512xf32> to vector<32x32xf32>
    %44 = arith.maximumf %42, %43 : vector<32x32xf32>
    %45 = vector.extract_strided_slice %38 {offsets = [0, 128], sizes = [32, 32], strides = [1, 1]} : vector<32x512xf32> to vector<32x32xf32>
    %46 = vector.extract_strided_slice %38 {offsets = [0, 160], sizes = [32, 32], strides = [1, 1]} : vector<32x512xf32> to vector<32x32xf32>
    %47 = arith.maximumf %45, %46 : vector<32x32xf32>
    %48 = vector.extract_strided_slice %38 {offsets = [0, 192], sizes = [32, 32], strides = [1, 1]} : vector<32x512xf32> to vector<32x32xf32>
    %49 = vector.extract_strided_slice %38 {offsets = [0, 224], sizes = [32, 32], strides = [1, 1]} : vector<32x512xf32> to vector<32x32xf32>
    %50 = arith.maximumf %48, %49 : vector<32x32xf32>
    %51 = vector.extract_strided_slice %38 {offsets = [0, 256], sizes = [32, 32], strides = [1, 1]} : vector<32x512xf32> to vector<32x32xf32>
    %52 = vector.extract_strided_slice %38 {offsets = [0, 288], sizes = [32, 32], strides = [1, 1]} : vector<32x512xf32> to vector<32x32xf32>
    %53 = arith.maximumf %51, %52 : vector<32x32xf32>
    %54 = vector.extract_strided_slice %38 {offsets = [0, 320], sizes = [32, 32], strides = [1, 1]} : vector<32x512xf32> to vector<32x32xf32>
    %55 = vector.extract_strided_slice %38 {offsets = [0, 352], sizes = [32, 32], strides = [1, 1]} : vector<32x512xf32> to vector<32x32xf32>
    %56 = arith.maximumf %54, %55 : vector<32x32xf32>
    %57 = tpu.concatenate %41, %44, %47, %50, %53, %56 in 1 : vector<32x32xf32>, vector<32x32xf32>, vector<32x32xf32>, vector<32x32xf32>, vector<32x32xf32>, vector<32x32xf32> -> vector<32x192xf32>
    %58 = vector.extract_strided_slice %57 {offsets = [0, 0], sizes = [1, 192], strides = [1, 1]} : vector<32x192xf32> to vector<1x192xf32>
    %59 = arith.truncf %58 : vector<1x192xf32> to vector<1x192xbf16>
    %c0_38 = arith.constant 0 : index
    %c0_39 = arith.constant 0 : index
    %c0_40 = arith.constant 0 : index
    %60 = vector.load %arg5[%c0_38, %c0_39, %c0_40] : memref<12x192x128xbf16, #tpu.memory_space<vmem>>, vector<1x192x128xbf16>
    %61 = vector.shape_cast %60 : vector<1x192x128xbf16> to vector<192x128xbf16>
    %cst_41 = arith.constant dense<0.000000e+00> : vector<1x128xf32>
    %62 = tpu.matmul %59, %61, %cst_41 {dimension_numbers = #tpu.dot_dimension_numbers<[1], [0], [0], [1], [0, 0, 1, 1], [], []>} : vector<1x192xbf16>, vector<192x128xbf16>, vector<1x128xf32> -> vector<1x128xf32>
    %63 = vector.extract_strided_slice %57 {offsets = [2, 0], sizes = [1, 192], strides = [1, 1]} : vector<32x192xf32> to vector<1x192xf32>
    %64 = arith.truncf %63 : vector<1x192xf32> to vector<1x192xbf16>
    %c1_42 = arith.constant 1 : index
    %c0_43 = arith.constant 0 : index
    %c0_44 = arith.constant 0 : index
    %65 = vector.load %arg5[%c1_42, %c0_43, %c0_44] : memref<12x192x128xbf16, #tpu.memory_space<vmem>>, vector<1x192x128xbf16>
    %66 = vector.shape_cast %65 : vector<1x192x128xbf16> to vector<192x128xbf16>
    %cst_45 = arith.constant dense<0.000000e+00> : vector<1x128xf32>
    %67 = tpu.matmul %64, %66, %cst_45 {dimension_numbers = #tpu.dot_dimension_numbers<[1], [0], [0], [1], [0, 0, 1, 1], [], []>} : vector<1x192xbf16>, vector<192x128xbf16>, vector<1x128xf32> -> vector<1x128xf32>
    %68 = vector.extract_strided_slice %57 {offsets = [4, 0], sizes = [1, 192], strides = [1, 1]} : vector<32x192xf32> to vector<1x192xf32>
    %69 = arith.truncf %68 : vector<1x192xf32> to vector<1x192xbf16>
    %c2_46 = arith.constant 2 : index
    %c0_47 = arith.constant 0 : index
    %c0_48 = arith.constant 0 : index
    %70 = vector.load %arg5[%c2_46, %c0_47, %c0_48] : memref<12x192x128xbf16, #tpu.memory_space<vmem>>, vector<1x192x128xbf16>
    %71 = vector.shape_cast %70 : vector<1x192x128xbf16> to vector<192x128xbf16>
    %cst_49 = arith.constant dense<0.000000e+00> : vector<1x128xf32>
    %72 = tpu.matmul %69, %71, %cst_49 {dimension_numbers = #tpu.dot_dimension_numbers<[1], [0], [0], [1], [0, 0, 1, 1], [], []>} : vector<1x192xbf16>, vector<192x128xbf16>, vector<1x128xf32> -> vector<1x128xf32>
    %73 = vector.extract_strided_slice %57 {offsets = [6, 0], sizes = [1, 192], strides = [1, 1]} : vector<32x192xf32> to vector<1x192xf32>
    %74 = arith.truncf %73 : vector<1x192xf32> to vector<1x192xbf16>
    %c3 = arith.constant 3 : index
    %c0_50 = arith.constant 0 : index
    %c0_51 = arith.constant 0 : index
    %75 = vector.load %arg5[%c3, %c0_50, %c0_51] : memref<12x192x128xbf16, #tpu.memory_space<vmem>>, vector<1x192x128xbf16>
    %76 = vector.shape_cast %75 : vector<1x192x128xbf16> to vector<192x128xbf16>
    %cst_52 = arith.constant dense<0.000000e+00> : vector<1x128xf32>
    %77 = tpu.matmul %74, %76, %cst_52 {dimension_numbers = #tpu.dot_dimension_numbers<[1], [0], [0], [1], [0, 0, 1, 1], [], []>} : vector<1x192xbf16>, vector<192x128xbf16>, vector<1x128xf32> -> vector<1x128xf32>
    %78 = vector.extract_strided_slice %57 {offsets = [8, 0], sizes = [1, 192], strides = [1, 1]} : vector<32x192xf32> to vector<1x192xf32>
    %79 = arith.truncf %78 : vector<1x192xf32> to vector<1x192xbf16>
    %c4 = arith.constant 4 : index
    %c0_53 = arith.constant 0 : index
    %c0_54 = arith.constant 0 : index
    %80 = vector.load %arg5[%c4, %c0_53, %c0_54] : memref<12x192x128xbf16, #tpu.memory_space<vmem>>, vector<1x192x128xbf16>
    %81 = vector.shape_cast %80 : vector<1x192x128xbf16> to vector<192x128xbf16>
    %cst_55 = arith.constant dense<0.000000e+00> : vector<1x128xf32>
    %82 = tpu.matmul %79, %81, %cst_55 {dimension_numbers = #tpu.dot_dimension_numbers<[1], [0], [0], [1], [0, 0, 1, 1], [], []>} : vector<1x192xbf16>, vector<192x128xbf16>, vector<1x128xf32> -> vector<1x128xf32>
    %83 = vector.extract_strided_slice %57 {offsets = [10, 0], sizes = [1, 192], strides = [1, 1]} : vector<32x192xf32> to vector<1x192xf32>
    %84 = arith.truncf %83 : vector<1x192xf32> to vector<1x192xbf16>
    %c5 = arith.constant 5 : index
    %c0_56 = arith.constant 0 : index
    %c0_57 = arith.constant 0 : index
    %85 = vector.load %arg5[%c5, %c0_56, %c0_57] : memref<12x192x128xbf16, #tpu.memory_space<vmem>>, vector<1x192x128xbf16>
    %86 = vector.shape_cast %85 : vector<1x192x128xbf16> to vector<192x128xbf16>
    %cst_58 = arith.constant dense<0.000000e+00> : vector<1x128xf32>
    %87 = tpu.matmul %84, %86, %cst_58 {dimension_numbers = #tpu.dot_dimension_numbers<[1], [0], [0], [1], [0, 0, 1, 1], [], []>} : vector<1x192xbf16>, vector<192x128xbf16>, vector<1x128xf32> -> vector<1x128xf32>
    %88 = vector.extract_strided_slice %57 {offsets = [16, 0], sizes = [1, 192], strides = [1, 1]} : vector<32x192xf32> to vector<1x192xf32>
    %89 = arith.truncf %88 : vector<1x192xf32> to vector<1x192xbf16>
    %c6 = arith.constant 6 : index
    %c0_59 = arith.constant 0 : index
    %c0_60 = arith.constant 0 : index
    %90 = vector.load %arg5[%c6, %c0_59, %c0_60] : memref<12x192x128xbf16, #tpu.memory_space<vmem>>, vector<1x192x128xbf16>
    %91 = vector.shape_cast %90 : vector<1x192x128xbf16> to vector<192x128xbf16>
    %cst_61 = arith.constant dense<0.000000e+00> : vector<1x128xf32>
    %92 = tpu.matmul %89, %91, %cst_61 {dimension_numbers = #tpu.dot_dimension_numbers<[1], [0], [0], [1], [0, 0, 1, 1], [], []>} : vector<1x192xbf16>, vector<192x128xbf16>, vector<1x128xf32> -> vector<1x128xf32>
    %93 = vector.extract_strided_slice %57 {offsets = [18, 0], sizes = [1, 192], strides = [1, 1]} : vector<32x192xf32> to vector<1x192xf32>
    %94 = arith.truncf %93 : vector<1x192xf32> to vector<1x192xbf16>
    %c7 = arith.constant 7 : index
    %c0_62 = arith.constant 0 : index
    %c0_63 = arith.constant 0 : index
    %95 = vector.load %arg5[%c7, %c0_62, %c0_63] : memref<12x192x128xbf16, #tpu.memory_space<vmem>>, vector<1x192x128xbf16>
    %96 = vector.shape_cast %95 : vector<1x192x128xbf16> to vector<192x128xbf16>
    %cst_64 = arith.constant dense<0.000000e+00> : vector<1x128xf32>
    %97 = tpu.matmul %94, %96, %cst_64 {dimension_numbers = #tpu.dot_dimension_numbers<[1], [0], [0], [1], [0, 0, 1, 1], [], []>} : vector<1x192xbf16>, vector<192x128xbf16>, vector<1x128xf32> -> vector<1x128xf32>
    %98 = vector.extract_strided_slice %57 {offsets = [20, 0], sizes = [1, 192], strides = [1, 1]} : vector<32x192xf32> to vector<1x192xf32>
    %99 = arith.truncf %98 : vector<1x192xf32> to vector<1x192xbf16>
    %c8 = arith.constant 8 : index
    %c0_65 = arith.constant 0 : index
    %c0_66 = arith.constant 0 : index
    %100 = vector.load %arg5[%c8, %c0_65, %c0_66] : memref<12x192x128xbf16, #tpu.memory_space<vmem>>, vector<1x192x128xbf16>
    %101 = vector.shape_cast %100 : vector<1x192x128xbf16> to vector<192x128xbf16>
    %cst_67 = arith.constant dense<0.000000e+00> : vector<1x128xf32>
    %102 = tpu.matmul %99, %101, %cst_67 {dimension_numbers = #tpu.dot_dimension_numbers<[1], [0], [0], [1], [0, 0, 1, 1], [], []>} : vector<1x192xbf16>, vector<192x128xbf16>, vector<1x128xf32> -> vector<1x128xf32>
    %103 = vector.extract_strided_slice %57 {offsets = [22, 0], sizes = [1, 192], strides = [1, 1]} : vector<32x192xf32> to vector<1x192xf32>
    %104 = arith.truncf %103 : vector<1x192xf32> to vector<1x192xbf16>
    %c9 = arith.constant 9 : index
    %c0_68 = arith.constant 0 : index
    %c0_69 = arith.constant 0 : index
    %105 = vector.load %arg5[%c9, %c0_68, %c0_69] : memref<12x192x128xbf16, #tpu.memory_space<vmem>>, vector<1x192x128xbf16>
    %106 = vector.shape_cast %105 : vector<1x192x128xbf16> to vector<192x128xbf16>
    %cst_70 = arith.constant dense<0.000000e+00> : vector<1x128xf32>
    %107 = tpu.matmul %104, %106, %cst_70 {dimension_numbers = #tpu.dot_dimension_numbers<[1], [0], [0], [1], [0, 0, 1, 1], [], []>} : vector<1x192xbf16>, vector<192x128xbf16>, vector<1x128xf32> -> vector<1x128xf32>
    %108 = vector.extract_strided_slice %57 {offsets = [24, 0], sizes = [1, 192], strides = [1, 1]} : vector<32x192xf32> to vector<1x192xf32>
    %109 = arith.truncf %108 : vector<1x192xf32> to vector<1x192xbf16>
    %c10 = arith.constant 10 : index
    %c0_71 = arith.constant 0 : index
    %c0_72 = arith.constant 0 : index
    %110 = vector.load %arg5[%c10, %c0_71, %c0_72] : memref<12x192x128xbf16, #tpu.memory_space<vmem>>, vector<1x192x128xbf16>
    %111 = vector.shape_cast %110 : vector<1x192x128xbf16> to vector<192x128xbf16>
    %cst_73 = arith.constant dense<0.000000e+00> : vector<1x128xf32>
    %112 = tpu.matmul %109, %111, %cst_73 {dimension_numbers = #tpu.dot_dimension_numbers<[1], [0], [0], [1], [0, 0, 1, 1], [], []>} : vector<1x192xbf16>, vector<192x128xbf16>, vector<1x128xf32> -> vector<1x128xf32>
    %113 = vector.extract_strided_slice %57 {offsets = [26, 0], sizes = [1, 192], strides = [1, 1]} : vector<32x192xf32> to vector<1x192xf32>
    %114 = arith.truncf %113 : vector<1x192xf32> to vector<1x192xbf16>
    %c11 = arith.constant 11 : index
    %c0_74 = arith.constant 0 : index
    %c0_75 = arith.constant 0 : index
    %115 = vector.load %arg5[%c11, %c0_74, %c0_75] : memref<12x192x128xbf16, #tpu.memory_space<vmem>>, vector<1x192x128xbf16>
    %116 = vector.shape_cast %115 : vector<1x192x128xbf16> to vector<192x128xbf16>
    %cst_76 = arith.constant dense<0.000000e+00> : vector<1x128xf32>
    %117 = tpu.matmul %114, %116, %cst_76 {dimension_numbers = #tpu.dot_dimension_numbers<[1], [0], [0], [1], [0, 0, 1, 1], [], []>} : vector<1x192xbf16>, vector<192x128xbf16>, vector<1x128xf32> -> vector<1x128xf32>
    %118 = arith.addf %62, %67 : vector<1x128xf32>
    %119 = arith.addf %72, %77 : vector<1x128xf32>
    %120 = arith.addf %82, %87 : vector<1x128xf32>
    %121 = arith.addf %92, %97 : vector<1x128xf32>
    %122 = arith.addf %102, %107 : vector<1x128xf32>
    %123 = arith.addf %112, %117 : vector<1x128xf32>
    %124 = arith.addf %118, %119 : vector<1x128xf32>
    %125 = arith.addf %120, %121 : vector<1x128xf32>
    %126 = arith.addf %122, %123 : vector<1x128xf32>
    %127 = arith.addf %124, %125 : vector<1x128xf32>
    %128 = arith.addf %127, %126 : vector<1x128xf32>
    %c0_77 = arith.constant 0 : index
    %c0_78 = arith.constant 0 : index
    %129 = vector.load %arg6[%c0_77, %c0_78] : memref<1x128xf32, #tpu.memory_space<vmem>>, vector<1x128xf32>
    %130 = arith.addf %128, %129 : vector<1x128xf32>
    %cst_79 = arith.constant 0.000000e+00 : f32
    %131 = vector.broadcast %cst_79 : f32 to vector<1x128xf32>
    %132 = arith.maximumf %130, %131 : vector<1x128xf32>
    %c0_80 = arith.constant 0 : index
    %c0_81 = arith.constant 0 : index
    %133 = vector.load %arg7[%c0_80, %c0_81] : memref<128x10xf32, #tpu.memory_space<vmem>>, vector<128x10xf32>
    %cst_82 = arith.constant dense<0.000000e+00> : vector<1x10xf32>
    %134 = tpu.matmul %132, %133, %cst_82 {dimension_numbers = #tpu.dot_dimension_numbers<[1], [0], [0], [1], [0, 0, 1, 1], [], []>} : vector<1x128xf32>, vector<128x10xf32>, vector<1x10xf32> -> vector<1x10xf32>
    %c0_83 = arith.constant 0 : index
    %c0_84 = arith.constant 0 : index
    %135 = vector.load %arg8[%c0_83, %c0_84] : memref<1x10xf32, #tpu.memory_space<vmem>>, vector<1x10xf32>
    %136 = arith.addf %134, %135 : vector<1x10xf32>
    %c0_85 = arith.constant 0 : index
    %c0_86 = arith.constant 0 : index
    %137 = vector.load %arg9[%c0_85, %c0_86] : memref<1x10xf32, #tpu.memory_space<vmem>>, vector<1x10xf32>
    tpu.vector_store %arg9[%c0_85, %c0_86], %136 {strides = array<i32>} : memref<1x10xf32, #tpu.memory_space<vmem>>, vector<1x10xf32>,
    return
  }
}

</mosaic_0001>

<llo_original>
// kernel: net_forward.1
$region0: #{net_forward.1}
  #allocation0 [shape = 'u32[]', space=smem, size = 0x4, offset = 0x4, fixed_abs, tag = 'smem constant byte address 0x4 - core index']
  #allocation1 [shape = 'u32[144,128]{1,0:T(1,128)}', space=vmem, size = 0x12000, scoped, tag = 'internal scratch']
  #allocation2 [shape = 'f32[40,256]{1,0:T(8,128)}', space=vmem, size = 0xa000, scoped, tag = 'scratch operand']
  #allocation3 [shape = 'f32[40,512]{1,0:T(8,128)}', space=vmem, size = 0x14000, scoped, tag = 'scratch operand']
  %s0 = inlined_call_operand.vmem [shape: bf16[32,144], index: 0, kind: input, shape index: {}]
  %s1 = inlined_call_operand.vmem [shape: bf16[144,256], index: 1, kind: input, shape index: {}]
  %s2 = inlined_call_operand.vmem [shape: f32[1,256], index: 2, kind: input, shape index: {}]
  %s3 = inlined_call_operand.hbm [shape: bf16[3,256,512], index: 3, kind: input, shape index: {}]
  %s4 = inlined_call_operand.vmem [shape: f32[1,512], index: 4, kind: input, shape index: {}]
  %s5 = inlined_call_operand.hbm [shape: bf16[12,192,128], index: 5, kind: input, shape index: {}]
  %s6 = inlined_call_operand.vmem [shape: f32[1,128], index: 6, kind: input, shape index: {}]
  %s7 = inlined_call_operand.vmem [shape: f32[128,10], index: 7, kind: input, shape index: {}]
  %s8 = inlined_call_operand.vmem [shape: f32[1,10], index: 8, kind: input, shape index: {}]
  %s9 = inlined_call_operand.hbm [shape: f32[1,10], index: 9, kind: output, shape index: {}]
  %s10 = sld [smem:[#allocation0]]
  $region54: #{net_forward.1} parent=0
    _
  %s12 = ssub.s32 1, %s10
  %s13 = scalar_select 0, %s12, %s10
  $region1: #{net_forward.1} parent=0
    #allocation4 [shape = 'u8[786432]{0}', space=vmem, size = 0xc0000, scoped, tag = 'input window, operand 3, single buffered']
    #allocation5 [shape = 's32[1]{0}', space=sflag, size = 0x4, scoped, tag = 'scoped memory for net_forward.1']
    #allocation6 [shape = 's32[1]{0}', space=sflag, size = 0x4, scoped, tag = 'scoped memory for net_forward.1']
    #allocation7 [shape = 'u8[589824]{0}', space=vmem, size = 0x90000, scoped, tag = 'input window, operand 5, single buffered']
    #allocation8 [shape = 's32[1]{0}', space=sflag, size = 0x4, scoped, tag = 'scoped memory for net_forward.1']
    #allocation9 [shape = 'u8[512]{0}', space=vmem, size = 0x400, scoped, tag = 'output window, operand 0, single buffered']
    %14 = vsyncpa [#allocation5], 0
    %15 = vsyncpa [#allocation8], 0
    %16 = vsyncpa [#allocation6], 0
    // Predicated region
    $region2: #{net_forward.1} parent=1 // pred_check
      _
    $region3: #{net_forward.1} parent=1 // pred_check_branch
      %18 = sbr.rel (0) target = $region5
    $region4: #{net_forward.1} parent=1 // pred_region
      _
    $region5: #{net_forward.1} parent=1 // pred_fallthru
      _
    // Predicated region
    $region6: #{net_forward.1} parent=1 // pred_check
      _
    $region7: #{net_forward.1} parent=1 // pred_check_branch
      %20 = sbr.rel (0) target = $region9
    $region8: #{net_forward.1} parent=1 // pred_region
      _
    $region9: #{net_forward.1} parent=1 // pred_fallthru
      _
    // Predicated region
    $region10: #{net_forward.1} parent=1 // pred_check
      _
    $region11: #{net_forward.1} parent=1 // pred_check_branch
      %22 = sbr.rel (0) target = $region13
    $region12: #{net_forward.1} parent=1 // pred_region
      _
    $region13: #{net_forward.1} parent=1 // pred_fallthru
      _
    // Predicated region
    $region14: #{net_forward.1} parent=1 // pred_check
      _
    $region15: #{net_forward.1} parent=1 // pred_check_branch
      %24 = sbr.rel (0) target = $region17
    $region16: #{net_forward.1} parent=1 // pred_region
      %s26 = ssub.s32 24576, 24576
      %27 = vsyncadd [#allocation5], %s26
      %s28 = sshll.u32 [#allocation4], 4
      %s29 = int_to_ptr.vmem [resolvable:$true] %s28
      %34 = dma.hbm_to_vmem [thread:$0]  %s3, 24576, %s29, [#allocation5], 256, 256, 16
    $region17: #{net_forward.1} parent=1 // pred_fallthru
      _
    // Predicated region
    $region18: #{net_forward.1} parent=1 // pred_check
      _
    $region19: #{net_forward.1} parent=1 // pred_check_branch
      %36 = sbr.rel (0) target = $region21
    $region20: #{net_forward.1} parent=1 // pred_region
      _
    $region21: #{net_forward.1} parent=1 // pred_fallthru
      _
    // Predicated region
    $region22: #{net_forward.1} parent=1 // pred_check
      _
    $region23: #{net_forward.1} parent=1 // pred_check_branch
      %38 = sbr.rel (0) target = $region25
    $region24: #{net_forward.1} parent=1 // pred_region
      %s40 = ssub.s32 18432, 18432
      %41 = vsyncadd [#allocation8], %s40
      %s42 = sshll.u32 [#allocation7], 4
      %s43 = int_to_ptr.vmem [resolvable:$true] %s42
      %48 = dma.hbm_to_vmem [thread:$0]  %s5, 18432, %s43, [#allocation8], 64, 64, 4
    $region25: #{net_forward.1} parent=1 // pred_fallthru
      _
    // Predicated region
    $region26: #{net_forward.1} parent=1 // pred_check
      _
    $region27: #{net_forward.1} parent=1 // pred_check_branch
      %50 = sbr.rel (0) target = $region29
    $region28: #{net_forward.1} parent=1 // pred_region
      _
    $region29: #{net_forward.1} parent=1 // pred_fallthru
      _
    // Predicated region
    $region30: #{net_forward.1} parent=1 // pred_check
      _
    $region31: #{net_forward.1} parent=1 // pred_check_branch
      %52 = sbr.rel (0) target = $region33
    $region32: #{net_forward.1} parent=1 // pred_region
      _
    $region33: #{net_forward.1} parent=1 // pred_fallthru
      _
    // Predicated region
    $region34: #{net_forward.1} parent=1 // pred_check
      _
    $region35: #{net_forward.1} parent=1 // pred_check_branch
      %54 = sbr.rel (0) target = $region37
    $region36: #{net_forward.1} parent=1 // pred_region
      _
    $region37: #{net_forward.1} parent=1 // pred_fallthru
      _
    // Predicated region
    $region38: #{net_forward.1} parent=1 // pred_check
      _
    $region39: #{net_forward.1} parent=1 // pred_check_branch
      %56 = sbr.rel (0) target = $region41
    $region40: #{net_forward.1} parent=1 // pred_region
      %57 = dma.done [#allocation5], 24576
    $region41: #{net_forward.1} parent=1 // pred_fallthru
      _
    // Predicated region
    $region42: #{net_forward.1} parent=1 // pred_check
      _
    $region43: #{net_forward.1} parent=1 // pred_check_branch
      %59 = sbr.rel (0) target = $region45
    $region44: #{net_forward.1} parent=1 // pred_region
      %60 = dma.done [#allocation8], 18432
    $region45: #{net_forward.1} parent=1 // pred_fallthru
      _
    %v62 = vld [vmem:[%s0] sm:$0xff]
    %v63 = vld [vmem:[%s0 + $0x8] sm:$0xff]
    %v64 = vld [vmem:[%s0 + $0x10] sm:$0xff]
    %v65 = vld [vmem:[%s0 + $0x18] sm:$0xff]
    %v66 = vld [vmem:[%s1] sm:$0xff]
    %v67 = vld [vmem:[%s1 + $0x8] sm:$0xff]
    %v68 = vld [vmem:[%s1 + $0x10] sm:$0xff]
    %v69 = vld [vmem:[%s1 + $0x18] sm:$0xff]
    %v70 = vld [vmem:[%s1 + $0x20] sm:$0xff]
    %v71 = vld [vmem:[%s1 + $0x28] sm:$0xff]
    %v72 = vld [vmem:[%s1 + $0x30] sm:$0xff]
    %v73 = vld [vmem:[%s1 + $0x38] sm:$0xff]
    %v74 = vld [vmem:[%s1 + $0x40] sm:$0xff]
    %v75 = vld [vmem:[%s1 + $0x48] sm:$0xff]
    %v76 = vld [vmem:[%s1 + $0x50] sm:$0xff]
    %v77 = vld [vmem:[%s1 + $0x58] sm:$0xff]
    %v78 = vld [vmem:[%s1 + $0x60] sm:$0xff]
    %v79 = vld [vmem:[%s1 + $0x68] sm:$0xff]
    %v80 = vld [vmem:[%s1 + $0x70] sm:$0xff]
    %v81 = vld [vmem:[%s1 + $0x78] sm:$0xff]
    %v82 = vld [vmem:[%s1 + $0x80] sm:$0xff]
    %v83 = vld [vmem:[%s1 + $0x88] sm:$0xff]
    %v84 = vld [vmem:[%s2] sm:$0x3]
    %v86 = vlaneseq
    %v87 = vshrl.u32 %v86, 7
    %v88 = vsub.s32 0, %v87
    %v89 = vrot.slane %v84, %v88
    %v90 = vlaneseq
    %v91 = vshrl.u32 %v90, 7
    %v92 = vsub.s32 1, %v91
    %v93 = vrot.slane %v84, %v92
    %v100 = vunpack.c.l.b16 %v62
    %v101 = vunpack.c.h.b16 %v62
    %v102 = vunpack.c.l.b16 %v63
    %v103 = vunpack.c.h.b16 %v63
    %v104 = vunpack.c.l.b16 %v64
    %v105 = vunpack.c.h.b16 %v64
    %v106 = vunpack.c.l.b16 %v65
    %v107 = vunpack.c.h.b16 %v65
    %v108 = vpack.c.b16 %v102, %v100
    %v109 = vpack.c.b16 %v103, %v101
    %v110 = vpack.c.b16 %v106, %v104
    %v111 = vpack.c.b16 %v107, %v105
    %v132 = vunpack.c.l.b16 %v66
    %v133 = vunpack.c.h.b16 %v66
    %v134 = vunpack.c.l.b16 %v67
    %v135 = vunpack.c.h.b16 %v67
    %v136 = vunpack.c.l.b16 %v68
    %v137 = vunpack.c.h.b16 %v68
    %v138 = vunpack.c.l.b16 %v69
    %v139 = vunpack.c.h.b16 %v69
    %v140 = vunpack.c.l.b16 %v70
    %v141 = vunpack.c.h.b16 %v70
    %v142 = vunpack.c.l.b16 %v71
    %v143 = vunpack.c.h.b16 %v71
    %v144 = vunpack.c.l.b16 %v72
    %v145 = vunpack.c.h.b16 %v72
    %v146 = vunpack.c.l.b16 %v73
    %v147 = vunpack.c.h.b16 %v73
    %v148 = vunpack.c.l.b16 %v74
    %v149 = vunpack.c.h.b16 %v74
    %v150 = vunpack.c.l.b16 %v75
    %v151 = vunpack.c.h.b16 %v75
    %v152 = vunpack.c.l.b16 %v76
    %v153 = vunpack.c.h.b16 %v76
    %v154 = vunpack.c.l.b16 %v77
    %v155 = vunpack.c.h.b16 %v77
    %v156 = vunpack.c.l.b16 %v78
    %v157 = vunpack.c.h.b16 %v78
    %v158 = vunpack.c.l.b16 %v79
    %v159 = vunpack.c.h.b16 %v79
    %v160 = vunpack.c.l.b16 %v80
    %v161 = vunpack.c.h.b16 %v80
    %v162 = vunpack.c.l.b16 %v81
    %v163 = vunpack.c.h.b16 %v81
    %v164 = vunpack.c.l.b16 %v82
    %v165 = vunpack.c.h.b16 %v82
    %v166 = vunpack.c.l.b16 %v83
    %v167 = vunpack.c.h.b16 %v83
    %v168 = vpack.c.b16 %v134, %v132
    %v169 = vpack.c.b16 %v135, %v133
    %v170 = vpack.c.b16 %v138, %v136
    %v171 = vpack.c.b16 %v139, %v137
    %v172 = vpack.c.b16 %v142, %v140
    %v173 = vpack.c.b16 %v143, %v141
    %v174 = vpack.c.b16 %v146, %v144
    %v175 = vpack.c.b16 %v147, %v145
    %v176 = vpack.c.b16 %v150, %v148
    %v177 = vpack.c.b16 %v151, %v149
    %v178 = vpack.c.b16 %v154, %v152
    %v179 = vpack.c.b16 %v155, %v153
    %v180 = vpack.c.b16 %v158, %v156
    %v181 = vpack.c.b16 %v159, %v157
    %v182 = vpack.c.b16 %v162, %v160
    %v183 = vpack.c.b16 %v163, %v161
    %v184 = vpack.c.b16 %v166, %v164
    %v185 = vpack.c.b16 %v167, %v165
    %vm204 = vcmask 130048
    %v206 = vsel %vm204, %v109, 0
    %v209 = vsel %vm204, %v111, 0
    %211 = vmatprep.subr.bf16.mxu0 %v169
    %212 = vmatpush1.bf16.msra.mxu0 %v168
    %213 = vmatprep.subr.bf16.mxu0 %v171
    %214 = vmatpush1.bf16.msra.mxu0 %v170
    %215 = vmatprep.subr.bf16.mxu0 %v173
    %216 = vmatpush1.bf16.msra.mxu0 %v172
    %217 = vmatprep.subr.bf16.mxu0 %v175
    %218 = vmatpush1.bf16.msra.mxu0 %v174
    %219 = vmatprep.subr.bf16.mxu0 %v177
    %220 = vmatpush1.bf16.msra.mxu0 %v176
    %221 = vmatprep.subr.bf16.mxu0 %v179
    %222 = vmatpush1.bf16.msra.mxu0 %v178
    %223 = vmatprep.subr.bf16.mxu0 %v181
    %224 = vmatpush1.bf16.msra.mxu0 %v180
    %225 = vmatprep.subr.bf16.mxu0 %v183
    %226 = vmatpush1.bf16.msra.mxu0 %v182
    %227 = vmatprep.subr.bf16.mxu0 %v185
    %228 = vmatpush1.bf16.msra.mxu0 %v184
    %229 = vmatprep.subr.bf16.mxu0 0
    %230 = vmatpush1.bf16.msra.mxu0 0
    %231 = vmatprep.subr.bf16.mxu0 0
    %232 = vmatpush1.bf16.msra.mxu0 0
    %233 = vmatprep.subr.bf16.mxu0 0
    %234 = vmatpush1.bf16.msra.mxu0 0
    %235 = vmatprep.subr.bf16.mxu0 0
    %236 = vmatpush1.bf16.msra.mxu0 0
    %237 = vmatprep.subr.bf16.mxu0 0
    %238 = vmatpush1.bf16.msra.mxu0 0
    %239 = vmatprep.subr.bf16.mxu0 0
    %240 = vmatpush1.bf16.msra.mxu0 0
    %241 = vmatprep.subr.bf16.mxu0 0
    %242 = vmatpush1.bf16.msra.mxu0 0
    %243 = vmatprep.mubr.bf16.mxu0 %v206
    %244 = vmatmul.mubr.bf16.gmra.mrb[0].mxu0 %v108
    %v245 = vpop.f32.mrb[0].mxu0
    %v246 = vadd.f32 %v89, %v245
    %v247 = vpop.f32.mrb[0].mxu0
    %v248 = vadd.f32 %v93, %v247
    %v249 = vpop.f32.mrb[0].mxu0
    %v250 = vadd.f32 %v89, %v249
    %v251 = vpop.f32.mrb[0].mxu0
    %v252 = vadd.f32 %v93, %v251
    %253 = vmatprep.mubr.bf16.mxu0 %v209
    %254 = vmatmul.mubr.bf16.gmra.mrb[0].mxu0 %v110
    %v255 = vpop.f32.mrb[0].mxu0
    %v256 = vadd.f32 %v89, %v255
    %v257 = vpop.f32.mrb[0].mxu0
    %v258 = vadd.f32 %v93, %v257
    %v259 = vpop.f32.mrb[0].mxu0
    %v260 = vadd.f32 %v89, %v259
    %v261 = vpop.f32.mrb[0].mxu0
    %v262 = vadd.f32 %v93, %v261
    %263 = vdwg.mxu0
    %v264 = vmax.f32 %v246, 0.0
    %v265 = vmax.f32 %v248, 0.0
    %v266 = vmax.f32 %v250, 0.0
    %v267 = vmax.f32 %v252, 0.0
    %v268 = vmax.f32 %v256, 0.0
    %v269 = vmax.f32 %v258, 0.0
    %v270 = vmax.f32 %v260, 0.0
    %v271 = vmax.f32 %v262, 0.0
    %272 = vst [vmem:[#allocation2] sm:$0xff] %v264
    %273 = vst [vmem:[#allocation2 + $0x8] sm:$0xff] %v265
    %274 = vst [vmem:[#allocation2 + $0x10] sm:$0xff] %v266
    %275 = vst [vmem:[#allocation2 + $0x18] sm:$0xff] %v267
    %276 = vst [vmem:[#allocation2 + $0x20] sm:$0xff] %v268
    %277 = vst [vmem:[#allocation2 + $0x28] sm:$0xff] %v269
    %278 = vst [vmem:[#allocation2 + $0x30] sm:$0xff] %v270
    %279 = vst [vmem:[#allocation2 + $0x38] sm:$0xff] %v271
    %280 = vst [vmem:[#allocation2 + $0x40] sm:$0xff] 0.0
    %281 = vst [vmem:[#allocation2 + $0x48] sm:$0xff] 0.0
    %v282 = vld [vmem:[#allocation2] sm:$0xff]
    %v283 = vld [vmem:[#allocation2 + $0x8] sm:$0xff]
    %v284 = vld [vmem:[#allocation2 + $0x10] sm:$0xff]
    %v285 = vld [vmem:[#allocation2 + $0x18] sm:$0xff]
    %v286 = vld [vmem:[#allocation2 + $0x20] sm:$0xff]
    %v287 = vld [vmem:[#allocation2 + $0x28] sm:$0xff]
    %v288 = vld [vmem:[#allocation2 + $0x30] sm:$0xff]
    %v289 = vld [vmem:[#allocation2 + $0x38] sm:$0xff]
    %v290 = vpack.c.bf16 %v284, %v282
    %v291 = vpack.c.bf16 %v285, %v283
    %v292 = vpack.c.bf16 %v288, %v286
    %v293 = vpack.c.bf16 %v289, %v287
    %v294 = vld [vmem:[#allocation4] sm:$0xff]
    %v295 = vld [vmem:[#allocation4 + $0x8] sm:$0xff]
    %v296 = vld [vmem:[#allocation4 + $0x10] sm:$0xff]
    %v297 = vld [vmem:[#allocation4 + $0x18] sm:$0xff]
    %v298 = vld [vmem:[#allocation4 + $0x20] sm:$0xff]
    %v299 = vld [vmem:[#allocation4 + $0x28] sm:$0xff]
    %v300 = vld [vmem:[#allocation4 + $0x30] sm:$0xff]
    %v301 = vld [vmem:[#allocation4 + $0x38] sm:$0xff]
    %v302 = vld [vmem:[#allocation4 + $0x40] sm:$0xff]
    %v303 = vld [vmem:[#allocation4 + $0x48] sm:$0xff]
    %v304 = vld [vmem:[#allocation4 + $0x50] sm:$0xff]
    %v305 = vld [vmem:[#allocation4 + $0x58] sm:$0xff]
    %v306 = vld [vmem:[#allocation4 + $0x60] sm:$0xff]
    %v307 = vld [vmem:[#allocation4 + $0x68] sm:$0xff]
    %v308 = vld [vmem:[#allocation4 + $0x70] sm:$0xff]
    %v309 = vld [vmem:[#allocation4 + $0x78] sm:$0xff]
    %v310 = vld [vmem:[#allocation4 + $0x80] sm:$0xff]
    %v311 = vld [vmem:[#allocation4 + $0x88] sm:$0xff]
    %v312 = vld [vmem:[#allocation4 + $0x90] sm:$0xff]
    %v313 = vld [vmem:[#allocation4 + $0x98] sm:$0xff]
    %v314 = vld [vmem:[#allocation4 + $0xa0] sm:$0xff]
    %v315 = vld [vmem:[#allocation4 + $0xa8] sm:$0xff]
    %v316 = vld [vmem:[#allocation4 + $0xb0] sm:$0xff]
    %v317 = vld [vmem:[#allocation4 + $0xb8] sm:$0xff]
    %v318 = vld [vmem:[#allocation4 + $0xc0] sm:$0xff]
    %v319 = vld [vmem:[#allocation4 + $0xc8] sm:$0xff]
    %v320 = vld [vmem:[#allocation4 + $0xd0] sm:$0xff]
    %v321 = vld [vmem:[#allocation4 + $0xd8] sm:$0xff]
    %v322 = vld [vmem:[#allocation4 + $0xe0] sm:$0xff]
    %v323 = vld [vmem:[#allocation4 + $0xe8] sm:$0xff]
    %v324 = vld [vmem:[#allocation4 + $0xf0] sm:$0xff]
    %v325 = vld [vmem:[#allocation4 + $0xf8] sm:$0xff]
    %v326 = vld [vmem:[#allocation4 + $0x100] sm:$0xff]
    %v327 = vld [vmem:[#allocation4 + $0x108] sm:$0xff]
    %v328 = vld [vmem:[#allocation4 + $0x110] sm:$0xff]
    %v329 = vld [vmem:[#allocation4 + $0x118] sm:$0xff]
    %v330 = vld [vmem:[#allocation4 + $0x120] sm:$0xff]
    %v331 = vld [vmem:[#allocation4 + $0x128] sm:$0xff]
    %v332 = vld [vmem:[#allocation4 + $0x130] sm:$0xff]
    %v333 = vld [vmem:[#allocation4 + $0x138] sm:$0xff]
    %v334 = vld [vmem:[#allocation4 + $0x140] sm:$0xff]
    %v335 = vld [vmem:[#allocation4 + $0x148] sm:$0xff]
    %v336 = vld [vmem:[#allocation4 + $0x150] sm:$0xff]
    %v337 = vld [vmem:[#allocation4 + $0x158] sm:$0xff]
    %v338 = vld [vmem:[#allocation4 + $0x160] sm:$0xff]
    %v339 = vld [vmem:[#allocation4 + $0x168] sm:$0xff]
    %v340 = vld [vmem:[#allocation4 + $0x170] sm:$0xff]
    %v341 = vld [vmem:[#allocation4 + $0x178] sm:$0xff]
    %v342 = vld [vmem:[#allocation4 + $0x180] sm:$0xff]
    %v343 = vld [vmem:[#allocation4 + $0x188] sm:$0xff]
    %v344 = vld [vmem:[#allocation4 + $0x190] sm:$0xff]
    %v345 = vld [vmem:[#allocation4 + $0x198] sm:$0xff]
    %v346 = vld [vmem:[#allocation4 + $0x1a0] sm:$0xff]
    %v347 = vld [vmem:[#allocation4 + $0x1a8] sm:$0xff]
    %v348 = vld [vmem:[#allocation4 + $0x1b0] sm:$0xff]
    %v349 = vld [vmem:[#allocation4 + $0x1b8] sm:$0xff]
    %v350 = vld [vmem:[#allocation4 + $0x1c0] sm:$0xff]
    %v351 = vld [vmem:[#allocation4 + $0x1c8] sm:$0xff]
    %v352 = vld [vmem:[#allocation4 + $0x1d0] sm:$0xff]
    %v353 = vld [vmem:[#allocation4 + $0x1d8] sm:$0xff]
    %v354 = vld [vmem:[#allocation4 + $0x1e0] sm:$0xff]
    %v355 = vld [vmem:[#allocation4 + $0x1e8] sm:$0xff]
    %v356 = vld [vmem:[#allocation4 + $0x1f0] sm:$0xff]
    %v357 = vld [vmem:[#allocation4 + $0x1f8] sm:$0xff]
    %v358 = vld [vmem:[#allocation2] sm:$0xfe]
    %v359 = vld [vmem:[#allocation2 + $0x8] sm:$0xfe]
    %v360 = vld [vmem:[#allocation2 + $0x10] sm:$0xff]
    %v361 = vld [vmem:[#allocation2 + $0x18] sm:$0xff]
    %v362 = vld [vmem:[#allocation2 + $0x20] sm:$0xff]
    %v363 = vld [vmem:[#allocation2 + $0x28] sm:$0xff]
    %v364 = vld [vmem:[#allocation2 + $0x30] sm:$0xff]
    %v365 = vld [vmem:[#allocation2 + $0x38] sm:$0xff]
    %v366 = vld [vmem:[#allocation2 + $0x40] sm:$0x1]
    %v367 = vld [vmem:[#allocation2 + $0x48] sm:$0x1]
    %v368 = vpack.c.bf16 %v360, %v358
    %v369 = vpack.c.bf16 %v361, %v359
    %v370 = vpack.c.bf16 %v364, %v362
    %v371 = vpack.c.bf16 %v365, %v363
    %v372 = vpack.c.bf16 %v366, %v366
    %v373 = vpack.c.bf16 %v367, %v367
    %s374 = scalar_lea.vmem [#allocation4], 512
    %v375 = vld [vmem:[%s374] sm:$0xff]
    %v376 = vld [vmem:[%s374 + $0x8] sm:$0xff]
    %v377 = vld [vmem:[%s374 + $0x10] sm:$0xff]
    %v378 = vld [vmem:[%s374 + $0x18] sm:$0xff]
    %v379 = vld [vmem:[%s374 + $0x20] sm:$0xff]
    %v380 = vld [vmem:[%s374 + $0x28] sm:$0xff]
    %v381 = vld [vmem:[%s374 + $0x30] sm:$0xff]
    %v382 = vld [vmem:[%s374 + $0x38] sm:$0xff]
    %v383 = vld [vmem:[%s374 + $0x40] sm:$0xff]
    %v384 = vld [vmem:[%s374 + $0x48] sm:$0xff]
    %v385 = vld [vmem:[%s374 + $0x50] sm:$0xff]
    %v386 = vld [vmem:[%s374 + $0x58] sm:$0xff]
    %v387 = vld [vmem:[%s374 + $0x60] sm:$0xff]
    %v388 = vld [vmem:[%s374 + $0x68] sm:$0xff]
    %v389 = vld [vmem:[%s374 + $0x70] sm:$0xff]
    %v390 = vld [vmem:[%s374 + $0x78] sm:$0xff]
    %v391 = vld [vmem:[%s374 + $0x80] sm:$0xff]
    %v392 = vld [vmem:[%s374 + $0x88] sm:$0xff]
    %v393 = vld [vmem:[%s374 + $0x90] sm:$0xff]
    %v394 = vld [vmem:[%s374 + $0x98] sm:$0xff]
    %v395 = vld [vmem:[%s374 + $0xa0] sm:$0xff]
    %v396 = vld [vmem:[%s374 + $0xa8] sm:$0xff]
    %v397 = vld [vmem:[%s374 + $0xb0] sm:$0xff]
    %v398 = vld [vmem:[%s374 + $0xb8] sm:$0xff]
    %v399 = vld [vmem:[%s374 + $0xc0] sm:$0xff]
    %v400 = vld [vmem:[%s374 + $0xc8] sm:$0xff]
    %v401 = vld [vmem:[%s374 + $0xd0] sm:$0xff]
    %v402 = vld [vmem:[%s374 + $0xd8] sm:$0xff]
    %v403 = vld [vmem:[%s374 + $0xe0] sm:$0xff]
    %v404 = vld [vmem:[%s374 + $0xe8] sm:$0xff]
    %v405 = vld [vmem:[%s374 + $0xf0] sm:$0xff]
    %v406 = vld [vmem:[%s374 + $0xf8] sm:$0xff]
    %v407 = vld [vmem:[%s374 + $0x100] sm:$0xff]
    %v408 = vld [vmem:[%s374 + $0x108] sm:$0xff]
    %v409 = vld [vmem:[%s374 + $0x110] sm:$0xff]
    %v410 = vld [vmem:[%s374 + $0x118] sm:$0xff]
    %v411 = vld [vmem:[%s374 + $0x120] sm:$0xff]
    %v412 = vld [vmem:[%s374 + $0x128] sm:$0xff]
    %v413 = vld [vmem:[%s374 + $0x130] sm:$0xff]
    %v414 = vld [vmem:[%s374 + $0x138] sm:$0xff]
    %v415 = vld [vmem:[%s374 + $0x140] sm:$0xff]
    %v416 = vld [vmem:[%s374 + $0x148] sm:$0xff]
    %v417 = vld [vmem:[%s374 + $0x150] sm:$0xff]
    %v418 = vld [vmem:[%s374 + $0x158] sm:$0xff]
    %v419 = vld [vmem:[%s374 + $0x160] sm:$0xff]
    %v420 = vld [vmem:[%s374 + $0x168] sm:$0xff]
    %v421 = vld [vmem:[%s374 + $0x170] sm:$0xff]
    %v422 = vld [vmem:[%s374 + $0x178] sm:$0xff]
    %v423 = vld [vmem:[%s374 + $0x180] sm:$0xff]
    %v424 = vld [vmem:[%s374 + $0x188] sm:$0xff]
    %v425 = vld [vmem:[%s374 + $0x190] sm:$0xff]
    %v426 = vld [vmem:[%s374 + $0x198] sm:$0xff]
    %v427 = vld [vmem:[%s374 + $0x1a0] sm:$0xff]
    %v428 = vld [vmem:[%s374 + $0x1a8] sm:$0xff]
    %v429 = vld [vmem:[%s374 + $0x1b0] sm:$0xff]
    %v430 = vld [vmem:[%s374 + $0x1b8] sm:$0xff]
    %v431 = vld [vmem:[%s374 + $0x1c0] sm:$0xff]
    %v432 = vld [vmem:[%s374 + $0x1c8] sm:$0xff]
    %v433 = vld [vmem:[%s374 + $0x1d0] sm:$0xff]
    %v434 = vld [vmem:[%s374 + $0x1d8] sm:$0xff]
    %v435 = vld [vmem:[%s374 + $0x1e0] sm:$0xff]
    %v436 = vld [vmem:[%s374 + $0x1e8] sm:$0xff]
    %v437 = vld [vmem:[%s374 + $0x1f0] sm:$0xff]
    %v438 = vld [vmem:[%s374 + $0x1f8] sm:$0xff]
    %vm439 = vsmask.f32 7424
    %v441 = vshrl.u32 %v368, 16
    %v443 = vshll.u32 %v368, 16
    %v445 = vrot.slane %v443, 1
    %v446 = vor.u32 %v441, %v445
    %v448 = vshll.u32 %v370, 16
    %v450 = vrot.slane %v448, 1
    %v451 = vsel %vm439, %v446, %v450
    %v453 = vshrl.u32 %v369, 16
    %v455 = vshll.u32 %v369, 16
    %v457 = vrot.slane %v455, 1
    %v458 = vor.u32 %v453, %v457
    %v460 = vshll.u32 %v371, 16
    %v462 = vrot.slane %v460, 1
    %v463 = vsel %vm439, %v458, %v462
    %v464 = vshrl.u32 %v370, 16
    %v466 = vor.u32 %v464, %v450
    %v468 = vshll.u32 %v372, 16
    %v470 = vrot.slane %v468, 1
    %v471 = vsel %vm439, %v466, %v470
    %v472 = vshrl.u32 %v371, 16
    %v474 = vor.u32 %v472, %v462
    %v476 = vshll.u32 %v373, 16
    %v478 = vrot.slane %v476, 1
    %v479 = vsel %vm439, %v474, %v478
    %v548 = vunpack.c.l.b16 %v375
    %v549 = vunpack.c.h.b16 %v375
    %v550 = vunpack.c.l.b16 %v376
    %v551 = vunpack.c.h.b16 %v376
    %v552 = vunpack.c.l.b16 %v377
    %v553 = vunpack.c.h.b16 %v377
    %v554 = vunpack.c.l.b16 %v378
    %v555 = vunpack.c.h.b16 %v378
    %v556 = vunpack.c.l.b16 %v379
    %v557 = vunpack.c.h.b16 %v379
    %v558 = vunpack.c.l.b16 %v380
    %v559 = vunpack.c.h.b16 %v380
    %v560 = vunpack.c.l.b16 %v381
    %v561 = vunpack.c.h.b16 %v381
    %v562 = vunpack.c.l.b16 %v382
    %v563 = vunpack.c.h.b16 %v382
    %v564 = vunpack.c.l.b16 %v383
    %v565 = vunpack.c.h.b16 %v383
    %v566 = vunpack.c.l.b16 %v384
    %v567 = vunpack.c.h.b16 %v384
    %v568 = vunpack.c.l.b16 %v385
    %v569 = vunpack.c.h.b16 %v385
    %v570 = vunpack.c.l.b16 %v386
    %v571 = vunpack.c.h.b16 %v386
    %v572 = vunpack.c.l.b16 %v387
    %v573 = vunpack.c.h.b16 %v387
    %v574 = vunpack.c.l.b16 %v388
    %v575 = vunpack.c.h.b16 %v388
    %v576 = vunpack.c.l.b16 %v389
    %v577 = vunpack.c.h.b16 %v389
    %v578 = vunpack.c.l.b16 %v390
    %v579 = vunpack.c.h.b16 %v390
    %v580 = vunpack.c.l.b16 %v391
    %v581 = vunpack.c.h.b16 %v391
    %v582 = vunpack.c.l.b16 %v392
    %v583 = vunpack.c.h.b16 %v392
    %v584 = vunpack.c.l.b16 %v393
    %v585 = vunpack.c.h.b16 %v393
    %v586 = vunpack.c.l.b16 %v394
    %v587 = vunpack.c.h.b16 %v394
    %v588 = vunpack.c.l.b16 %v395
    %v589 = vunpack.c.h.b16 %v395
    %v590 = vunpack.c.l.b16 %v396
    %v591 = vunpack.c.h.b16 %v396
    %v592 = vunpack.c.l.b16 %v397
    %v593 = vunpack.c.h.b16 %v397
    %v594 = vunpack.c.l.b16 %v398
    %v595 = vunpack.c.h.b16 %v398
    %v596 = vunpack.c.l.b16 %v399
    %v597 = vunpack.c.h.b16 %v399
    %v598 = vunpack.c.l.b16 %v400
    %v599 = vunpack.c.h.b16 %v400
    %v600 = vunpack.c.l.b16 %v401
    %v601 = vunpack.c.h.b16 %v401
    %v602 = vunpack.c.l.b16 %v402
    %v603 = vunpack.c.h.b16 %v402
    %v604 = vunpack.c.l.b16 %v403
    %v605 = vunpack.c.h.b16 %v403
    %v606 = vunpack.c.l.b16 %v404
    %v607 = vunpack.c.h.b16 %v404
    %v608 = vunpack.c.l.b16 %v405
    %v609 = vunpack.c.h.b16 %v405
    %v610 = vunpack.c.l.b16 %v406
    %v611 = vunpack.c.h.b16 %v406
    %v612 = vunpack.c.l.b16 %v407
    %v613 = vunpack.c.h.b16 %v407
    %v614 = vunpack.c.l.b16 %v408
    %v615 = vunpack.c.h.b16 %v408
    %v616 = vunpack.c.l.b16 %v409
    %v617 = vunpack.c.h.b16 %v409
    %v618 = vunpack.c.l.b16 %v410
    %v619 = vunpack.c.h.b16 %v410
    %v620 = vunpack.c.l.b16 %v411
    %v621 = vunpack.c.h.b16 %v411
    %v622 = vunpack.c.l.b16 %v412
    %v623 = vunpack.c.h.b16 %v412
    %v624 = vunpack.c.l.b16 %v413
    %v625 = vunpack.c.h.b16 %v413
    %v626 = vunpack.c.l.b16 %v414
    %v627 = vunpack.c.h.b16 %v414
    %v628 = vunpack.c.l.b16 %v415
    %v629 = vunpack.c.h.b16 %v415
    %v630 = vunpack.c.l.b16 %v416
    %v631 = vunpack.c.h.b16 %v416
    %v632 = vunpack.c.l.b16 %v417
    %v633 = vunpack.c.h.b16 %v417
    %v634 = vunpack.c.l.b16 %v418
    %v635 = vunpack.c.h.b16 %v418
    %v636 = vunpack.c.l.b16 %v419
    %v637 = vunpack.c.h.b16 %v419
    %v638 = vunpack.c.l.b16 %v420
    %v639 = vunpack.c.h.b16 %v420
    %v640 = vunpack.c.l.b16 %v421
    %v641 = vunpack.c.h.b16 %v421
    %v642 = vunpack.c.l.b16 %v422
    %v643 = vunpack.c.h.b16 %v422
    %v644 = vunpack.c.l.b16 %v423
    %v645 = vunpack.c.h.b16 %v423
    %v646 = vunpack.c.l.b16 %v424
    %v647 = vunpack.c.h.b16 %v424
    %v648 = vunpack.c.l.b16 %v425
    %v649 = vunpack.c.h.b16 %v425
    %v650 = vunpack.c.l.b16 %v426
    %v651 = vunpack.c.h.b16 %v426
    %v652 = vunpack.c.l.b16 %v427
    %v653 = vunpack.c.h.b16 %v427
    %v654 = vunpack.c.l.b16 %v428
    %v655 = vunpack.c.h.b16 %v428
    %v656 = vunpack.c.l.b16 %v429
    %v657 = vunpack.c.h.b16 %v429
    %v658 = vunpack.c.l.b16 %v430
    %v659 = vunpack.c.h.b16 %v430
    %v660 = vunpack.c.l.b16 %v431
    %v661 = vunpack.c.h.b16 %v431
    %v662 = vunpack.c.l.b16 %v432
    %v663 = vunpack.c.h.b16 %v432
    %v664 = vunpack.c.l.b16 %v433
    %v665 = vunpack.c.h.b16 %v433
    %v666 = vunpack.c.l.b16 %v434
    %v667 = vunpack.c.h.b16 %v434
    %v668 = vunpack.c.l.b16 %v435
    %v669 = vunpack.c.h.b16 %v435
    %v670 = vunpack.c.l.b16 %v436
    %v671 = vunpack.c.h.b16 %v436
    %v672 = vunpack.c.l.b16 %v437
    %v673 = vunpack.c.h.b16 %v437
    %v674 = vunpack.c.l.b16 %v438
    %v675 = vunpack.c.h.b16 %v438
    %v676 = vpack.c.b16 %v552, %v548
    %v677 = vpack.c.b16 %v553, %v549
    %v678 = vpack.c.b16 %v554, %v550
    %v679 = vpack.c.b16 %v555, %v551
    %v680 = vpack.c.b16 %v560, %v556
    %v681 = vpack.c.b16 %v561, %v557
    %v682 = vpack.c.b16 %v562, %v558
    %v683 = vpack.c.b16 %v563, %v559
    %v684 = vpack.c.b16 %v568, %v564
    %v685 = vpack.c.b16 %v569, %v565
    %v686 = vpack.c.b16 %v570, %v566
    %v687 = vpack.c.b16 %v571, %v567
    %v688 = vpack.c.b16 %v576, %v572
    %v689 = vpack.c.b16 %v577, %v573
    %v690 = vpack.c.b16 %v578, %v574
    %v691 = vpack.c.b16 %v579, %v575
    %v692 = vpack.c.b16 %v584, %v580
    %v693 = vpack.c.b16 %v585, %v581
    %v694 = vpack.c.b16 %v586, %v582
    %v695 = vpack.c.b16 %v587, %v583
    %v696 = vpack.c.b16 %v592, %v588
    %v697 = vpack.c.b16 %v593, %v589
    %v698 = vpack.c.b16 %v594, %v590
    %v699 = vpack.c.b16 %v595, %v591
    %v700 = vpack.c.b16 %v600, %v596
    %v701 = vpack.c.b16 %v601, %v597
    %v702 = vpack.c.b16 %v602, %v598
    %v703 = vpack.c.b16 %v603, %v599
    %v704 = vpack.c.b16 %v608, %v604
    %v705 = vpack.c.b16 %v609, %v605
    %v706 = vpack.c.b16 %v610, %v606
    %v707 = vpack.c.b16 %v611, %v607
    %v708 = vpack.c.b16 %v616, %v612
    %v709 = vpack.c.b16 %v617, %v613
    %v710 = vpack.c.b16 %v618, %v614
    %v711 = vpack.c.b16 %v619, %v615
    %v712 = vpack.c.b16 %v624, %v620
    %v713 = vpack.c.b16 %v625, %v621
    %v714 = vpack.c.b16 %v626, %v622
    %v715 = vpack.c.b16 %v627, %v623
    %v716 = vpack.c.b16 %v632, %v628
    %v717 = vpack.c.b16 %v633, %v629
    %v718 = vpack.c.b16 %v634, %v630
    %v719 = vpack.c.b16 %v635, %v631
    %v720 = vpack.c.b16 %v640, %v636
    %v721 = vpack.c.b16 %v641, %v637
    %v722 = vpack.c.b16 %v642, %v638
    %v723 = vpack.c.b16 %v643, %v639
    %v724 = vpack.c.b16 %v648, %v644
    %v725 = vpack.c.b16 %v649, %v645
    %v726 = vpack.c.b16 %v650, %v646
    %v727 = vpack.c.b16 %v651, %v647
    %v728 = vpack.c.b16 %v656, %v652
    %v729 = vpack.c.b16 %v657, %v653
    %v730 = vpack.c.b16 %v658, %v654
    %v731 = vpack.c.b16 %v659, %v655
    %v732 = vpack.c.b16 %v664, %v660
    %v733 = vpack.c.b16 %v665, %v661
    %v734 = vpack.c.b16 %v666, %v662
    %v735 = vpack.c.b16 %v667, %v663
    %v736 = vpack.c.b16 %v672, %v668
    %v737 = vpack.c.b16 %v673, %v669
    %v738 = vpack.c.b16 %v674, %v670
    %v739 = vpack.c.b16 %v675, %v671
    %804 = vmatprep.subr.bf16.mxu0 %v677
    %805 = vmatpush1.bf16.msra.mxu0 %v676
    %806 = vmatprep.subr.bf16.mxu0 %v681
    %807 = vmatpush1.bf16.msra.mxu0 %v680
    %808 = vmatprep.subr.bf16.mxu0 %v685
    %809 = vmatpush1.bf16.msra.mxu0 %v684
    %810 = vmatprep.subr.bf16.mxu0 %v689
    %811 = vmatpush1.bf16.msra.mxu0 %v688
    %812 = vmatprep.subr.bf16.mxu0 %v693
    %813 = vmatpush1.bf16.msra.mxu0 %v692
    %814 = vmatprep.subr.bf16.mxu0 %v697
    %815 = vmatpush1.bf16.msra.mxu0 %v696
    %816 = vmatprep.subr.bf16.mxu0 %v701
    %817 = vmatpush1.bf16.msra.mxu0 %v700
    %818 = vmatprep.subr.bf16.mxu0 %v705
    %819 = vmatpush1.bf16.msra.mxu0 %v704
    %820 = vmatprep.subr.bf16.mxu0 %v709
    %821 = vmatpush1.bf16.msra.mxu0 %v708
    %822 = vmatprep.subr.bf16.mxu0 %v713
    %823 = vmatpush1.bf16.msra.mxu0 %v712
    %824 = vmatprep.subr.bf16.mxu0 %v717
    %825 = vmatpush1.bf16.msra.mxu0 %v716
    %826 = vmatprep.subr.bf16.mxu0 %v721
    %827 = vmatpush1.bf16.msra.mxu0 %v720
    %828 = vmatprep.subr.bf16.mxu0 %v725
    %829 = vmatpush1.bf16.msra.mxu0 %v724
    %830 = vmatprep.subr.bf16.mxu0 %v729
    %831 = vmatpush1.bf16.msra.mxu0 %v728
    %832 = vmatprep.subr.bf16.mxu0 %v733
    %833 = vmatpush1.bf16.msra.mxu0 %v732
    %834 = vmatprep.subr.bf16.mxu0 %v737
    %835 = vmatpush1.bf16.msra.mxu0 %v736
    %836 = vmatprep.mubr.bf16.mxu0 %v463
    %837 = vmatmul.mubr.bf16.gmra.mrb[0].mxu0 %v451
    %v838 = vpop.f32.mrb[0].mxu0
    %v839 = vadd.f32 0.0, %v838
    %v840 = vpop.f32.mrb[0].mxu0
    %v841 = vadd.f32 0.0, %v840
    %v842 = vpop.f32.mrb[0].mxu0
    %v843 = vadd.f32 0.0, %v842
    %v844 = vpop.f32.mrb[0].mxu0
    %v845 = vadd.f32 0.0, %v844
    %846 = vmatprep.mubr.bf16.mxu0 %v479
    %847 = vmatmul.mubr.bf16.gmra.mrb[0].mxu0 %v471
    %v848 = vpop.f32.mrb[0].mxu0
    %v849 = vadd.f32 0.0, %v848
    %v850 = vpop.f32.mrb[0].mxu0
    %v851 = vadd.f32 0.0, %v850
    %v852 = vpop.f32.mrb[0].mxu0
    %v853 = vadd.f32 0.0, %v852
    %v854 = vpop.f32.mrb[0].mxu0
    %v855 = vadd.f32 0.0, %v854
    %856 = vdwg.mxu0
    %857 = vmatprep.subr.bf16.mxu0 %v679
    %858 = vmatpush1.bf16.msra.mxu0 %v678
    %859 = vmatprep.subr.bf16.mxu0 %v683
    %860 = vmatpush1.bf16.msra.mxu0 %v682
    %861 = vmatprep.subr.bf16.mxu0 %v687
    %862 = vmatpush1.bf16.msra.mxu0 %v686
    %863 = vmatprep.subr.bf16.mxu0 %v691
    %864 = vmatpush1.bf16.msra.mxu0 %v690
    %865 = vmatprep.subr.bf16.mxu0 %v695
    %866 = vmatpush1.bf16.msra.mxu0 %v694
    %867 = vmatprep.subr.bf16.mxu0 %v699
    %868 = vmatpush1.bf16.msra.mxu0 %v698
    %869 = vmatprep.subr.bf16.mxu0 %v703
    %870 = vmatpush1.bf16.msra.mxu0 %v702
    %871 = vmatprep.subr.bf16.mxu0 %v707
    %872 = vmatpush1.bf16.msra.mxu0 %v706
    %873 = vmatprep.subr.bf16.mxu0 %v711
    %874 = vmatpush1.bf16.msra.mxu0 %v710
    %875 = vmatprep.subr.bf16.mxu0 %v715
    %876 = vmatpush1.bf16.msra.mxu0 %v714
    %877 = vmatprep.subr.bf16.mxu0 %v719
    %878 = vmatpush1.bf16.msra.mxu0 %v718
    %879 = vmatprep.subr.bf16.mxu0 %v723
    %880 = vmatpush1.bf16.msra.mxu0 %v722
    %881 = vmatprep.subr.bf16.mxu0 %v727
    %882 = vmatpush1.bf16.msra.mxu0 %v726
    %883 = vmatprep.subr.bf16.mxu0 %v731
    %884 = vmatpush1.bf16.msra.mxu0 %v730
    %885 = vmatprep.subr.bf16.mxu0 %v735
    %886 = vmatpush1.bf16.msra.mxu0 %v734
    %887 = vmatprep.subr.bf16.mxu0 %v739
    %888 = vmatpush1.bf16.msra.mxu0 %v738
    %889 = vmatprep.mubr.bf16.mxu0 %v463
    %890 = vmatmul.mubr.bf16.gmra.mrb[0].mxu0 %v451
    %v891 = vpop.f32.mrb[0].mxu0
    %v892 = vadd.f32 0.0, %v891
    %v893 = vpop.f32.mrb[0].mxu0
    %v894 = vadd.f32 0.0, %v893
    %v895 = vpop.f32.mrb[0].mxu0
    %v896 = vadd.f32 0.0, %v895
    %v897 = vpop.f32.mrb[0].mxu0
    %v898 = vadd.f32 0.0, %v897
    %899 = vmatprep.mubr.bf16.mxu0 %v479
    %900 = vmatmul.mubr.bf16.gmra.mrb[0].mxu0 %v471
    %v901 = vpop.f32.mrb[0].mxu0
    %v902 = vadd.f32 0.0, %v901
    %v903 = vpop.f32.mrb[0].mxu0
    %v904 = vadd.f32 0.0, %v903
    %v905 = vpop.f32.mrb[0].mxu0
    %v906 = vadd.f32 0.0, %v905
    %v907 = vpop.f32.mrb[0].mxu0
    %v908 = vadd.f32 0.0, %v907
    %909 = vdwg.mxu0
    %v974 = vunpack.c.l.b16 %v294
    %v975 = vunpack.c.h.b16 %v294
    %v976 = vunpack.c.l.b16 %v295
    %v977 = vunpack.c.h.b16 %v295
    %v978 = vunpack.c.l.b16 %v296
    %v979 = vunpack.c.h.b16 %v296
    %v980 = vunpack.c.l.b16 %v297
    %v981 = vunpack.c.h.b16 %v297
    %v982 = vunpack.c.l.b16 %v298
    %v983 = vunpack.c.h.b16 %v298
    %v984 = vunpack.c.l.b16 %v299
    %v985 = vunpack.c.h.b16 %v299
    %v986 = vunpack.c.l.b16 %v300
    %v987 = vunpack.c.h.b16 %v300
    %v988 = vunpack.c.l.b16 %v301
    %v989 = vunpack.c.h.b16 %v301
    %v990 = vunpack.c.l.b16 %v302
    %v991 = vunpack.c.h.b16 %v302
    %v992 = vunpack.c.l.b16 %v303
    %v993 = vunpack.c.h.b16 %v303
    %v994 = vunpack.c.l.b16 %v304
    %v995 = vunpack.c.h.b16 %v304
    %v996 = vunpack.c.l.b16 %v305
    %v997 = vunpack.c.h.b16 %v305
    %v998 = vunpack.c.l.b16 %v306
    %v999 = vunpack.c.h.b16 %v306
    %v1000 = vunpack.c.l.b16 %v307
    %v1001 = vunpack.c.h.b16 %v307
    %v1002 = vunpack.c.l.b16 %v308
    %v1003 = vunpack.c.h.b16 %v308
    %v1004 = vunpack.c.l.b16 %v309
    %v1005 = vunpack.c.h.b16 %v309
    %v1006 = vunpack.c.l.b16 %v310
    %v1007 = vunpack.c.h.b16 %v310
    %v1008 = vunpack.c.l.b16 %v311
    %v1009 = vunpack.c.h.b16 %v311
    %v1010 = vunpack.c.l.b16 %v312
    %v1011 = vunpack.c.h.b16 %v312
    %v1012 = vunpack.c.l.b16 %v313
    %v1013 = vunpack.c.h.b16 %v313
    %v1014 = vunpack.c.l.b16 %v314
    %v1015 = vunpack.c.h.b16 %v314
    %v1016 = vunpack.c.l.b16 %v315
    %v1017 = vunpack.c.h.b16 %v315
    %v1018 = vunpack.c.l.b16 %v316
    %v1019 = vunpack.c.h.b16 %v316
    %v1020 = vunpack.c.l.b16 %v317
    %v1021 = vunpack.c.h.b16 %v317
    %v1022 = vunpack.c.l.b16 %v318
    %v1023 = vunpack.c.h.b16 %v318
    %v1024 = vunpack.c.l.b16 %v319
    %v1025 = vunpack.c.h.b16 %v319
    %v1026 = vunpack.c.l.b16 %v320
    %v1027 = vunpack.c.h.b16 %v320
    %v1028 = vunpack.c.l.b16 %v321
    %v1029 = vunpack.c.h.b16 %v321
    %v1030 = vunpack.c.l.b16 %v322
    %v1031 = vunpack.c.h.b16 %v322
    %v1032 = vunpack.c.l.b16 %v323
    %v1033 = vunpack.c.h.b16 %v323
    %v1034 = vunpack.c.l.b16 %v324
    %v1035 = vunpack.c.h.b16 %v324
    %v1036 = vunpack.c.l.b16 %v325
    %v1037 = vunpack.c.h.b16 %v325
    %v1038 = vunpack.c.l.b16 %v326
    %v1039 = vunpack.c.h.b16 %v326
    %v1040 = vunpack.c.l.b16 %v327
    %v1041 = vunpack.c.h.b16 %v327
    %v1042 = vunpack.c.l.b16 %v328
    %v1043 = vunpack.c.h.b16 %v328
    %v1044 = vunpack.c.l.b16 %v329
    %v1045 = vunpack.c.h.b16 %v329
    %v1046 = vunpack.c.l.b16 %v330
    %v1047 = vunpack.c.h.b16 %v330
    %v1048 = vunpack.c.l.b16 %v331
    %v1049 = vunpack.c.h.b16 %v331
    %v1050 = vunpack.c.l.b16 %v332
    %v1051 = vunpack.c.h.b16 %v332
    %v1052 = vunpack.c.l.b16 %v333
    %v1053 = vunpack.c.h.b16 %v333
    %v1054 = vunpack.c.l.b16 %v334
    %v1055 = vunpack.c.h.b16 %v334
    %v1056 = vunpack.c.l.b16 %v335
    %v1057 = vunpack.c.h.b16 %v335
    %v1058 = vunpack.c.l.b16 %v336
    %v1059 = vunpack.c.h.b16 %v336
    %v1060 = vunpack.c.l.b16 %v337
    %v1061 = vunpack.c.h.b16 %v337
    %v1062 = vunpack.c.l.b16 %v338
    %v1063 = vunpack.c.h.b16 %v338
    %v1064 = vunpack.c.l.b16 %v339
    %v1065 = vunpack.c.h.b16 %v339
    %v1066 = vunpack.c.l.b16 %v340
    %v1067 = vunpack.c.h.b16 %v340
    %v1068 = vunpack.c.l.b16 %v341
    %v1069 = vunpack.c.h.b16 %v341
    %v1070 = vunpack.c.l.b16 %v342
    %v1071 = vunpack.c.h.b16 %v342
    %v1072 = vunpack.c.l.b16 %v343
    %v1073 = vunpack.c.h.b16 %v343
    %v1074 = vunpack.c.l.b16 %v344
    %v1075 = vunpack.c.h.b16 %v344
    %v1076 = vunpack.c.l.b16 %v345
    %v1077 = vunpack.c.h.b16 %v345
    %v1078 = vunpack.c.l.b16 %v346
    %v1079 = vunpack.c.h.b16 %v346
    %v1080 = vunpack.c.l.b16 %v347
    %v1081 = vunpack.c.h.b16 %v347
    %v1082 = vunpack.c.l.b16 %v348
    %v1083 = vunpack.c.h.b16 %v348
    %v1084 = vunpack.c.l.b16 %v349
    %v1085 = vunpack.c.h.b16 %v349
    %v1086 = vunpack.c.l.b16 %v350
    %v1087 = vunpack.c.h.b16 %v350
    %v1088 = vunpack.c.l.b16 %v351
    %v1089 = vunpack.c.h.b16 %v351
    %v1090 = vunpack.c.l.b16 %v352
    %v1091 = vunpack.c.h.b16 %v352
    %v1092 = vunpack.c.l.b16 %v353
    %v1093 = vunpack.c.h.b16 %v353
    %v1094 = vunpack.c.l.b16 %v354
    %v1095 = vunpack.c.h.b16 %v354
    %v1096 = vunpack.c.l.b16 %v355
    %v1097 = vunpack.c.h.b16 %v355
    %v1098 = vunpack.c.l.b16 %v356
    %v1099 = vunpack.c.h.b16 %v356
    %v1100 = vunpack.c.l.b16 %v357
    %v1101 = vunpack.c.h.b16 %v357
    %v1102 = vpack.c.b16 %v978, %v974
    %v1103 = vpack.c.b16 %v979, %v975
    %v1104 = vpack.c.b16 %v980, %v976
    %v1105 = vpack.c.b16 %v981, %v977
    %v1106 = vpack.c.b16 %v986, %v982
    %v1107 = vpack.c.b16 %v987, %v983
    %v1108 = vpack.c.b16 %v988, %v984
    %v1109 = vpack.c.b16 %v989, %v985
    %v1110 = vpack.c.b16 %v994, %v990
    %v1111 = vpack.c.b16 %v995, %v991
    %v1112 = vpack.c.b16 %v996, %v992
    %v1113 = vpack.c.b16 %v997, %v993
    %v1114 = vpack.c.b16 %v1002, %v998
    %v1115 = vpack.c.b16 %v1003, %v999
    %v1116 = vpack.c.b16 %v1004, %v1000
    %v1117 = vpack.c.b16 %v1005, %v1001
    %v1118 = vpack.c.b16 %v1010, %v1006
    %v1119 = vpack.c.b16 %v1011, %v1007
    %v1120 = vpack.c.b16 %v1012, %v1008
    %v1121 = vpack.c.b16 %v1013, %v1009
    %v1122 = vpack.c.b16 %v1018, %v1014
    %v1123 = vpack.c.b16 %v1019, %v1015
    %v1124 = vpack.c.b16 %v1020, %v1016
    %v1125 = vpack.c.b16 %v1021, %v1017
    %v1126 = vpack.c.b16 %v1026, %v1022
    %v1127 = vpack.c.b16 %v1027, %v1023
    %v1128 = vpack.c.b16 %v1028, %v1024
    %v1129 = vpack.c.b16 %v1029, %v1025
    %v1130 = vpack.c.b16 %v1034, %v1030
    %v1131 = vpack.c.b16 %v1035, %v1031
    %v1132 = vpack.c.b16 %v1036, %v1032
    %v1133 = vpack.c.b16 %v1037, %v1033
    %v1134 = vpack.c.b16 %v1042, %v1038
    %v1135 = vpack.c.b16 %v1043, %v1039
    %v1136 = vpack.c.b16 %v1044, %v1040
    %v1137 = vpack.c.b16 %v1045, %v1041
    %v1138 = vpack.c.b16 %v1050, %v1046
    %v1139 = vpack.c.b16 %v1051, %v1047
    %v1140 = vpack.c.b16 %v1052, %v1048
    %v1141 = vpack.c.b16 %v1053, %v1049
    %v1142 = vpack.c.b16 %v1058, %v1054
    %v1143 = vpack.c.b16 %v1059, %v1055
    %v1144 = vpack.c.b16 %v1060, %v1056
    %v1145 = vpack.c.b16 %v1061, %v1057
    %v1146 = vpack.c.b16 %v1066, %v1062
    %v1147 = vpack.c.b16 %v1067, %v1063
    %v1148 = vpack.c.b16 %v1068, %v1064
    %v1149 = vpack.c.b16 %v1069, %v1065
    %v1150 = vpack.c.b16 %v1074, %v1070
    %v1151 = vpack.c.b16 %v1075, %v1071
    %v1152 = vpack.c.b16 %v1076, %v1072
    %v1153 = vpack.c.b16 %v1077, %v1073
    %v1154 = vpack.c.b16 %v1082, %v1078
    %v1155 = vpack.c.b16 %v1083, %v1079
    %v1156 = vpack.c.b16 %v1084, %v1080
    %v1157 = vpack.c.b16 %v1085, %v1081
    %v1158 = vpack.c.b16 %v1090, %v1086
    %v1159 = vpack.c.b16 %v1091, %v1087
    %v1160 = vpack.c.b16 %v1092, %v1088
    %v1161 = vpack.c.b16 %v1093, %v1089
    %v1162 = vpack.c.b16 %v1098, %v1094
    %v1163 = vpack.c.b16 %v1099, %v1095
    %v1164 = vpack.c.b16 %v1100, %v1096
    %v1165 = vpack.c.b16 %v1101, %v1097
    %1230 = vmatprep.subr.bf16.mxu0 %v1103
    %1231 = vmatpush1.bf16.msra.mxu0 %v1102
    %1232 = vmatprep.subr.bf16.mxu0 %v1107
    %1233 = vmatpush1.bf16.msra.mxu0 %v1106
    %1234 = vmatprep.subr.bf16.mxu0 %v1111
    %1235 = vmatpush1.bf16.msra.mxu0 %v1110
    %1236 = vmatprep.subr.bf16.mxu0 %v1115
    %1237 = vmatpush1.bf16.msra.mxu0 %v1114
    %1238 = vmatprep.subr.bf16.mxu0 %v1119
    %1239 = vmatpush1.bf16.msra.mxu0 %v1118
    %1240 = vmatprep.subr.bf16.mxu0 %v1123
    %1241 = vmatpush1.bf16.msra.mxu0 %v1122
    %1242 = vmatprep.subr.bf16.mxu0 %v1127
    %1243 = vmatpush1.bf16.msra.mxu0 %v1126
    %1244 = vmatprep.subr.bf16.mxu0 %v1131
    %1245 = vmatpush1.bf16.msra.mxu0 %v1130
    %1246 = vmatprep.subr.bf16.mxu0 %v1135
    %1247 = vmatpush1.bf16.msra.mxu0 %v1134
    %1248 = vmatprep.subr.bf16.mxu0 %v1139
    %1249 = vmatpush1.bf16.msra.mxu0 %v1138
    %1250 = vmatprep.subr.bf16.mxu0 %v1143
    %1251 = vmatpush1.bf16.msra.mxu0 %v1142
    %1252 = vmatprep.subr.bf16.mxu0 %v1147
    %1253 = vmatpush1.bf16.msra.mxu0 %v1146
    %1254 = vmatprep.subr.bf16.mxu0 %v1151
    %1255 = vmatpush1.bf16.msra.mxu0 %v1150
    %1256 = vmatprep.subr.bf16.mxu0 %v1155
    %1257 = vmatpush1.bf16.msra.mxu0 %v1154
    %1258 = vmatprep.subr.bf16.mxu0 %v1159
    %1259 = vmatpush1.bf16.msra.mxu0 %v1158
    %1260 = vmatprep.subr.bf16.mxu0 %v1163
    %1261 = vmatpush1.bf16.msra.mxu0 %v1162
    %1262 = vmatprep.mubr.bf16.mxu0 %v291
    %1263 = vmatmul.mubr.bf16.gmra.mrb[0].mxu0 %v290
    %v1264 = vpop.f32.mrb[0].mxu0
    %v1265 = vadd.f32 %v839, %v1264
    %v1266 = vpop.f32.mrb[0].mxu0
    %v1267 = vadd.f32 %v841, %v1266
    %v1268 = vpop.f32.mrb[0].mxu0
    %v1269 = vadd.f32 %v843, %v1268
    %v1270 = vpop.f32.mrb[0].mxu0
    %v1271 = vadd.f32 %v845, %v1270
    %1272 = vmatprep.mubr.bf16.mxu0 %v293
    %1273 = vmatmul.mubr.bf16.gmra.mrb[0].mxu0 %v292
    %v1274 = vpop.f32.mrb[0].mxu0
    %v1275 = vadd.f32 %v849, %v1274
    %v1276 = vpop.f32.mrb[0].mxu0
    %v1277 = vadd.f32 %v851, %v1276
    %v1278 = vpop.f32.mrb[0].mxu0
    %v1279 = vadd.f32 %v853, %v1278
    %v1280 = vpop.f32.mrb[0].mxu0
    %v1281 = vadd.f32 %v855, %v1280
    %1282 = vdwg.mxu0
    %1283 = vmatprep.subr.bf16.mxu0 %v1105
    %1284 = vmatpush1.bf16.msra.mxu0 %v1104
    %1285 = vmatprep.subr.bf16.mxu0 %v1109
    %1286 = vmatpush1.bf16.msra.mxu0 %v1108
    %1287 = vmatprep.subr.bf16.mxu0 %v1113
    %1288 = vmatpush1.bf16.msra.mxu0 %v1112
    %1289 = vmatprep.subr.bf16.mxu0 %v1117
    %1290 = vmatpush1.bf16.msra.mxu0 %v1116
    %1291 = vmatprep.subr.bf16.mxu0 %v1121
    %1292 = vmatpush1.bf16.msra.mxu0 %v1120
    %1293 = vmatprep.subr.bf16.mxu0 %v1125
    %1294 = vmatpush1.bf16.msra.mxu0 %v1124
    %1295 = vmatprep.subr.bf16.mxu0 %v1129
    %1296 = vmatpush1.bf16.msra.mxu0 %v1128
    %1297 = vmatprep.subr.bf16.mxu0 %v1133
    %1298 = vmatpush1.bf16.msra.mxu0 %v1132
    %1299 = vmatprep.subr.bf16.mxu0 %v1137
    %1300 = vmatpush1.bf16.msra.mxu0 %v1136
    %1301 = vmatprep.subr.bf16.mxu0 %v1141
    %1302 = vmatpush1.bf16.msra.mxu0 %v1140
    %1303 = vmatprep.subr.bf16.mxu0 %v1145
    %1304 = vmatpush1.bf16.msra.mxu0 %v1144
    %1305 = vmatprep.subr.bf16.mxu0 %v1149
    %1306 = vmatpush1.bf16.msra.mxu0 %v1148
    %1307 = vmatprep.subr.bf16.mxu0 %v1153
    %1308 = vmatpush1.bf16.msra.mxu0 %v1152
    %1309 = vmatprep.subr.bf16.mxu0 %v1157
    %1310 = vmatpush1.bf16.msra.mxu0 %v1156
    %1311 = vmatprep.subr.bf16.mxu0 %v1161
    %1312 = vmatpush1.bf16.msra.mxu0 %v1160
    %1313 = vmatprep.subr.bf16.mxu0 %v1165
    %1314 = vmatpush1.bf16.msra.mxu0 %v1164
    %1315 = vmatprep.mubr.bf16.mxu0 %v291
    %1316 = vmatmul.mubr.bf16.gmra.mrb[0].mxu0 %v290
    %v1317 = vpop.f32.mrb[0].mxu0
    %v1318 = vadd.f32 %v892, %v1317
    %v1319 = vpop.f32.mrb[0].mxu0
    %v1320 = vadd.f32 %v894, %v1319
    %v1321 = vpop.f32.mrb[0].mxu0
    %v1322 = vadd.f32 %v896, %v1321
    %v1323 = vpop.f32.mrb[0].mxu0
    %v1324 = vadd.f32 %v898, %v1323
    %1325 = vmatprep.mubr.bf16.mxu0 %v293
    %1326 = vmatmul.mubr.bf16.gmra.mrb[0].mxu0 %v292
    %v1327 = vpop.f32.mrb[0].mxu0
    %v1328 = vadd.f32 %v902, %v1327
    %v1329 = vpop.f32.mrb[0].mxu0
    %v1330 = vadd.f32 %v904, %v1329
    %v1331 = vpop.f32.mrb[0].mxu0
    %v1332 = vadd.f32 %v906, %v1331
    %v1333 = vpop.f32.mrb[0].mxu0
    %v1334 = vadd.f32 %v908, %v1333
    %1335 = vdwg.mxu0
    %v1336 = vld [vmem:[#allocation2] sm:$0xfc]
    %v1337 = vld [vmem:[#allocation2 + $0x8] sm:$0xfc]
    %v1338 = vld [vmem:[#allocation2 + $0x40] sm:$0x3]
    %v1339 = vld [vmem:[#allocation2 + $0x48] sm:$0x3]
    %v1340 = vpack.c.bf16 %v360, %v1336
    %v1341 = vpack.c.bf16 %v361, %v1337
    %v1342 = vpack.c.bf16 %v1338, %v1338
    %v1343 = vpack.c.bf16 %v1339, %v1339
    %s1344 = scalar_lea.vmem [#allocation4], 1024
    %v1345 = vld [vmem:[%s1344] sm:$0xff]
    %v1346 = vld [vmem:[%s1344 + $0x8] sm:$0xff]
    %v1347 = vld [vmem:[%s1344 + $0x10] sm:$0xff]
    %v1348 = vld [vmem:[%s1344 + $0x18] sm:$0xff]
    %v1349 = vld [vmem:[%s1344 + $0x20] sm:$0xff]
    %v1350 = vld [vmem:[%s1344 + $0x28] sm:$0xff]
    %v1351 = vld [vmem:[%s1344 + $0x30] sm:$0xff]
    %v1352 = vld [vmem:[%s1344 + $0x38] sm:$0xff]
    %v1353 = vld [vmem:[%s1344 + $0x40] sm:$0xff]
    %v1354 = vld [vmem:[%s1344 + $0x48] sm:$0xff]
    %v1355 = vld [vmem:[%s1344 + $0x50] sm:$0xff]
    %v1356 = vld [vmem:[%s1344 + $0x58] sm:$0xff]
    %v1357 = vld [vmem:[%s1344 + $0x60] sm:$0xff]
    %v1358 = vld [vmem:[%s1344 + $0x68] sm:$0xff]
    %v1359 = vld [vmem:[%s1344 + $0x70] sm:$0xff]
    %v1360 = vld [vmem:[%s1344 + $0x78] sm:$0xff]
    %v1361 = vld [vmem:[%s1344 + $0x80] sm:$0xff]
    %v1362 = vld [vmem:[%s1344 + $0x88] sm:$0xff]
    %v1363 = vld [vmem:[%s1344 + $0x90] sm:$0xff]
    %v1364 = vld [vmem:[%s1344 + $0x98] sm:$0xff]
    %v1365 = vld [vmem:[%s1344 + $0xa0] sm:$0xff]
    %v1366 = vld [vmem:[%s1344 + $0xa8] sm:$0xff]
    %v1367 = vld [vmem:[%s1344 + $0xb0] sm:$0xff]
    %v1368 = vld [vmem:[%s1344 + $0xb8] sm:$0xff]
    %v1369 = vld [vmem:[%s1344 + $0xc0] sm:$0xff]
    %v1370 = vld [vmem:[%s1344 + $0xc8] sm:$0xff]
    %v1371 = vld [vmem:[%s1344 + $0xd0] sm:$0xff]
    %v1372 = vld [vmem:[%s1344 + $0xd8] sm:$0xff]
    %v1373 = vld [vmem:[%s1344 + $0xe0] sm:$0xff]
    %v1374 = vld [vmem:[%s1344 + $0xe8] sm:$0xff]
    %v1375 = vld [vmem:[%s1344 + $0xf0] sm:$0xff]
    %v1376 = vld [vmem:[%s1344 + $0xf8] sm:$0xff]
    %v1377 = vld [vmem:[%s1344 + $0x100] sm:$0xff]
    %v1378 = vld [vmem:[%s1344 + $0x108] sm:$0xff]
    %v1379 = vld [vmem:[%s1344 + $0x110] sm:$0xff]
    %v1380 = vld [vmem:[%s1344 + $0x118] sm:$0xff]
    %v1381 = vld [vmem:[%s1344 + $0x120] sm:$0xff]
    %v1382 = vld [vmem:[%s1344 + $0x128] sm:$0xff]
    %v1383 = vld [vmem:[%s1344 + $0x130] sm:$0xff]
    %v1384 = vld [vmem:[%s1344 + $0x138] sm:$0xff]
    %v1385 = vld [vmem:[%s1344 + $0x140] sm:$0xff]
    %v1386 = vld [vmem:[%s1344 + $0x148] sm:$0xff]
    %v1387 = vld [vmem:[%s1344 + $0x150] sm:$0xff]
    %v1388 = vld [vmem:[%s1344 + $0x158] sm:$0xff]
    %v1389 = vld [vmem:[%s1344 + $0x160] sm:$0xff]
    %v1390 = vld [vmem:[%s1344 + $0x168] sm:$0xff]
    %v1391 = vld [vmem:[%s1344 + $0x170] sm:$0xff]
    %v1392 = vld [vmem:[%s1344 + $0x178] sm:$0xff]
    %v1393 = vld [vmem:[%s1344 + $0x180] sm:$0xff]
    %v1394 = vld [vmem:[%s1344 + $0x188] sm:$0xff]
    %v1395 = vld [vmem:[%s1344 + $0x190] sm:$0xff]
    %v1396 = vld [vmem:[%s1344 + $0x198] sm:$0xff]
    %v1397 = vld [vmem:[%s1344 + $0x1a0] sm:$0xff]
    %v1398 = vld [vmem:[%s1344 + $0x1a8] sm:$0xff]
    %v1399 = vld [vmem:[%s1344 + $0x1b0] sm:$0xff]
    %v1400 = vld [vmem:[%s1344 + $0x1b8] sm:$0xff]
    %v1401 = vld [vmem:[%s1344 + $0x1c0] sm:$0xff]
    %v1402 = vld [vmem:[%s1344 + $0x1c8] sm:$0xff]
    %v1403 = vld [vmem:[%s1344 + $0x1d0] sm:$0xff]
    %v1404 = vld [vmem:[%s1344 + $0x1d8] sm:$0xff]
    %v1405 = vld [vmem:[%s1344 + $0x1e0] sm:$0xff]
    %v1406 = vld [vmem:[%s1344 + $0x1e8] sm:$0xff]
    %v1407 = vld [vmem:[%s1344 + $0x1f0] sm:$0xff]
    %v1408 = vld [vmem:[%s1344 + $0x1f8] sm:$0xff]
    %vm1415 = vcmask 1046528
    %v1416 = vrot.slane %v1340, 1
    %v1417 = vrot.slane %v370, 1
    %v1418 = vsel %vm1415, %v1416, %v1417
    %v1419 = vrot.slane %v1341, 1
    %v1420 = vrot.slane %v371, 1
    %v1421 = vsel %vm1415, %v1419, %v1420
    %v1422 = vrot.slane %v1342, 1
    %v1423 = vsel %vm1415, %v1417, %v1422
    %v1424 = vrot.slane %v1343, 1
    %v1425 = vsel %vm1415, %v1420, %v1424
    %v1494 = vunpack.c.l.b16 %v1345
    %v1495 = vunpack.c.h.b16 %v1345
    %v1496 = vunpack.c.l.b16 %v1346
    %v1497 = vunpack.c.h.b16 %v1346
    %v1498 = vunpack.c.l.b16 %v1347
    %v1499 = vunpack.c.h.b16 %v1347
    %v1500 = vunpack.c.l.b16 %v1348
    %v1501 = vunpack.c.h.b16 %v1348
    %v1502 = vunpack.c.l.b16 %v1349
    %v1503 = vunpack.c.h.b16 %v1349
    %v1504 = vunpack.c.l.b16 %v1350
    %v1505 = vunpack.c.h.b16 %v1350
    %v1506 = vunpack.c.l.b16 %v1351
    %v1507 = vunpack.c.h.b16 %v1351
    %v1508 = vunpack.c.l.b16 %v1352
    %v1509 = vunpack.c.h.b16 %v1352
    %v1510 = vunpack.c.l.b16 %v1353
    %v1511 = vunpack.c.h.b16 %v1353
    %v1512 = vunpack.c.l.b16 %v1354
    %v1513 = vunpack.c.h.b16 %v1354
    %v1514 = vunpack.c.l.b16 %v1355
    %v1515 = vunpack.c.h.b16 %v1355
    %v1516 = vunpack.c.l.b16 %v1356
    %v1517 = vunpack.c.h.b16 %v1356
    %v1518 = vunpack.c.l.b16 %v1357
    %v1519 = vunpack.c.h.b16 %v1357
    %v1520 = vunpack.c.l.b16 %v1358
    %v1521 = vunpack.c.h.b16 %v1358
    %v1522 = vunpack.c.l.b16 %v1359
    %v1523 = vunpack.c.h.b16 %v1359
    %v1524 = vunpack.c.l.b16 %v1360
    %v1525 = vunpack.c.h.b16 %v1360
    %v1526 = vunpack.c.l.b16 %v1361
    %v1527 = vunpack.c.h.b16 %v1361
    %v1528 = vunpack.c.l.b16 %v1362
    %v1529 = vunpack.c.h.b16 %v1362
    %v1530 = vunpack.c.l.b16 %v1363
    %v1531 = vunpack.c.h.b16 %v1363
    %v1532 = vunpack.c.l.b16 %v1364
    %v1533 = vunpack.c.h.b16 %v1364
    %v1534 = vunpack.c.l.b16 %v1365
    %v1535 = vunpack.c.h.b16 %v1365
    %v1536 = vunpack.c.l.b16 %v1366
    %v1537 = vunpack.c.h.b16 %v1366
    %v1538 = vunpack.c.l.b16 %v1367
    %v1539 = vunpack.c.h.b16 %v1367
    %v1540 = vunpack.c.l.b16 %v1368
    %v1541 = vunpack.c.h.b16 %v1368
    %v1542 = vunpack.c.l.b16 %v1369
    %v1543 = vunpack.c.h.b16 %v1369
    %v1544 = vunpack.c.l.b16 %v1370
    %v1545 = vunpack.c.h.b16 %v1370
    %v1546 = vunpack.c.l.b16 %v1371
    %v1547 = vunpack.c.h.b16 %v1371
    %v1548 = vunpack.c.l.b16 %v1372
    %v1549 = vunpack.c.h.b16 %v1372
    %v1550 = vunpack.c.l.b16 %v1373
    %v1551 = vunpack.c.h.b16 %v1373
    %v1552 = vunpack.c.l.b16 %v1374
    %v1553 = vunpack.c.h.b16 %v1374
    %v1554 = vunpack.c.l.b16 %v1375
    %v1555 = vunpack.c.h.b16 %v1375
    %v1556 = vunpack.c.l.b16 %v1376
    %v1557 = vunpack.c.h.b16 %v1376
    %v1558 = vunpack.c.l.b16 %v1377
    %v1559 = vunpack.c.h.b16 %v1377
    %v1560 = vunpack.c.l.b16 %v1378
    %v1561 = vunpack.c.h.b16 %v1378
    %v1562 = vunpack.c.l.b16 %v1379
    %v1563 = vunpack.c.h.b16 %v1379
    %v1564 = vunpack.c.l.b16 %v1380
    %v1565 = vunpack.c.h.b16 %v1380
    %v1566 = vunpack.c.l.b16 %v1381
    %v1567 = vunpack.c.h.b16 %v1381
    %v1568 = vunpack.c.l.b16 %v1382
    %v1569 = vunpack.c.h.b16 %v1382
    %v1570 = vunpack.c.l.b16 %v1383
    %v1571 = vunpack.c.h.b16 %v1383
    %v1572 = vunpack.c.l.b16 %v1384
    %v1573 = vunpack.c.h.b16 %v1384
    %v1574 = vunpack.c.l.b16 %v1385
    %v1575 = vunpack.c.h.b16 %v1385
    %v1576 = vunpack.c.l.b16 %v1386
    %v1577 = vunpack.c.h.b16 %v1386
    %v1578 = vunpack.c.l.b16 %v1387
    %v1579 = vunpack.c.h.b16 %v1387
    %v1580 = vunpack.c.l.b16 %v1388
    %v1581 = vunpack.c.h.b16 %v1388
    %v1582 = vunpack.c.l.b16 %v1389
    %v1583 = vunpack.c.h.b16 %v1389
    %v1584 = vunpack.c.l.b16 %v1390
    %v1585 = vunpack.c.h.b16 %v1390
    %v1586 = vunpack.c.l.b16 %v1391
    %v1587 = vunpack.c.h.b16 %v1391
    %v1588 = vunpack.c.l.b16 %v1392
    %v1589 = vunpack.c.h.b16 %v1392
    %v1590 = vunpack.c.l.b16 %v1393
    %v1591 = vunpack.c.h.b16 %v1393
    %v1592 = vunpack.c.l.b16 %v1394
    %v1593 = vunpack.c.h.b16 %v1394
    %v1594 = vunpack.c.l.b16 %v1395
    %v1595 = vunpack.c.h.b16 %v1395
    %v1596 = vunpack.c.l.b16 %v1396
    %v1597 = vunpack.c.h.b16 %v1396
    %v1598 = vunpack.c.l.b16 %v1397
    %v1599 = vunpack.c.h.b16 %v1397
    %v1600 = vunpack.c.l.b16 %v1398
    %v1601 = vunpack.c.h.b16 %v1398
    %v1602 = vunpack.c.l.b16 %v1399
    %v1603 = vunpack.c.h.b16 %v1399
    %v1604 = vunpack.c.l.b16 %v1400
    %v1605 = vunpack.c.h.b16 %v1400
    %v1606 = vunpack.c.l.b16 %v1401
    %v1607 = vunpack.c.h.b16 %v1401
    %v1608 = vunpack.c.l.b16 %v1402
    %v1609 = vunpack.c.h.b16 %v1402
    %v1610 = vunpack.c.l.b16 %v1403
    %v1611 = vunpack.c.h.b16 %v1403
    %v1612 = vunpack.c.l.b16 %v1404
    %v1613 = vunpack.c.h.b16 %v1404
    %v1614 = vunpack.c.l.b16 %v1405
    %v1615 = vunpack.c.h.b16 %v1405
    %v1616 = vunpack.c.l.b16 %v1406
    %v1617 = vunpack.c.h.b16 %v1406
    %v1618 = vunpack.c.l.b16 %v1407
    %v1619 = vunpack.c.h.b16 %v1407
    %v1620 = vunpack.c.l.b16 %v1408
    %v1621 = vunpack.c.h.b16 %v1408
    %v1622 = vpack.c.b16 %v1498, %v1494
    %v1623 = vpack.c.b16 %v1499, %v1495
    %v1624 = vpack.c.b16 %v1500, %v1496
    %v1625 = vpack.c.b16 %v1501, %v1497
    %v1626 = vpack.c.b16 %v1506, %v1502
    %v1627 = vpack.c.b16 %v1507, %v1503
    %v1628 = vpack.c.b16 %v1508, %v1504
    %v1629 = vpack.c.b16 %v1509, %v1505
    %v1630 = vpack.c.b16 %v1514, %v1510
    %v1631 = vpack.c.b16 %v1515, %v1511
    %v1632 = vpack.c.b16 %v1516, %v1512
    %v1633 = vpack.c.b16 %v1517, %v1513
    %v1634 = vpack.c.b16 %v1522, %v1518
    %v1635 = vpack.c.b16 %v1523, %v1519
    %v1636 = vpack.c.b16 %v1524, %v1520
    %v1637 = vpack.c.b16 %v1525, %v1521
    %v1638 = vpack.c.b16 %v1530, %v1526
    %v1639 = vpack.c.b16 %v1531, %v1527
    %v1640 = vpack.c.b16 %v1532, %v1528
    %v1641 = vpack.c.b16 %v1533, %v1529
    %v1642 = vpack.c.b16 %v1538, %v1534
    %v1643 = vpack.c.b16 %v1539, %v1535
    %v1644 = vpack.c.b16 %v1540, %v1536
    %v1645 = vpack.c.b16 %v1541, %v1537
    %v1646 = vpack.c.b16 %v1546, %v1542
    %v1647 = vpack.c.b16 %v1547, %v1543
    %v1648 = vpack.c.b16 %v1548, %v1544
    %v1649 = vpack.c.b16 %v1549, %v1545
    %v1650 = vpack.c.b16 %v1554, %v1550
    %v1651 = vpack.c.b16 %v1555, %v1551
    %v1652 = vpack.c.b16 %v1556, %v1552
    %v1653 = vpack.c.b16 %v1557, %v1553
    %v1654 = vpack.c.b16 %v1562, %v1558
    %v1655 = vpack.c.b16 %v1563, %v1559
    %v1656 = vpack.c.b16 %v1564, %v1560
    %v1657 = vpack.c.b16 %v1565, %v1561
    %v1658 = vpack.c.b16 %v1570, %v1566
    %v1659 = vpack.c.b16 %v1571, %v1567
    %v1660 = vpack.c.b16 %v1572, %v1568
    %v1661 = vpack.c.b16 %v1573, %v1569
    %v1662 = vpack.c.b16 %v1578, %v1574
    %v1663 = vpack.c.b16 %v1579, %v1575
    %v1664 = vpack.c.b16 %v1580, %v1576
    %v1665 = vpack.c.b16 %v1581, %v1577
    %v1666 = vpack.c.b16 %v1586, %v1582
    %v1667 = vpack.c.b16 %v1587, %v1583
    %v1668 = vpack.c.b16 %v1588, %v1584
    %v1669 = vpack.c.b16 %v1589, %v1585
    %v1670 = vpack.c.b16 %v1594, %v1590
    %v1671 = vpack.c.b16 %v1595, %v1591
    %v1672 = vpack.c.b16 %v1596, %v1592
    %v1673 = vpack.c.b16 %v1597, %v1593
    %v1674 = vpack.c.b16 %v1602, %v1598
    %v1675 = vpack.c.b16 %v1603, %v1599
    %v1676 = vpack.c.b16 %v1604, %v1600
    %v1677 = vpack.c.b16 %v1605, %v1601
    %v1678 = vpack.c.b16 %v1610, %v1606
    %v1679 = vpack.c.b16 %v1611, %v1607
    %v1680 = vpack.c.b16 %v1612, %v1608
    %v1681 = vpack.c.b16 %v1613, %v1609
    %v1682 = vpack.c.b16 %v1618, %v1614
    %v1683 = vpack.c.b16 %v1619, %v1615
    %v1684 = vpack.c.b16 %v1620, %v1616
    %v1685 = vpack.c.b16 %v1621, %v1617
    %1750 = vmatprep.subr.bf16.mxu0 %v1623
    %1751 = vmatpush1.bf16.msra.mxu0 %v1622
    %1752 = vmatprep.subr.bf16.mxu0 %v1627
    %1753 = vmatpush1.bf16.msra.mxu0 %v1626
    %1754 = vmatprep.subr.bf16.mxu0 %v1631
    %1755 = vmatpush1.bf16.msra.mxu0 %v1630
    %1756 = vmatprep.subr.bf16.mxu0 %v1635
    %1757 = vmatpush1.bf16.msra.mxu0 %v1634
    %1758 = vmatprep.subr.bf16.mxu0 %v1639
    %1759 = vmatpush1.bf16.msra.mxu0 %v1638
    %1760 = vmatprep.subr.bf16.mxu0 %v1643
    %1761 = vmatpush1.bf16.msra.mxu0 %v1642
    %1762 = vmatprep.subr.bf16.mxu0 %v1647
    %1763 = vmatpush1.bf16.msra.mxu0 %v1646
    %1764 = vmatprep.subr.bf16.mxu0 %v1651
    %1765 = vmatpush1.bf16.msra.mxu0 %v1650
    %1766 = vmatprep.subr.bf16.mxu0 %v1655
    %1767 = vmatpush1.bf16.msra.mxu0 %v1654
    %1768 = vmatprep.subr.bf16.mxu0 %v1659
    %1769 = vmatpush1.bf16.msra.mxu0 %v1658
    %1770 = vmatprep.subr.bf16.mxu0 %v1663
    %1771 = vmatpush1.bf16.msra.mxu0 %v1662
    %1772 = vmatprep.subr.bf16.mxu0 %v1667
    %1773 = vmatpush1.bf16.msra.mxu0 %v1666
    %1774 = vmatprep.subr.bf16.mxu0 %v1671
    %1775 = vmatpush1.bf16.msra.mxu0 %v1670
    %1776 = vmatprep.subr.bf16.mxu0 %v1675
    %1777 = vmatpush1.bf16.msra.mxu0 %v1674
    %1778 = vmatprep.subr.bf16.mxu0 %v1679
    %1779 = vmatpush1.bf16.msra.mxu0 %v1678
    %1780 = vmatprep.subr.bf16.mxu0 %v1683
    %1781 = vmatpush1.bf16.msra.mxu0 %v1682
    %1782 = vmatprep.mubr.bf16.mxu0 %v1421
    %1783 = vmatmul.mubr.bf16.gmra.mrb[0].mxu0 %v1418
    %v1784 = vpop.f32.mrb[0].mxu0
    %v1785 = vadd.f32 0.0, %v1784
    %v1786 = vpop.f32.mrb[0].mxu0
    %v1787 = vadd.f32 0.0, %v1786
    %v1788 = vpop.f32.mrb[0].mxu0
    %v1789 = vadd.f32 0.0, %v1788
    %v1790 = vpop.f32.mrb[0].mxu0
    %v1791 = vadd.f32 0.0, %v1790
    %1792 = vmatprep.mubr.bf16.mxu0 %v1425
    %1793 = vmatmul.mubr.bf16.gmra.mrb[0].mxu0 %v1423
    %v1794 = vpop.f32.mrb[0].mxu0
    %v1795 = vadd.f32 0.0, %v1794
    %v1796 = vpop.f32.mrb[0].mxu0
    %v1797 = vadd.f32 0.0, %v1796
    %v1798 = vpop.f32.mrb[0].mxu0
    %v1799 = vadd.f32 0.0, %v1798
    %v1800 = vpop.f32.mrb[0].mxu0
    %v1801 = vadd.f32 0.0, %v1800
    %1802 = vdwg.mxu0
    %1803 = vmatprep.subr.bf16.mxu0 %v1625
    %1804 = vmatpush1.bf16.msra.mxu0 %v1624
    %1805 = vmatprep.subr.bf16.mxu0 %v1629
    %1806 = vmatpush1.bf16.msra.mxu0 %v1628
    %1807 = vmatprep.subr.bf16.mxu0 %v1633
    %1808 = vmatpush1.bf16.msra.mxu0 %v1632
    %1809 = vmatprep.subr.bf16.mxu0 %v1637
    %1810 = vmatpush1.bf16.msra.mxu0 %v1636
    %1811 = vmatprep.subr.bf16.mxu0 %v1641
    %1812 = vmatpush1.bf16.msra.mxu0 %v1640
    %1813 = vmatprep.subr.bf16.mxu0 %v1645
    %1814 = vmatpush1.bf16.msra.mxu0 %v1644
    %1815 = vmatprep.subr.bf16.mxu0 %v1649
    %1816 = vmatpush1.bf16.msra.mxu0 %v1648
    %1817 = vmatprep.subr.bf16.mxu0 %v1653
    %1818 = vmatpush1.bf16.msra.mxu0 %v1652
    %1819 = vmatprep.subr.bf16.mxu0 %v1657
    %1820 = vmatpush1.bf16.msra.mxu0 %v1656
    %1821 = vmatprep.subr.bf16.mxu0 %v1661
    %1822 = vmatpush1.bf16.msra.mxu0 %v1660
    %1823 = vmatprep.subr.bf16.mxu0 %v1665
    %1824 = vmatpush1.bf16.msra.mxu0 %v1664
    %1825 = vmatprep.subr.bf16.mxu0 %v1669
    %1826 = vmatpush1.bf16.msra.mxu0 %v1668
    %1827 = vmatprep.subr.bf16.mxu0 %v1673
    %1828 = vmatpush1.bf16.msra.mxu0 %v1672
    %1829 = vmatprep.subr.bf16.mxu0 %v1677
    %1830 = vmatpush1.bf16.msra.mxu0 %v1676
    %1831 = vmatprep.subr.bf16.mxu0 %v1681
    %1832 = vmatpush1.bf16.msra.mxu0 %v1680
    %1833 = vmatprep.subr.bf16.mxu0 %v1685
    %1834 = vmatpush1.bf16.msra.mxu0 %v1684
    %1835 = vmatprep.mubr.bf16.mxu0 %v1421
    %1836 = vmatmul.mubr.bf16.gmra.mrb[0].mxu0 %v1418
    %v1837 = vpop.f32.mrb[0].mxu0
    %v1838 = vadd.f32 0.0, %v1837
    %v1839 = vpop.f32.mrb[0].mxu0
    %v1840 = vadd.f32 0.0, %v1839
    %v1841 = vpop.f32.mrb[0].mxu0
    %v1842 = vadd.f32 0.0, %v1841
    %v1843 = vpop.f32.mrb[0].mxu0
    %v1844 = vadd.f32 0.0, %v1843
    %1845 = vmatprep.mubr.bf16.mxu0 %v1425
    %1846 = vmatmul.mubr.bf16.gmra.mrb[0].mxu0 %v1423
    %v1847 = vpop.f32.mrb[0].mxu0
    %v1848 = vadd.f32 0.0, %v1847
    %v1849 = vpop.f32.mrb[0].mxu0
    %v1850 = vadd.f32 0.0, %v1849
    %v1851 = vpop.f32.mrb[0].mxu0
    %v1852 = vadd.f32 0.0, %v1851
    %v1853 = vpop.f32.mrb[0].mxu0
    %v1854 = vadd.f32 0.0, %v1853
    %1855 = vdwg.mxu0
    %v1856 = vadd.f32 %v1265, %v1785
    %v1857 = vadd.f32 %v1267, %v1787
    %v1858 = vadd.f32 %v1318, %v1838
    %v1859 = vadd.f32 %v1320, %v1840
    %v1860 = vadd.f32 %v1269, %v1789
    %v1861 = vadd.f32 %v1271, %v1791
    %v1862 = vadd.f32 %v1322, %v1842
    %v1863 = vadd.f32 %v1324, %v1844
    %v1864 = vadd.f32 %v1275, %v1795
    %v1865 = vadd.f32 %v1277, %v1797
    %v1866 = vadd.f32 %v1328, %v1848
    %v1867 = vadd.f32 %v1330, %v1850
    %v1868 = vadd.f32 %v1279, %v1799
    %v1869 = vadd.f32 %v1281, %v1801
    %v1870 = vadd.f32 %v1332, %v1852
    %v1871 = vadd.f32 %v1334, %v1854
    %v1872 = vld [vmem:[%s4] sm:$0xf]
    %v1874 = vlaneseq
    %v1875 = vshrl.u32 %v1874, 7
    %v1876 = vsub.s32 0, %v1875
    %v1877 = vrot.slane %v1872, %v1876
    %v1878 = vlaneseq
    %v1879 = vshrl.u32 %v1878, 7
    %v1880 = vsub.s32 1, %v1879
    %v1881 = vrot.slane %v1872, %v1880
    %v1882 = vlaneseq
    %v1883 = vshrl.u32 %v1882, 7
    %v1884 = vsub.s32 2, %v1883
    %v1885 = vrot.slane %v1872, %v1884
    %v1886 = vlaneseq
    %v1887 = vshrl.u32 %v1886, 7
    %v1888 = vsub.s32 3, %v1887
    %v1889 = vrot.slane %v1872, %v1888
    %v1894 = vadd.f32 %v1856, %v1877
    %v1895 = vadd.f32 %v1857, %v1881
    %v1896 = vadd.f32 %v1858, %v1885
    %v1897 = vadd.f32 %v1859, %v1889
    %v1898 = vadd.f32 %v1860, %v1877
    %v1899 = vadd.f32 %v1861, %v1881
    %v1900 = vadd.f32 %v1862, %v1885
    %v1901 = vadd.f32 %v1863, %v1889
    %v1902 = vadd.f32 %v1864, %v1877
    %v1903 = vadd.f32 %v1865, %v1881
    %v1904 = vadd.f32 %v1866, %v1885
    %v1905 = vadd.f32 %v1867, %v1889
    %v1906 = vadd.f32 %v1868, %v1877
    %v1907 = vadd.f32 %v1869, %v1881
    %v1908 = vadd.f32 %v1870, %v1885
    %v1909 = vadd.f32 %v1871, %v1889
    %v1910 = vmax.f32 %v1894, 0.0
    %v1911 = vmax.f32 %v1895, 0.0
    %v1912 = vmax.f32 %v1896, 0.0
    %v1913 = vmax.f32 %v1897, 0.0
    %v1914 = vmax.f32 %v1898, 0.0
    %v1915 = vmax.f32 %v1899, 0.0
    %v1916 = vmax.f32 %v1900, 0.0
    %v1917 = vmax.f32 %v1901, 0.0
    %v1918 = vmax.f32 %v1902, 0.0
    %v1919 = vmax.f32 %v1903, 0.0
    %v1920 = vmax.f32 %v1904, 0.0
    %v1921 = vmax.f32 %v1905, 0.0
    %v1922 = vmax.f32 %v1906, 0.0
    %v1923 = vmax.f32 %v1907, 0.0
    %v1924 = vmax.f32 %v1908, 0.0
    %v1925 = vmax.f32 %v1909, 0.0
    %1926 = vst [vmem:[#allocation3] sm:$0xff] %v1910
    %1927 = vst [vmem:[#allocation3 + $0x8] sm:$0xff] %v1911
    %1928 = vst [vmem:[#allocation3 + $0x10] sm:$0xff] %v1912
    %1929 = vst [vmem:[#allocation3 + $0x18] sm:$0xff] %v1913
    %1930 = vst [vmem:[#allocation3 + $0x20] sm:$0xff] %v1914
    %1931 = vst [vmem:[#allocation3 + $0x28] sm:$0xff] %v1915
    %1932 = vst [vmem:[#allocation3 + $0x30] sm:$0xff] %v1916
    %1933 = vst [vmem:[#allocation3 + $0x38] sm:$0xff] %v1917
    %1934 = vst [vmem:[#allocation3 + $0x40] sm:$0xff] %v1918
    %1935 = vst [vmem:[#allocation3 + $0x48] sm:$0xff] %v1919
    %1936 = vst [vmem:[#allocation3 + $0x50] sm:$0xff] %v1920
    %1937 = vst [vmem:[#allocation3 + $0x58] sm:$0xff] %v1921
    %1938 = vst [vmem:[#allocation3 + $0x60] sm:$0xff] %v1922
    %1939 = vst [vmem:[#allocation3 + $0x68] sm:$0xff] %v1923
    %1940 = vst [vmem:[#allocation3 + $0x70] sm:$0xff] %v1924
    %1941 = vst [vmem:[#allocation3 + $0x78] sm:$0xff] %v1925
    %1942 = vst [vmem:[#allocation3 + $0x80] sm:$0xff] 0.0
    %1943 = vst [vmem:[#allocation3 + $0x88] sm:$0xff] 0.0
    %1944 = vst [vmem:[#allocation3 + $0x90] sm:$0xff] 0.0
    %1945 = vst [vmem:[#allocation3 + $0x98] sm:$0xff] 0.0
    %v1946 = vld [vmem:[#allocation3] sm:$0xff]
    %v1947 = vld [vmem:[#allocation3 + $0x8] sm:$0xff]
    %v1948 = vld [vmem:[#allocation3 + $0x10] sm:$0xff]
    %v1949 = vld [vmem:[#allocation3 + $0x20] sm:$0xff]
    %v1950 = vld [vmem:[#allocation3 + $0x28] sm:$0xff]
    %v1951 = vld [vmem:[#allocation3 + $0x30] sm:$0xff]
    %v1952 = vld [vmem:[#allocation3 + $0x40] sm:$0xff]
    %v1953 = vld [vmem:[#allocation3 + $0x48] sm:$0xff]
    %v1954 = vld [vmem:[#allocation3 + $0x50] sm:$0xff]
    %v1955 = vld [vmem:[#allocation3 + $0x60] sm:$0xff]
    %v1956 = vld [vmem:[#allocation3 + $0x68] sm:$0xff]
    %v1957 = vld [vmem:[#allocation3 + $0x70] sm:$0xff]
    %v1958 = vld [vmem:[#allocation3] sm:$0xfe]
    %v1959 = vld [vmem:[#allocation3 + $0x8] sm:$0xfe]
    %v1960 = vld [vmem:[#allocation3 + $0x10] sm:$0xfe]
    %v1961 = vld [vmem:[#allocation3 + $0x20] sm:$0xff]
    %v1962 = vld [vmem:[#allocation3 + $0x28] sm:$0xff]
    %v1963 = vld [vmem:[#allocation3 + $0x30] sm:$0xff]
    %v1964 = vld [vmem:[#allocation3 + $0x40] sm:$0xff]
    %v1965 = vld [vmem:[#allocation3 + $0x48] sm:$0xff]
    %v1966 = vld [vmem:[#allocation3 + $0x50] sm:$0xff]
    %v1967 = vld [vmem:[#allocation3 + $0x60] sm:$0xff]
    %v1968 = vld [vmem:[#allocation3 + $0x68] sm:$0xff]
    %v1969 = vld [vmem:[#allocation3 + $0x70] sm:$0xff]
    %v1970 = vld [vmem:[#allocation3 + $0x80] sm:$0x1]
    %v1971 = vld [vmem:[#allocation3 + $0x88] sm:$0x1]
    %v1972 = vld [vmem:[#allocation3 + $0x90] sm:$0x1]
    %vm1988 = vcmask 1046528
    %v1989 = vrot.slane %v1958, 1
    %v1990 = vrot.slane %v1961, 1
    %v1991 = vsel %vm1988, %v1989, %v1990
    %v1992 = vrot.slane %v1959, 1
    %v1993 = vrot.slane %v1962, 1
    %v1994 = vsel %vm1988, %v1992, %v1993
    %v1995 = vrot.slane %v1960, 1
    %v1996 = vrot.slane %v1963, 1
    %v1997 = vsel %vm1988, %v1995, %v1996
    %v1998 = vrot.slane %v1964, 1
    %v1999 = vsel %vm1988, %v1990, %v1998
    %v2000 = vrot.slane %v1965, 1
    %v2001 = vsel %vm1988, %v1993, %v2000
    %v2002 = vrot.slane %v1966, 1
    %v2003 = vsel %vm1988, %v1996, %v2002
    %v2004 = vrot.slane %v1967, 1
    %v2005 = vsel %vm1988, %v1998, %v2004
    %v2006 = vrot.slane %v1968, 1
    %v2007 = vsel %vm1988, %v2000, %v2006
    %v2008 = vrot.slane %v1969, 1
    %v2009 = vsel %vm1988, %v2002, %v2008
    %v2010 = vrot.slane %v1970, 1
    %v2011 = vsel %vm1988, %v2004, %v2010
    %v2012 = vrot.slane %v1971, 1
    %v2013 = vsel %vm1988, %v2006, %v2012
    %v2014 = vrot.slane %v1972, 1
    %v2015 = vsel %vm1988, %v2008, %v2014
    %v2028 = vmax.f32 %v1946, %v1991
    %v2029 = vmax.f32 %v1947, %v1994
    %v2030 = vmax.f32 %v1948, %v1997
    %v2031 = vmax.f32 %v1949, %v1999
    %v2032 = vmax.f32 %v1950, %v2001
    %v2033 = vmax.f32 %v1951, %v2003
    %v2034 = vmax.f32 %v1952, %v2005
    %v2035 = vmax.f32 %v1953, %v2007
    %v2036 = vmax.f32 %v1954, %v2009
    %v2037 = vmax.f32 %v1955, %v2011
    %v2038 = vmax.f32 %v1956, %v2013
    %v2039 = vmax.f32 %v1957, %v2015
    %2044 = vrot.lane.b32.xlu0 %v2028, 96
    %v2045 = vpop.permute.xlu0 %2044
    %2046 = vrot.lane.b32.xlu0 %v2031, 96
    %v2047 = vpop.permute.xlu0 %2046
    %2048 = vrot.lane.b32.xlu0 %v2034, 96
    %v2049 = vpop.permute.xlu0 %2048
    %2050 = vrot.lane.b32.xlu0 %v2037, 96
    %v2051 = vpop.permute.xlu0 %2050
    %v2056 = vmax.f32 %v2028, %v2045
    %v2057 = vmax.f32 %v2031, %v2047
    %v2058 = vmax.f32 %v2034, %v2049
    %v2059 = vmax.f32 %v2037, %v2051
    %2064 = vrot.lane.b32.xlu0 %v2029, 96
    %v2065 = vpop.permute.xlu0 %2064
    %2066 = vrot.lane.b32.xlu0 %v2032, 96
    %v2067 = vpop.permute.xlu0 %2066
    %2068 = vrot.lane.b32.xlu0 %v2035, 96
    %v2069 = vpop.permute.xlu0 %2068
    %2070 = vrot.lane.b32.xlu0 %v2038, 96
    %v2071 = vpop.permute.xlu0 %2070
    %v2076 = vmax.f32 %v2029, %v2065
    %v2077 = vmax.f32 %v2032, %v2067
    %v2078 = vmax.f32 %v2035, %v2069
    %v2079 = vmax.f32 %v2038, %v2071
    %2084 = vrot.lane.b32.xlu0 %v2030, 96
    %v2085 = vpop.permute.xlu0 %2084
    %2086 = vrot.lane.b32.xlu0 %v2033, 96
    %v2087 = vpop.permute.xlu0 %2086
    %2088 = vrot.lane.b32.xlu0 %v2036, 96
    %v2089 = vpop.permute.xlu0 %2088
    %2090 = vrot.lane.b32.xlu0 %v2039, 96
    %v2091 = vpop.permute.xlu0 %2090
    %v2096 = vmax.f32 %v2030, %v2085
    %v2097 = vmax.f32 %v2033, %v2087
    %v2098 = vmax.f32 %v2036, %v2089
    %v2099 = vmax.f32 %v2039, %v2091
    %2104 = vrot.lane.b32.xlu0 %v2056, 96
    %v2105 = vpop.permute.xlu0 %2104
    %2106 = vrot.lane.b32.xlu0 %v2057, 96
    %v2107 = vpop.permute.xlu0 %2106
    %2108 = vrot.lane.b32.xlu0 %v2058, 96
    %v2109 = vpop.permute.xlu0 %2108
    %2110 = vrot.lane.b32.xlu0 %v2059, 96
    %v2111 = vpop.permute.xlu0 %2110
    %2120 = vrot.lane.b32.xlu0 %v2076, 64
    %v2121 = vpop.permute.xlu0 %2120
    %2122 = vrot.lane.b32.xlu0 %v2077, 64
    %v2123 = vpop.permute.xlu0 %2122
    %2124 = vrot.lane.b32.xlu0 %v2078, 64
    %v2125 = vpop.permute.xlu0 %2124
    %2126 = vrot.lane.b32.xlu0 %v2079, 64
    %v2127 = vpop.permute.xlu0 %2126
    %2132 = vrot.lane.b32.xlu0 %v2076, 32
    %v2133 = vpop.permute.xlu0 %2132
    %2134 = vrot.lane.b32.xlu0 %v2077, 32
    %v2135 = vpop.permute.xlu0 %2134
    %2136 = vrot.lane.b32.xlu0 %v2078, 32
    %v2137 = vpop.permute.xlu0 %2136
    %2138 = vrot.lane.b32.xlu0 %v2079, 32
    %v2139 = vpop.permute.xlu0 %2138
    %2148 = vrot.lane.b32.xlu0 %v2096, 96
    %v2149 = vpop.permute.xlu0 %2148
    %2150 = vrot.lane.b32.xlu0 %v2097, 96
    %v2151 = vpop.permute.xlu0 %2150
    %2152 = vrot.lane.b32.xlu0 %v2098, 96
    %v2153 = vpop.permute.xlu0 %2152
    %2154 = vrot.lane.b32.xlu0 %v2099, 96
    %v2155 = vpop.permute.xlu0 %2154
    %vm2160 = vcmask 261120
    %v2161 = vsel %vm2160, %v2056, %v2105
    %v2162 = vsel %vm2160, %v2057, %v2107
    %v2163 = vsel %vm2160, %v2058, %v2109
    %v2164 = vsel %vm2160, %v2059, %v2111
    %vm2165 = vcmask 523264
    %v2166 = vsel %vm2165, %v2161, %v2121
    %v2167 = vsel %vm2165, %v2162, %v2123
    %v2168 = vsel %vm2165, %v2163, %v2125
    %v2169 = vsel %vm2165, %v2164, %v2127
    %vm2170 = vcmask 785408
    %v2171 = vsel %vm2170, %v2166, %v2133
    %v2172 = vsel %vm2170, %v2167, %v2135
    %v2173 = vsel %vm2170, %v2168, %v2137
    %v2174 = vsel %vm2170, %v2169, %v2139
    %v2175 = vsel %vm2160, %v2096, %v2149
    %v2176 = vsel %vm2160, %v2097, %v2151
    %v2177 = vsel %vm2160, %v2098, %v2153
    %v2178 = vsel %vm2160, %v2099, %v2155
    %v2179 = vpack.c.bf16 %v2171, %v2171
    %v2180 = vpack.c.bf16 %v2175, %v2175
    %v2181 = vld [vmem:[#allocation7] sm:$0xf]
    %v2182 = vld [vmem:[#allocation7 + $0x4] sm:$0xf]
    %v2183 = vld [vmem:[#allocation7 + $0x8] sm:$0xf]
    %v2184 = vld [vmem:[#allocation7 + $0xc] sm:$0xf]
    %v2185 = vld [vmem:[#allocation7 + $0x10] sm:$0xf]
    %v2186 = vld [vmem:[#allocation7 + $0x14] sm:$0xf]
    %v2187 = vld [vmem:[#allocation7 + $0x18] sm:$0xf]
    %v2188 = vld [vmem:[#allocation7 + $0x1c] sm:$0xf]
    %v2189 = vld [vmem:[#allocation7 + $0x20] sm:$0xf]
    %v2190 = vld [vmem:[#allocation7 + $0x24] sm:$0xf]
    %v2191 = vld [vmem:[#allocation7 + $0x28] sm:$0xf]
    %v2192 = vld [vmem:[#allocation7 + $0x2c] sm:$0xf]
    %v2193 = vld [vmem:[#allocation7 + $0x30] sm:$0xf]
    %v2194 = vld [vmem:[#allocation7 + $0x34] sm:$0xf]
    %v2195 = vld [vmem:[#allocation7 + $0x38] sm:$0xf]
    %v2196 = vld [vmem:[#allocation7 + $0x3c] sm:$0xf]
    %v2197 = vld [vmem:[#allocation7 + $0x40] sm:$0xf]
    %v2198 = vld [vmem:[#allocation7 + $0x44] sm:$0xf]
    %v2199 = vld [vmem:[#allocation7 + $0x48] sm:$0xf]
    %v2200 = vld [vmem:[#allocation7 + $0x4c] sm:$0xf]
    %v2201 = vld [vmem:[#allocation7 + $0x50] sm:$0xf]
    %v2202 = vld [vmem:[#allocation7 + $0x54] sm:$0xf]
    %v2203 = vld [vmem:[#allocation7 + $0x58] sm:$0xf]
    %v2204 = vld [vmem:[#allocation7 + $0x5c] sm:$0xf]
    %s2205 = scalar_lea.vmem [#allocation7], 96
    %v2206 = vld [vmem:[%s2205] sm:$0xf]
    %v2207 = vld [vmem:[%s2205 + $0x4] sm:$0xf]
    %v2208 = vld [vmem:[%s2205 + $0x8] sm:$0xf]
    %v2209 = vld [vmem:[%s2205 + $0xc] sm:$0xf]
    %v2210 = vld [vmem:[%s2205 + $0x10] sm:$0xf]
    %v2211 = vld [vmem:[%s2205 + $0x14] sm:$0xf]
    %v2212 = vld [vmem:[%s2205 + $0x18] sm:$0xf]
    %v2213 = vld [vmem:[%s2205 + $0x1c] sm:$0xf]
    %v2214 = vld [vmem:[%s2205 + $0x20] sm:$0xf]
    %v2215 = vld [vmem:[%s2205 + $0x24] sm:$0xf]
    %v2216 = vld [vmem:[%s2205 + $0x28] sm:$0xf]
    %v2217 = vld [vmem:[%s2205 + $0x2c] sm:$0xf]
    %v2218 = vld [vmem:[%s2205 + $0x30] sm:$0xf]
    %v2219 = vld [vmem:[%s2205 + $0x34] sm:$0xf]
    %v2220 = vld [vmem:[%s2205 + $0x38] sm:$0xf]
    %v2221 = vld [vmem:[%s2205 + $0x3c] sm:$0xf]
    %v2222 = vld [vmem:[%s2205 + $0x40] sm:$0xf]
    %v2223 = vld [vmem:[%s2205 + $0x44] sm:$0xf]
    %v2224 = vld [vmem:[%s2205 + $0x48] sm:$0xf]
    %v2225 = vld [vmem:[%s2205 + $0x4c] sm:$0xf]
    %v2226 = vld [vmem:[%s2205 + $0x50] sm:$0xf]
    %v2227 = vld [vmem:[%s2205 + $0x54] sm:$0xf]
    %v2228 = vld [vmem:[%s2205 + $0x58] sm:$0xf]
    %v2229 = vld [vmem:[%s2205 + $0x5c] sm:$0xf]
    %v2232 = vrot.slane %v2179, 1
    %v2233 = vrot.slane %v2180, 1
    %v2259 = vunpack.c.l.b16 %v2206
    %v2260 = vunpack.c.l.b16 %v2207
    %v2261 = vunpack.c.l.b16 %v2208
    %v2262 = vunpack.c.l.b16 %v2209
    %v2263 = vunpack.c.l.b16 %v2210
    %v2264 = vunpack.c.l.b16 %v2211
    %v2265 = vunpack.c.l.b16 %v2212
    %v2266 = vunpack.c.l.b16 %v2213
    %v2267 = vunpack.c.l.b16 %v2214
    %v2268 = vunpack.c.l.b16 %v2215
    %v2269 = vunpack.c.l.b16 %v2216
    %v2270 = vunpack.c.l.b16 %v2217
    %v2271 = vunpack.c.l.b16 %v2218
    %v2272 = vunpack.c.l.b16 %v2219
    %v2273 = vunpack.c.l.b16 %v2220
    %v2274 = vunpack.c.l.b16 %v2221
    %v2275 = vunpack.c.l.b16 %v2222
    %v2276 = vunpack.c.l.b16 %v2223
    %v2277 = vunpack.c.l.b16 %v2224
    %v2278 = vunpack.c.l.b16 %v2225
    %v2279 = vunpack.c.l.b16 %v2226
    %v2280 = vunpack.c.l.b16 %v2227
    %v2281 = vunpack.c.l.b16 %v2228
    %v2282 = vunpack.c.l.b16 %v2229
    %v2283 = vpack.c.b16 %v2260, %v2259
    %v2284 = vpack.c.b16 %v2262, %v2261
    %v2285 = vpack.c.b16 %v2264, %v2263
    %v2286 = vpack.c.b16 %v2266, %v2265
    %v2287 = vpack.c.b16 %v2268, %v2267
    %v2288 = vpack.c.b16 %v2270, %v2269
    %v2289 = vpack.c.b16 %v2272, %v2271
    %v2290 = vpack.c.b16 %v2274, %v2273
    %v2291 = vpack.c.b16 %v2276, %v2275
    %v2292 = vpack.c.b16 %v2278, %v2277
    %v2293 = vpack.c.b16 %v2280, %v2279
    %v2294 = vpack.c.b16 %v2282, %v2281
    %v2308 = vsel %vm2165, %v2233, 0
    %2310 = vmatprep.subr.bf16.mxu0 0
    %2311 = vmatpush1.bf16.msra.mxu0 %v2283
    %2312 = vmatprep.subr.bf16.mxu0 0
    %2313 = vmatpush1.bf16.msra.mxu0 %v2284
    %2314 = vmatprep.subr.bf16.mxu0 0
    %2315 = vmatpush1.bf16.msra.mxu0 %v2285
    %2316 = vmatprep.subr.bf16.mxu0 0
    %2317 = vmatpush1.bf16.msra.mxu0 %v2286
    %2318 = vmatprep.subr.bf16.mxu0 0
    %2319 = vmatpush1.bf16.msra.mxu0 %v2287
    %2320 = vmatprep.subr.bf16.mxu0 0
    %2321 = vmatpush1.bf16.msra.mxu0 %v2288
    %2322 = vmatprep.subr.bf16.mxu0 0
    %2323 = vmatpush1.bf16.msra.mxu0 %v2289
    %2324 = vmatprep.subr.bf16.mxu0 0
    %2325 = vmatpush1.bf16.msra.mxu0 %v2290
    %2326 = vmatprep.subr.bf16.mxu0 0
    %2327 = vmatpush1.bf16.msra.mxu0 %v2291
    %2328 = vmatprep.subr.bf16.mxu0 0
    %2329 = vmatpush1.bf16.msra.mxu0 %v2292
    %2330 = vmatprep.subr.bf16.mxu0 0
    %2331 = vmatpush1.bf16.msra.mxu0 %v2293
    %2332 = vmatprep.subr.bf16.mxu0 0
    %2333 = vmatpush1.bf16.msra.mxu0 %v2294
    %2334 = vmatprep.subr.bf16.mxu0 0
    %2335 = vmatpush1.bf16.msra.mxu0 0
    %2336 = vmatprep.subr.bf16.mxu0 0
    %2337 = vmatpush1.bf16.msra.mxu0 0
    %2338 = vmatprep.subr.bf16.mxu0 0
    %2339 = vmatpush1.bf16.msra.mxu0 0
    %2340 = vmatprep.subr.bf16.mxu0 0
    %2341 = vmatpush1.bf16.msra.mxu0 0
    %2342 = vmatprep.mubr.bf16.mxu0 %v2308
    %2343 = vmatmul.mubr.bf16.gmra.mrb[0].mxu0 %v2232
    %v2344 = vpop.f32.mrb[0].mxu0
    %v2345 = vadd.f32 0.0, %v2344
    %v2346 = vpop.f32.mrb[0].mxu0
    %v2347 = vpop.f32.mrb[0].mxu0
    %v2348 = vpop.f32.mrb[0].mxu0
    %2349 = vdwg.mxu0
    %s2350 = scalar_lea.vmem [#allocation7], 192
    %v2351 = vld [vmem:[%s2350] sm:$0xf]
    %v2352 = vld [vmem:[%s2350 + $0x4] sm:$0xf]
    %v2353 = vld [vmem:[%s2350 + $0x8] sm:$0xf]
    %v2354 = vld [vmem:[%s2350 + $0xc] sm:$0xf]
    %v2355 = vld [vmem:[%s2350 + $0x10] sm:$0xf]
    %v2356 = vld [vmem:[%s2350 + $0x14] sm:$0xf]
    %v2357 = vld [vmem:[%s2350 + $0x18] sm:$0xf]
    %v2358 = vld [vmem:[%s2350 + $0x1c] sm:$0xf]
    %v2359 = vld [vmem:[%s2350 + $0x20] sm:$0xf]
    %v2360 = vld [vmem:[%s2350 + $0x24] sm:$0xf]
    %v2361 = vld [vmem:[%s2350 + $0x28] sm:$0xf]
    %v2362 = vld [vmem:[%s2350 + $0x2c] sm:$0xf]
    %v2363 = vld [vmem:[%s2350 + $0x30] sm:$0xf]
    %v2364 = vld [vmem:[%s2350 + $0x34] sm:$0xf]
    %v2365 = vld [vmem:[%s2350 + $0x38] sm:$0xf]
    %v2366 = vld [vmem:[%s2350 + $0x3c] sm:$0xf]
    %v2367 = vld [vmem:[%s2350 + $0x40] sm:$0xf]
    %v2368 = vld [vmem:[%s2350 + $0x44] sm:$0xf]
    %v2369 = vld [vmem:[%s2350 + $0x48] sm:$0xf]
    %v2370 = vld [vmem:[%s2350 + $0x4c] sm:$0xf]
    %v2371 = vld [vmem:[%s2350 + $0x50] sm:$0xf]
    %v2372 = vld [vmem:[%s2350 + $0x54] sm:$0xf]
    %v2373 = vld [vmem:[%s2350 + $0x58] sm:$0xf]
    %v2374 = vld [vmem:[%s2350 + $0x5c] sm:$0xf]
    %s2375 = scalar_lea.vmem [#allocation7], 288
    %v2376 = vld [vmem:[%s2375] sm:$0xf]
    %v2377 = vld [vmem:[%s2375 + $0x4] sm:$0xf]
    %v2378 = vld [vmem:[%s2375 + $0x8] sm:$0xf]
    %v2379 = vld [vmem:[%s2375 + $0xc] sm:$0xf]
    %v2380 = vld [vmem:[%s2375 + $0x10] sm:$0xf]
    %v2381 = vld [vmem:[%s2375 + $0x14] sm:$0xf]
    %v2382 = vld [vmem:[%s2375 + $0x18] sm:$0xf]
    %v2383 = vld [vmem:[%s2375 + $0x1c] sm:$0xf]
    %v2384 = vld [vmem:[%s2375 + $0x20] sm:$0xf]
    %v2385 = vld [vmem:[%s2375 + $0x24] sm:$0xf]
    %v2386 = vld [vmem:[%s2375 + $0x28] sm:$0xf]
    %v2387 = vld [vmem:[%s2375 + $0x2c] sm:$0xf]
    %v2388 = vld [vmem:[%s2375 + $0x30] sm:$0xf]
    %v2389 = vld [vmem:[%s2375 + $0x34] sm:$0xf]
    %v2390 = vld [vmem:[%s2375 + $0x38] sm:$0xf]
    %v2391 = vld [vmem:[%s2375 + $0x3c] sm:$0xf]
    %v2392 = vld [vmem:[%s2375 + $0x40] sm:$0xf]
    %v2393 = vld [vmem:[%s2375 + $0x44] sm:$0xf]
    %v2394 = vld [vmem:[%s2375 + $0x48] sm:$0xf]
    %v2395 = vld [vmem:[%s2375 + $0x4c] sm:$0xf]
    %v2396 = vld [vmem:[%s2375 + $0x50] sm:$0xf]
    %v2397 = vld [vmem:[%s2375 + $0x54] sm:$0xf]
    %v2398 = vld [vmem:[%s2375 + $0x58] sm:$0xf]
    %v2399 = vld [vmem:[%s2375 + $0x5c] sm:$0xf]
    %v2400 = vrot.slane %v2179, 3
    %v2401 = vrot.slane %v2180, 3
    %v2427 = vunpack.c.l.b16 %v2376
    %v2428 = vunpack.c.l.b16 %v2377
    %v2429 = vunpack.c.l.b16 %v2378
    %v2430 = vunpack.c.l.b16 %v2379
    %v2431 = vunpack.c.l.b16 %v2380
    %v2432 = vunpack.c.l.b16 %v2381
    %v2433 = vunpack.c.l.b16 %v2382
    %v2434 = vunpack.c.l.b16 %v2383
    %v2435 = vunpack.c.l.b16 %v2384
    %v2436 = vunpack.c.l.b16 %v2385
    %v2437 = vunpack.c.l.b16 %v2386
    %v2438 = vunpack.c.l.b16 %v2387
    %v2439 = vunpack.c.l.b16 %v2388
    %v2440 = vunpack.c.l.b16 %v2389
    %v2441 = vunpack.c.l.b16 %v2390
    %v2442 = vunpack.c.l.b16 %v2391
    %v2443 = vunpack.c.l.b16 %v2392
    %v2444 = vunpack.c.l.b16 %v2393
    %v2445 = vunpack.c.l.b16 %v2394
    %v2446 = vunpack.c.l.b16 %v2395
    %v2447 = vunpack.c.l.b16 %v2396
    %v2448 = vunpack.c.l.b16 %v2397
    %v2449 = vunpack.c.l.b16 %v2398
    %v2450 = vunpack.c.l.b16 %v2399
    %v2451 = vpack.c.b16 %v2428, %v2427
    %v2452 = vpack.c.b16 %v2430, %v2429
    %v2453 = vpack.c.b16 %v2432, %v2431
    %v2454 = vpack.c.b16 %v2434, %v2433
    %v2455 = vpack.c.b16 %v2436, %v2435
    %v2456 = vpack.c.b16 %v2438, %v2437
    %v2457 = vpack.c.b16 %v2440, %v2439
    %v2458 = vpack.c.b16 %v2442, %v2441
    %v2459 = vpack.c.b16 %v2444, %v2443
    %v2460 = vpack.c.b16 %v2446, %v2445
    %v2461 = vpack.c.b16 %v2448, %v2447
    %v2462 = vpack.c.b16 %v2450, %v2449
    %v2476 = vsel %vm2165, %v2401, 0
    %2478 = vmatprep.subr.bf16.mxu0 0
    %2479 = vmatpush1.bf16.msra.mxu0 %v2451
    %2480 = vmatprep.subr.bf16.mxu0 0
    %2481 = vmatpush1.bf16.msra.mxu0 %v2452
    %2482 = vmatprep.subr.bf16.mxu0 0
    %2483 = vmatpush1.bf16.msra.mxu0 %v2453
    %2484 = vmatprep.subr.bf16.mxu0 0
    %2485 = vmatpush1.bf16.msra.mxu0 %v2454
    %2486 = vmatprep.subr.bf16.mxu0 0
    %2487 = vmatpush1.bf16.msra.mxu0 %v2455
    %2488 = vmatprep.subr.bf16.mxu0 0
    %2489 = vmatpush1.bf16.msra.mxu0 %v2456
    %2490 = vmatprep.subr.bf16.mxu0 0
    %2491 = vmatpush1.bf16.msra.mxu0 %v2457
    %2492 = vmatprep.subr.bf16.mxu0 0
    %2493 = vmatpush1.bf16.msra.mxu0 %v2458
    %2494 = vmatprep.subr.bf16.mxu0 0
    %2495 = vmatpush1.bf16.msra.mxu0 %v2459
    %2496 = vmatprep.subr.bf16.mxu0 0
    %2497 = vmatpush1.bf16.msra.mxu0 %v2460
    %2498 = vmatprep.subr.bf16.mxu0 0
    %2499 = vmatpush1.bf16.msra.mxu0 %v2461
    %2500 = vmatprep.subr.bf16.mxu0 0
    %2501 = vmatpush1.bf16.msra.mxu0 %v2462
    %2502 = vmatprep.subr.bf16.mxu0 0
    %2503 = vmatpush1.bf16.msra.mxu0 0
    %2504 = vmatprep.subr.bf16.mxu0 0
    %2505 = vmatpush1.bf16.msra.mxu0 0
    %2506 = vmatprep.subr.bf16.mxu0 0
    %2507 = vmatpush1.bf16.msra.mxu0 0
    %2508 = vmatprep.subr.bf16.mxu0 0
    %2509 = vmatpush1.bf16.msra.mxu0 0
    %2510 = vmatprep.mubr.bf16.mxu0 %v2476
    %2511 = vmatmul.mubr.bf16.gmra.mrb[0].mxu0 %v2400
    %v2512 = vpop.f32.mrb[0].mxu0
    %v2513 = vadd.f32 0.0, %v2512
    %v2514 = vpop.f32.mrb[0].mxu0
    %v2515 = vpop.f32.mrb[0].mxu0
    %v2516 = vpop.f32.mrb[0].mxu0
    %2517 = vdwg.mxu0
    %v2518 = vpack.c.bf16 %v2172, %v2172
    %v2519 = vpack.c.bf16 %v2176, %v2176
    %s2520 = scalar_lea.vmem [#allocation7], 384
    %v2521 = vld [vmem:[%s2520] sm:$0xf]
    %v2522 = vld [vmem:[%s2520 + $0x4] sm:$0xf]
    %v2523 = vld [vmem:[%s2520 + $0x8] sm:$0xf]
    %v2524 = vld [vmem:[%s2520 + $0xc] sm:$0xf]
    %v2525 = vld [vmem:[%s2520 + $0x10] sm:$0xf]
    %v2526 = vld [vmem:[%s2520 + $0x14] sm:$0xf]
    %v2527 = vld [vmem:[%s2520 + $0x18] sm:$0xf]
    %v2528 = vld [vmem:[%s2520 + $0x1c] sm:$0xf]
    %v2529 = vld [vmem:[%s2520 + $0x20] sm:$0xf]
    %v2530 = vld [vmem:[%s2520 + $0x24] sm:$0xf]
    %v2531 = vld [vmem:[%s2520 + $0x28] sm:$0xf]
    %v2532 = vld [vmem:[%s2520 + $0x2c] sm:$0xf]
    %v2533 = vld [vmem:[%s2520 + $0x30] sm:$0xf]
    %v2534 = vld [vmem:[%s2520 + $0x34] sm:$0xf]
    %v2535 = vld [vmem:[%s2520 + $0x38] sm:$0xf]
    %v2536 = vld [vmem:[%s2520 + $0x3c] sm:$0xf]
    %v2537 = vld [vmem:[%s2520 + $0x40] sm:$0xf]
    %v2538 = vld [vmem:[%s2520 + $0x44] sm:$0xf]
    %v2539 = vld [vmem:[%s2520 + $0x48] sm:$0xf]
    %v2540 = vld [vmem:[%s2520 + $0x4c] sm:$0xf]
    %v2541 = vld [vmem:[%s2520 + $0x50] sm:$0xf]
    %v2542 = vld [vmem:[%s2520 + $0x54] sm:$0xf]
    %v2543 = vld [vmem:[%s2520 + $0x58] sm:$0xf]
    %v2544 = vld [vmem:[%s2520 + $0x5c] sm:$0xf]
    %s2545 = scalar_lea.vmem [#allocation7], 480
    %v2546 = vld [vmem:[%s2545] sm:$0xf]
    %v2547 = vld [vmem:[%s2545 + $0x4] sm:$0xf]
    %v2548 = vld [vmem:[%s2545 + $0x8] sm:$0xf]
    %v2549 = vld [vmem:[%s2545 + $0xc] sm:$0xf]
    %v2550 = vld [vmem:[%s2545 + $0x10] sm:$0xf]
    %v2551 = vld [vmem:[%s2545 + $0x14] sm:$0xf]
    %v2552 = vld [vmem:[%s2545 + $0x18] sm:$0xf]
    %v2553 = vld [vmem:[%s2545 + $0x1c] sm:$0xf]
    %v2554 = vld [vmem:[%s2545 + $0x20] sm:$0xf]
    %v2555 = vld [vmem:[%s2545 + $0x24] sm:$0xf]
    %v2556 = vld [vmem:[%s2545 + $0x28] sm:$0xf]
    %v2557 = vld [vmem:[%s2545 + $0x2c] sm:$0xf]
    %v2558 = vld [vmem:[%s2545 + $0x30] sm:$0xf]
    %v2559 = vld [vmem:[%s2545 + $0x34] sm:$0xf]
    %v2560 = vld [vmem:[%s2545 + $0x38] sm:$0xf]
    %v2561 = vld [vmem:[%s2545 + $0x3c] sm:$0xf]
    %v2562 = vld [vmem:[%s2545 + $0x40] sm:$0xf]
    %v2563 = vld [vmem:[%s2545 + $0x44] sm:$0xf]
    %v2564 = vld [vmem:[%s2545 + $0x48] sm:$0xf]
    %v2565 = vld [vmem:[%s2545 + $0x4c] sm:$0xf]
    %v2566 = vld [vmem:[%s2545 + $0x50] sm:$0xf]
    %v2567 = vld [vmem:[%s2545 + $0x54] sm:$0xf]
    %v2568 = vld [vmem:[%s2545 + $0x58] sm:$0xf]
    %v2569 = vld [vmem:[%s2545 + $0x5c] sm:$0xf]
    %v2572 = vrot.slane %v2518, 1
    %v2573 = vrot.slane %v2519, 1
    %v2599 = vunpack.c.l.b16 %v2546
    %v2600 = vunpack.c.l.b16 %v2547
    %v2601 = vunpack.c.l.b16 %v2548
    %v2602 = vunpack.c.l.b16 %v2549
    %v2603 = vunpack.c.l.b16 %v2550
    %v2604 = vunpack.c.l.b16 %v2551
    %v2605 = vunpack.c.l.b16 %v2552
    %v2606 = vunpack.c.l.b16 %v2553
    %v2607 = vunpack.c.l.b16 %v2554
    %v2608 = vunpack.c.l.b16 %v2555
    %v2609 = vunpack.c.l.b16 %v2556
    %v2610 = vunpack.c.l.b16 %v2557
    %v2611 = vunpack.c.l.b16 %v2558
    %v2612 = vunpack.c.l.b16 %v2559
    %v2613 = vunpack.c.l.b16 %v2560
    %v2614 = vunpack.c.l.b16 %v2561
    %v2615 = vunpack.c.l.b16 %v2562
    %v2616 = vunpack.c.l.b16 %v2563
    %v2617 = vunpack.c.l.b16 %v2564
    %v2618 = vunpack.c.l.b16 %v2565
    %v2619 = vunpack.c.l.b16 %v2566
    %v2620 = vunpack.c.l.b16 %v2567
    %v2621 = vunpack.c.l.b16 %v2568
    %v2622 = vunpack.c.l.b16 %v2569
    %v2623 = vpack.c.b16 %v2600, %v2599
    %v2624 = vpack.c.b16 %v2602, %v2601
    %v2625 = vpack.c.b16 %v2604, %v2603
    %v2626 = vpack.c.b16 %v2606, %v2605
    %v2627 = vpack.c.b16 %v2608, %v2607
    %v2628 = vpack.c.b16 %v2610, %v2609
    %v2629 = vpack.c.b16 %v2612, %v2611
    %v2630 = vpack.c.b16 %v2614, %v2613
    %v2631 = vpack.c.b16 %v2616, %v2615
    %v2632 = vpack.c.b16 %v2618, %v2617
    %v2633 = vpack.c.b16 %v2620, %v2619
    %v2634 = vpack.c.b16 %v2622, %v2621
    %v2648 = vsel %vm2165, %v2573, 0
    %2650 = vmatprep.subr.bf16.mxu0 0
    %2651 = vmatpush1.bf16.msra.mxu0 %v2623
    %2652 = vmatprep.subr.bf16.mxu0 0
    %2653 = vmatpush1.bf16.msra.mxu0 %v2624
    %2654 = vmatprep.subr.bf16.mxu0 0
    %2655 = vmatpush1.bf16.msra.mxu0 %v2625
    %2656 = vmatprep.subr.bf16.mxu0 0
    %2657 = vmatpush1.bf16.msra.mxu0 %v2626
    %2658 = vmatprep.subr.bf16.mxu0 0
    %2659 = vmatpush1.bf16.msra.mxu0 %v2627
    %2660 = vmatprep.subr.bf16.mxu0 0
    %2661 = vmatpush1.bf16.msra.mxu0 %v2628
    %2662 = vmatprep.subr.bf16.mxu0 0
    %2663 = vmatpush1.bf16.msra.mxu0 %v2629
    %2664 = vmatprep.subr.bf16.mxu0 0
    %2665 = vmatpush1.bf16.msra.mxu0 %v2630
    %2666 = vmatprep.subr.bf16.mxu0 0
    %2667 = vmatpush1.bf16.msra.mxu0 %v2631
    %2668 = vmatprep.subr.bf16.mxu0 0
    %2669 = vmatpush1.bf16.msra.mxu0 %v2632
    %2670 = vmatprep.subr.bf16.mxu0 0
    %2671 = vmatpush1.bf16.msra.mxu0 %v2633
    %2672 = vmatprep.subr.bf16.mxu0 0
    %2673 = vmatpush1.bf16.msra.mxu0 %v2634
    %2674 = vmatprep.subr.bf16.mxu0 0
    %2675 = vmatpush1.bf16.msra.mxu0 0
    %2676 = vmatprep.subr.bf16.mxu0 0
    %2677 = vmatpush1.bf16.msra.mxu0 0
    %2678 = vmatprep.subr.bf16.mxu0 0
    %2679 = vmatpush1.bf16.msra.mxu0 0
    %2680 = vmatprep.subr.bf16.mxu0 0
    %2681 = vmatpush1.bf16.msra.mxu0 0
    %2682 = vmatprep.mubr.bf16.mxu0 %v2648
    %2683 = vmatmul.mubr.bf16.gmra.mrb[0].mxu0 %v2572
    %v2684 = vpop.f32.mrb[0].mxu0
    %v2685 = vadd.f32 0.0, %v2684
    %v2686 = vpop.f32.mrb[0].mxu0
    %v2687 = vpop.f32.mrb[0].mxu0
    %v2688 = vpop.f32.mrb[0].mxu0
    %2689 = vdwg.mxu0
    %v2690 = vpack.c.bf16 %v2173, %v2173
    %v2691 = vpack.c.bf16 %v2177, %v2177
    %s2692 = scalar_lea.vmem [#allocation7], 576
    %v2693 = vld [vmem:[%s2692] sm:$0xf]
    %v2694 = vld [vmem:[%s2692 + $0x4] sm:$0xf]
    %v2695 = vld [vmem:[%s2692 + $0x8] sm:$0xf]
    %v2696 = vld [vmem:[%s2692 + $0xc] sm:$0xf]
    %v2697 = vld [vmem:[%s2692 + $0x10] sm:$0xf]
    %v2698 = vld [vmem:[%s2692 + $0x14] sm:$0xf]
    %v2699 = vld [vmem:[%s2692 + $0x18] sm:$0xf]
    %v2700 = vld [vmem:[%s2692 + $0x1c] sm:$0xf]
    %v2701 = vld [vmem:[%s2692 + $0x20] sm:$0xf]
    %v2702 = vld [vmem:[%s2692 + $0x24] sm:$0xf]
    %v2703 = vld [vmem:[%s2692 + $0x28] sm:$0xf]
    %v2704 = vld [vmem:[%s2692 + $0x2c] sm:$0xf]
    %v2705 = vld [vmem:[%s2692 + $0x30] sm:$0xf]
    %v2706 = vld [vmem:[%s2692 + $0x34] sm:$0xf]
    %v2707 = vld [vmem:[%s2692 + $0x38] sm:$0xf]
    %v2708 = vld [vmem:[%s2692 + $0x3c] sm:$0xf]
    %v2709 = vld [vmem:[%s2692 + $0x40] sm:$0xf]
    %v2710 = vld [vmem:[%s2692 + $0x44] sm:$0xf]
    %v2711 = vld [vmem:[%s2692 + $0x48] sm:$0xf]
    %v2712 = vld [vmem:[%s2692 + $0x4c] sm:$0xf]
    %v2713 = vld [vmem:[%s2692 + $0x50] sm:$0xf]
    %v2714 = vld [vmem:[%s2692 + $0x54] sm:$0xf]
    %v2715 = vld [vmem:[%s2692 + $0x58] sm:$0xf]
    %v2716 = vld [vmem:[%s2692 + $0x5c] sm:$0xf]
    %s2717 = scalar_lea.vmem [#allocation7], 672
    %v2718 = vld [vmem:[%s2717] sm:$0xf]
    %v2719 = vld [vmem:[%s2717 + $0x4] sm:$0xf]
    %v2720 = vld [vmem:[%s2717 + $0x8] sm:$0xf]
    %v2721 = vld [vmem:[%s2717 + $0xc] sm:$0xf]
    %v2722 = vld [vmem:[%s2717 + $0x10] sm:$0xf]
    %v2723 = vld [vmem:[%s2717 + $0x14] sm:$0xf]
    %v2724 = vld [vmem:[%s2717 + $0x18] sm:$0xf]
    %v2725 = vld [vmem:[%s2717 + $0x1c] sm:$0xf]
    %v2726 = vld [vmem:[%s2717 + $0x20] sm:$0xf]
    %v2727 = vld [vmem:[%s2717 + $0x24] sm:$0xf]
    %v2728 = vld [vmem:[%s2717 + $0x28] sm:$0xf]
    %v2729 = vld [vmem:[%s2717 + $0x2c] sm:$0xf]
    %v2730 = vld [vmem:[%s2717 + $0x30] sm:$0xf]
    %v2731 = vld [vmem:[%s2717 + $0x34] sm:$0xf]
    %v2732 = vld [vmem:[%s2717 + $0x38] sm:$0xf]
    %v2733 = vld [vmem:[%s2717 + $0x3c] sm:$0xf]
    %v2734 = vld [vmem:[%s2717 + $0x40] sm:$0xf]
    %v2735 = vld [vmem:[%s2717 + $0x44] sm:$0xf]
    %v2736 = vld [vmem:[%s2717 + $0x48] sm:$0xf]
    %v2737 = vld [vmem:[%s2717 + $0x4c] sm:$0xf]
    %v2738 = vld [vmem:[%s2717 + $0x50] sm:$0xf]
    %v2739 = vld [vmem:[%s2717 + $0x54] sm:$0xf]
    %v2740 = vld [vmem:[%s2717 + $0x58] sm:$0xf]
    %v2741 = vld [vmem:[%s2717 + $0x5c] sm:$0xf]
    %v2744 = vrot.slane %v2690, 1
    %v2745 = vrot.slane %v2691, 1
    %v2771 = vunpack.c.l.b16 %v2718
    %v2772 = vunpack.c.l.b16 %v2719
    %v2773 = vunpack.c.l.b16 %v2720
    %v2774 = vunpack.c.l.b16 %v2721
    %v2775 = vunpack.c.l.b16 %v2722
    %v2776 = vunpack.c.l.b16 %v2723
    %v2777 = vunpack.c.l.b16 %v2724
    %v2778 = vunpack.c.l.b16 %v2725
    %v2779 = vunpack.c.l.b16 %v2726
    %v2780 = vunpack.c.l.b16 %v2727
    %v2781 = vunpack.c.l.b16 %v2728
    %v2782 = vunpack.c.l.b16 %v2729
    %v2783 = vunpack.c.l.b16 %v2730
    %v2784 = vunpack.c.l.b16 %v2731
    %v2785 = vunpack.c.l.b16 %v2732
    %v2786 = vunpack.c.l.b16 %v2733
    %v2787 = vunpack.c.l.b16 %v2734
    %v2788 = vunpack.c.l.b16 %v2735
    %v2789 = vunpack.c.l.b16 %v2736
    %v2790 = vunpack.c.l.b16 %v2737
    %v2791 = vunpack.c.l.b16 %v2738
    %v2792 = vunpack.c.l.b16 %v2739
    %v2793 = vunpack.c.l.b16 %v2740
    %v2794 = vunpack.c.l.b16 %v2741
    %v2795 = vpack.c.b16 %v2772, %v2771
    %v2796 = vpack.c.b16 %v2774, %v2773
    %v2797 = vpack.c.b16 %v2776, %v2775
    %v2798 = vpack.c.b16 %v2778, %v2777
    %v2799 = vpack.c.b16 %v2780, %v2779
    %v2800 = vpack.c.b16 %v2782, %v2781
    %v2801 = vpack.c.b16 %v2784, %v2783
    %v2802 = vpack.c.b16 %v2786, %v2785
    %v2803 = vpack.c.b16 %v2788, %v2787
    %v2804 = vpack.c.b16 %v2790, %v2789
    %v2805 = vpack.c.b16 %v2792, %v2791
    %v2806 = vpack.c.b16 %v2794, %v2793
    %v2820 = vsel %vm2165, %v2745, 0
    %2822 = vmatprep.subr.bf16.mxu0 0
    %2823 = vmatpush1.bf16.msra.mxu0 %v2795
    %2824 = vmatprep.subr.bf16.mxu0 0
    %2825 = vmatpush1.bf16.msra.mxu0 %v2796
    %2826 = vmatprep.subr.bf16.mxu0 0
    %2827 = vmatpush1.bf16.msra.mxu0 %v2797
    %2828 = vmatprep.subr.bf16.mxu0 0
    %2829 = vmatpush1.bf16.msra.mxu0 %v2798
    %2830 = vmatprep.subr.bf16.mxu0 0
    %2831 = vmatpush1.bf16.msra.mxu0 %v2799
    %2832 = vmatprep.subr.bf16.mxu0 0
    %2833 = vmatpush1.bf16.msra.mxu0 %v2800
    %2834 = vmatprep.subr.bf16.mxu0 0
    %2835 = vmatpush1.bf16.msra.mxu0 %v2801
    %2836 = vmatprep.subr.bf16.mxu0 0
    %2837 = vmatpush1.bf16.msra.mxu0 %v2802
    %2838 = vmatprep.subr.bf16.mxu0 0
    %2839 = vmatpush1.bf16.msra.mxu0 %v2803
    %2840 = vmatprep.subr.bf16.mxu0 0
    %2841 = vmatpush1.bf16.msra.mxu0 %v2804
    %2842 = vmatprep.subr.bf16.mxu0 0
    %2843 = vmatpush1.bf16.msra.mxu0 %v2805
    %2844 = vmatprep.subr.bf16.mxu0 0
    %2845 = vmatpush1.bf16.msra.mxu0 %v2806
    %2846 = vmatprep.subr.bf16.mxu0 0
    %2847 = vmatpush1.bf16.msra.mxu0 0
    %2848 = vmatprep.subr.bf16.mxu0 0
    %2849 = vmatpush1.bf16.msra.mxu0 0
    %2850 = vmatprep.subr.bf16.mxu0 0
    %2851 = vmatpush1.bf16.msra.mxu0 0
    %2852 = vmatprep.subr.bf16.mxu0 0
    %2853 = vmatpush1.bf16.msra.mxu0 0
    %2854 = vmatprep.mubr.bf16.mxu0 %v2820
    %2855 = vmatmul.mubr.bf16.gmra.mrb[0].mxu0 %v2744
    %v2856 = vpop.f32.mrb[0].mxu0
    %v2857 = vadd.f32 0.0, %v2856
    %v2858 = vpop.f32.mrb[0].mxu0
    %v2859 = vpop.f32.mrb[0].mxu0
    %v2860 = vpop.f32.mrb[0].mxu0
    %2861 = vdwg.mxu0
    %s2862 = scalar_lea.vmem [#allocation7], 768
    %v2863 = vld [vmem:[%s2862] sm:$0xf]
    %v2864 = vld [vmem:[%s2862 + $0x4] sm:$0xf]
    %v2865 = vld [vmem:[%s2862 + $0x8] sm:$0xf]
    %v2866 = vld [vmem:[%s2862 + $0xc] sm:$0xf]
    %v2867 = vld [vmem:[%s2862 + $0x10] sm:$0xf]
    %v2868 = vld [vmem:[%s2862 + $0x14] sm:$0xf]
    %v2869 = vld [vmem:[%s2862 + $0x18] sm:$0xf]
    %v2870 = vld [vmem:[%s2862 + $0x1c] sm:$0xf]
    %v2871 = vld [vmem:[%s2862 + $0x20] sm:$0xf]
    %v2872 = vld [vmem:[%s2862 + $0x24] sm:$0xf]
    %v2873 = vld [vmem:[%s2862 + $0x28] sm:$0xf]
    %v2874 = vld [vmem:[%s2862 + $0x2c] sm:$0xf]
    %v2875 = vld [vmem:[%s2862 + $0x30] sm:$0xf]
    %v2876 = vld [vmem:[%s2862 + $0x34] sm:$0xf]
    %v2877 = vld [vmem:[%s2862 + $0x38] sm:$0xf]
    %v2878 = vld [vmem:[%s2862 + $0x3c] sm:$0xf]
    %v2879 = vld [vmem:[%s2862 + $0x40] sm:$0xf]
    %v2880 = vld [vmem:[%s2862 + $0x44] sm:$0xf]
    %v2881 = vld [vmem:[%s2862 + $0x48] sm:$0xf]
    %v2882 = vld [vmem:[%s2862 + $0x4c] sm:$0xf]
    %v2883 = vld [vmem:[%s2862 + $0x50] sm:$0xf]
    %v2884 = vld [vmem:[%s2862 + $0x54] sm:$0xf]
    %v2885 = vld [vmem:[%s2862 + $0x58] sm:$0xf]
    %v2886 = vld [vmem:[%s2862 + $0x5c] sm:$0xf]
    %s2887 = scalar_lea.vmem [#allocation7], 864
    %v2888 = vld [vmem:[%s2887] sm:$0xf]
    %v2889 = vld [vmem:[%s2887 + $0x4] sm:$0xf]
    %v2890 = vld [vmem:[%s2887 + $0x8] sm:$0xf]
    %v2891 = vld [vmem:[%s2887 + $0xc] sm:$0xf]
    %v2892 = vld [vmem:[%s2887 + $0x10] sm:$0xf]
    %v2893 = vld [vmem:[%s2887 + $0x14] sm:$0xf]
    %v2894 = vld [vmem:[%s2887 + $0x18] sm:$0xf]
    %v2895 = vld [vmem:[%s2887 + $0x1c] sm:$0xf]
    %v2896 = vld [vmem:[%s2887 + $0x20] sm:$0xf]
    %v2897 = vld [vmem:[%s2887 + $0x24] sm:$0xf]
    %v2898 = vld [vmem:[%s2887 + $0x28] sm:$0xf]
    %v2899 = vld [vmem:[%s2887 + $0x2c] sm:$0xf]
    %v2900 = vld [vmem:[%s2887 + $0x30] sm:$0xf]
    %v2901 = vld [vmem:[%s2887 + $0x34] sm:$0xf]
    %v2902 = vld [vmem:[%s2887 + $0x38] sm:$0xf]
    %v2903 = vld [vmem:[%s2887 + $0x3c] sm:$0xf]
    %v2904 = vld [vmem:[%s2887 + $0x40] sm:$0xf]
    %v2905 = vld [vmem:[%s2887 + $0x44] sm:$0xf]
    %v2906 = vld [vmem:[%s2887 + $0x48] sm:$0xf]
    %v2907 = vld [vmem:[%s2887 + $0x4c] sm:$0xf]
    %v2908 = vld [vmem:[%s2887 + $0x50] sm:$0xf]
    %v2909 = vld [vmem:[%s2887 + $0x54] sm:$0xf]
    %v2910 = vld [vmem:[%s2887 + $0x58] sm:$0xf]
    %v2911 = vld [vmem:[%s2887 + $0x5c] sm:$0xf]
    %v2912 = vrot.slane %v2690, 3
    %v2913 = vrot.slane %v2691, 3
    %v2939 = vunpack.c.l.b16 %v2888
    %v2940 = vunpack.c.l.b16 %v2889
    %v2941 = vunpack.c.l.b16 %v2890
    %v2942 = vunpack.c.l.b16 %v2891
    %v2943 = vunpack.c.l.b16 %v2892
    %v2944 = vunpack.c.l.b16 %v2893
    %v2945 = vunpack.c.l.b16 %v2894
    %v2946 = vunpack.c.l.b16 %v2895
    %v2947 = vunpack.c.l.b16 %v2896
    %v2948 = vunpack.c.l.b16 %v2897
    %v2949 = vunpack.c.l.b16 %v2898
    %v2950 = vunpack.c.l.b16 %v2899
    %v2951 = vunpack.c.l.b16 %v2900
    %v2952 = vunpack.c.l.b16 %v2901
    %v2953 = vunpack.c.l.b16 %v2902
    %v2954 = vunpack.c.l.b16 %v2903
    %v2955 = vunpack.c.l.b16 %v2904
    %v2956 = vunpack.c.l.b16 %v2905
    %v2957 = vunpack.c.l.b16 %v2906
    %v2958 = vunpack.c.l.b16 %v2907
    %v2959 = vunpack.c.l.b16 %v2908
    %v2960 = vunpack.c.l.b16 %v2909
    %v2961 = vunpack.c.l.b16 %v2910
    %v2962 = vunpack.c.l.b16 %v2911
    %v2963 = vpack.c.b16 %v2940, %v2939
    %v2964 = vpack.c.b16 %v2942, %v2941
    %v2965 = vpack.c.b16 %v2944, %v2943
    %v2966 = vpack.c.b16 %v2946, %v2945
    %v2967 = vpack.c.b16 %v2948, %v2947
    %v2968 = vpack.c.b16 %v2950, %v2949
    %v2969 = vpack.c.b16 %v2952, %v2951
    %v2970 = vpack.c.b16 %v2954, %v2953
    %v2971 = vpack.c.b16 %v2956, %v2955
    %v2972 = vpack.c.b16 %v2958, %v2957
    %v2973 = vpack.c.b16 %v2960, %v2959
    %v2974 = vpack.c.b16 %v2962, %v2961
    %v2988 = vsel %vm2165, %v2913, 0
    %2990 = vmatprep.subr.bf16.mxu0 0
    %2991 = vmatpush1.bf16.msra.mxu0 %v2963
    %2992 = vmatprep.subr.bf16.mxu0 0
    %2993 = vmatpush1.bf16.msra.mxu0 %v2964
    %2994 = vmatprep.subr.bf16.mxu0 0
    %2995 = vmatpush1.bf16.msra.mxu0 %v2965
    %2996 = vmatprep.subr.bf16.mxu0 0
    %2997 = vmatpush1.bf16.msra.mxu0 %v2966
    %2998 = vmatprep.subr.bf16.mxu0 0
    %2999 = vmatpush1.bf16.msra.mxu0 %v2967
    %3000 = vmatprep.subr.bf16.mxu0 0
    %3001 = vmatpush1.bf16.msra.mxu0 %v2968
    %3002 = vmatprep.subr.bf16.mxu0 0
    %3003 = vmatpush1.bf16.msra.mxu0 %v2969
    %3004 = vmatprep.subr.bf16.mxu0 0
    %3005 = vmatpush1.bf16.msra.mxu0 %v2970
    %3006 = vmatprep.subr.bf16.mxu0 0
    %3007 = vmatpush1.bf16.msra.mxu0 %v2971
    %3008 = vmatprep.subr.bf16.mxu0 0
    %3009 = vmatpush1.bf16.msra.mxu0 %v2972
    %3010 = vmatprep.subr.bf16.mxu0 0
    %3011 = vmatpush1.bf16.msra.mxu0 %v2973
    %3012 = vmatprep.subr.bf16.mxu0 0
    %3013 = vmatpush1.bf16.msra.mxu0 %v2974
    %3014 = vmatprep.subr.bf16.mxu0 0
    %3015 = vmatpush1.bf16.msra.mxu0 0
    %3016 = vmatprep.subr.bf16.mxu0 0
    %3017 = vmatpush1.bf16.msra.mxu0 0
    %3018 = vmatprep.subr.bf16.mxu0 0
    %3019 = vmatpush1.bf16.msra.mxu0 0
    %3020 = vmatprep.subr.bf16.mxu0 0
    %3021 = vmatpush1.bf16.msra.mxu0 0
    %3022 = vmatprep.mubr.bf16.mxu0 %v2988
    %3023 = vmatmul.mubr.bf16.gmra.mrb[0].mxu0 %v2912
    %v3024 = vpop.f32.mrb[0].mxu0
    %v3025 = vadd.f32 0.0, %v3024
    %v3026 = vpop.f32.mrb[0].mxu0
    %v3027 = vpop.f32.mrb[0].mxu0
    %v3028 = vpop.f32.mrb[0].mxu0
    %3029 = vdwg.mxu0
    %v3030 = vpack.c.bf16 %v2174, %v2174
    %v3031 = vpack.c.bf16 %v2178, %v2178
    %s3032 = scalar_lea.vmem [#allocation7], 960
    %v3033 = vld [vmem:[%s3032] sm:$0xf]
    %v3034 = vld [vmem:[%s3032 + $0x4] sm:$0xf]
    %v3035 = vld [vmem:[%s3032 + $0x8] sm:$0xf]
    %v3036 = vld [vmem:[%s3032 + $0xc] sm:$0xf]
    %v3037 = vld [vmem:[%s3032 + $0x10] sm:$0xf]
    %v3038 = vld [vmem:[%s3032 + $0x14] sm:$0xf]
    %v3039 = vld [vmem:[%s3032 + $0x18] sm:$0xf]
    %v3040 = vld [vmem:[%s3032 + $0x1c] sm:$0xf]
    %v3041 = vld [vmem:[%s3032 + $0x20] sm:$0xf]
    %v3042 = vld [vmem:[%s3032 + $0x24] sm:$0xf]
    %v3043 = vld [vmem:[%s3032 + $0x28] sm:$0xf]
    %v3044 = vld [vmem:[%s3032 + $0x2c] sm:$0xf]
    %v3045 = vld [vmem:[%s3032 + $0x30] sm:$0xf]
    %v3046 = vld [vmem:[%s3032 + $0x34] sm:$0xf]
    %v3047 = vld [vmem:[%s3032 + $0x38] sm:$0xf]
    %v3048 = vld [vmem:[%s3032 + $0x3c] sm:$0xf]
    %v3049 = vld [vmem:[%s3032 + $0x40] sm:$0xf]
    %v3050 = vld [vmem:[%s3032 + $0x44] sm:$0xf]
    %v3051 = vld [vmem:[%s3032 + $0x48] sm:$0xf]
    %v3052 = vld [vmem:[%s3032 + $0x4c] sm:$0xf]
    %v3053 = vld [vmem:[%s3032 + $0x50] sm:$0xf]
    %v3054 = vld [vmem:[%s3032 + $0x54] sm:$0xf]
    %v3055 = vld [vmem:[%s3032 + $0x58] sm:$0xf]
    %v3056 = vld [vmem:[%s3032 + $0x5c] sm:$0xf]
    %s3057 = scalar_lea.vmem [#allocation7], 1056
    %v3058 = vld [vmem:[%s3057] sm:$0xf]
    %v3059 = vld [vmem:[%s3057 + $0x4] sm:$0xf]
    %v3060 = vld [vmem:[%s3057 + $0x8] sm:$0xf]
    %v3061 = vld [vmem:[%s3057 + $0xc] sm:$0xf]
    %v3062 = vld [vmem:[%s3057 + $0x10] sm:$0xf]
    %v3063 = vld [vmem:[%s3057 + $0x14] sm:$0xf]
    %v3064 = vld [vmem:[%s3057 + $0x18] sm:$0xf]
    %v3065 = vld [vmem:[%s3057 + $0x1c] sm:$0xf]
    %v3066 = vld [vmem:[%s3057 + $0x20] sm:$0xf]
    %v3067 = vld [vmem:[%s3057 + $0x24] sm:$0xf]
    %v3068 = vld [vmem:[%s3057 + $0x28] sm:$0xf]
    %v3069 = vld [vmem:[%s3057 + $0x2c] sm:$0xf]
    %v3070 = vld [vmem:[%s3057 + $0x30] sm:$0xf]
    %v3071 = vld [vmem:[%s3057 + $0x34] sm:$0xf]
    %v3072 = vld [vmem:[%s3057 + $0x38] sm:$0xf]
    %v3073 = vld [vmem:[%s3057 + $0x3c] sm:$0xf]
    %v3074 = vld [vmem:[%s3057 + $0x40] sm:$0xf]
    %v3075 = vld [vmem:[%s3057 + $0x44] sm:$0xf]
    %v3076 = vld [vmem:[%s3057 + $0x48] sm:$0xf]
    %v3077 = vld [vmem:[%s3057 + $0x4c] sm:$0xf]
    %v3078 = vld [vmem:[%s3057 + $0x50] sm:$0xf]
    %v3079 = vld [vmem:[%s3057 + $0x54] sm:$0xf]
    %v3080 = vld [vmem:[%s3057 + $0x58] sm:$0xf]
    %v3081 = vld [vmem:[%s3057 + $0x5c] sm:$0xf]
    %v3084 = vrot.slane %v3030, 1
    %v3085 = vrot.slane %v3031, 1
    %v3111 = vunpack.c.l.b16 %v3058
    %v3112 = vunpack.c.l.b16 %v3059
    %v3113 = vunpack.c.l.b16 %v3060
    %v3114 = vunpack.c.l.b16 %v3061
    %v3115 = vunpack.c.l.b16 %v3062
    %v3116 = vunpack.c.l.b16 %v3063
    %v3117 = vunpack.c.l.b16 %v3064
    %v3118 = vunpack.c.l.b16 %v3065
    %v3119 = vunpack.c.l.b16 %v3066
    %v3120 = vunpack.c.l.b16 %v3067
    %v3121 = vunpack.c.l.b16 %v3068
    %v3122 = vunpack.c.l.b16 %v3069
    %v3123 = vunpack.c.l.b16 %v3070
    %v3124 = vunpack.c.l.b16 %v3071
    %v3125 = vunpack.c.l.b16 %v3072
    %v3126 = vunpack.c.l.b16 %v3073
    %v3127 = vunpack.c.l.b16 %v3074
    %v3128 = vunpack.c.l.b16 %v3075
    %v3129 = vunpack.c.l.b16 %v3076
    %v3130 = vunpack.c.l.b16 %v3077
    %v3131 = vunpack.c.l.b16 %v3078
    %v3132 = vunpack.c.l.b16 %v3079
    %v3133 = vunpack.c.l.b16 %v3080
    %v3134 = vunpack.c.l.b16 %v3081
    %v3135 = vpack.c.b16 %v3112, %v3111
    %v3136 = vpack.c.b16 %v3114, %v3113
    %v3137 = vpack.c.b16 %v3116, %v3115
    %v3138 = vpack.c.b16 %v3118, %v3117
    %v3139 = vpack.c.b16 %v3120, %v3119
    %v3140 = vpack.c.b16 %v3122, %v3121
    %v3141 = vpack.c.b16 %v3124, %v3123
    %v3142 = vpack.c.b16 %v3126, %v3125
    %v3143 = vpack.c.b16 %v3128, %v3127
    %v3144 = vpack.c.b16 %v3130, %v3129
    %v3145 = vpack.c.b16 %v3132, %v3131
    %v3146 = vpack.c.b16 %v3134, %v3133
    %v3160 = vsel %vm2165, %v3085, 0
    %3162 = vmatprep.subr.bf16.mxu0 0
    %3163 = vmatpush1.bf16.msra.mxu0 %v3135
    %3164 = vmatprep.subr.bf16.mxu0 0
    %3165 = vmatpush1.bf16.msra.mxu0 %v3136
    %3166 = vmatprep.subr.bf16.mxu0 0
    %3167 = vmatpush1.bf16.msra.mxu0 %v3137
    %3168 = vmatprep.subr.bf16.mxu0 0
    %3169 = vmatpush1.bf16.msra.mxu0 %v3138
    %3170 = vmatprep.subr.bf16.mxu0 0
    %3171 = vmatpush1.bf16.msra.mxu0 %v3139
    %3172 = vmatprep.subr.bf16.mxu0 0
    %3173 = vmatpush1.bf16.msra.mxu0 %v3140
    %3174 = vmatprep.subr.bf16.mxu0 0
    %3175 = vmatpush1.bf16.msra.mxu0 %v3141
    %3176 = vmatprep.subr.bf16.mxu0 0
    %3177 = vmatpush1.bf16.msra.mxu0 %v3142
    %3178 = vmatprep.subr.bf16.mxu0 0
    %3179 = vmatpush1.bf16.msra.mxu0 %v3143
    %3180 = vmatprep.subr.bf16.mxu0 0
    %3181 = vmatpush1.bf16.msra.mxu0 %v3144
    %3182 = vmatprep.subr.bf16.mxu0 0
    %3183 = vmatpush1.bf16.msra.mxu0 %v3145
    %3184 = vmatprep.subr.bf16.mxu0 0
    %3185 = vmatpush1.bf16.msra.mxu0 %v3146
    %3186 = vmatprep.subr.bf16.mxu0 0
    %3187 = vmatpush1.bf16.msra.mxu0 0
    %3188 = vmatprep.subr.bf16.mxu0 0
    %3189 = vmatpush1.bf16.msra.mxu0 0
    %3190 = vmatprep.subr.bf16.mxu0 0
    %3191 = vmatpush1.bf16.msra.mxu0 0
    %3192 = vmatprep.subr.bf16.mxu0 0
    %3193 = vmatpush1.bf16.msra.mxu0 0
    %3194 = vmatprep.mubr.bf16.mxu0 %v3160
    %3195 = vmatmul.mubr.bf16.gmra.mrb[0].mxu0 %v3084
    %v3196 = vpop.f32.mrb[0].mxu0
    %v3197 = vadd.f32 0.0, %v3196
    %v3198 = vpop.f32.mrb[0].mxu0
    %v3199 = vpop.f32.mrb[0].mxu0
    %v3200 = vpop.f32.mrb[0].mxu0
    %3201 = vdwg.mxu0
    %v3226 = vunpack.c.l.b16 %v2181
    %v3227 = vunpack.c.l.b16 %v2182
    %v3228 = vunpack.c.l.b16 %v2183
    %v3229 = vunpack.c.l.b16 %v2184
    %v3230 = vunpack.c.l.b16 %v2185
    %v3231 = vunpack.c.l.b16 %v2186
    %v3232 = vunpack.c.l.b16 %v2187
    %v3233 = vunpack.c.l.b16 %v2188
    %v3234 = vunpack.c.l.b16 %v2189
    %v3235 = vunpack.c.l.b16 %v2190
    %v3236 = vunpack.c.l.b16 %v2191
    %v3237 = vunpack.c.l.b16 %v2192
    %v3238 = vunpack.c.l.b16 %v2193
    %v3239 = vunpack.c.l.b16 %v2194
    %v3240 = vunpack.c.l.b16 %v2195
    %v3241 = vunpack.c.l.b16 %v2196
    %v3242 = vunpack.c.l.b16 %v2197
    %v3243 = vunpack.c.l.b16 %v2198
    %v3244 = vunpack.c.l.b16 %v2199
    %v3245 = vunpack.c.l.b16 %v2200
    %v3246 = vunpack.c.l.b16 %v2201
    %v3247 = vunpack.c.l.b16 %v2202
    %v3248 = vunpack.c.l.b16 %v2203
    %v3249 = vunpack.c.l.b16 %v2204
    %v3250 = vpack.c.b16 %v3227, %v3226
    %v3251 = vpack.c.b16 %v3229, %v3228
    %v3252 = vpack.c.b16 %v3231, %v3230
    %v3253 = vpack.c.b16 %v3233, %v3232
    %v3254 = vpack.c.b16 %v3235, %v3234
    %v3255 = vpack.c.b16 %v3237, %v3236
    %v3256 = vpack.c.b16 %v3239, %v3238
    %v3257 = vpack.c.b16 %v3241, %v3240
    %v3258 = vpack.c.b16 %v3243, %v3242
    %v3259 = vpack.c.b16 %v3245, %v3244
    %v3260 = vpack.c.b16 %v3247, %v3246
    %v3261 = vpack.c.b16 %v3249, %v3248
    %v3275 = vsel %vm2165, %v2180, 0
    %3277 = vmatprep.subr.bf16.mxu0 0
    %3278 = vmatpush1.bf16.msra.mxu0 %v3250
    %3279 = vmatprep.subr.bf16.mxu0 0
    %3280 = vmatpush1.bf16.msra.mxu0 %v3251
    %3281 = vmatprep.subr.bf16.mxu0 0
    %3282 = vmatpush1.bf16.msra.mxu0 %v3252
    %3283 = vmatprep.subr.bf16.mxu0 0
    %3284 = vmatpush1.bf16.msra.mxu0 %v3253
    %3285 = vmatprep.subr.bf16.mxu0 0
    %3286 = vmatpush1.bf16.msra.mxu0 %v3254
    %3287 = vmatprep.subr.bf16.mxu0 0
    %3288 = vmatpush1.bf16.msra.mxu0 %v3255
    %3289 = vmatprep.subr.bf16.mxu0 0
    %3290 = vmatpush1.bf16.msra.mxu0 %v3256
    %3291 = vmatprep.subr.bf16.mxu0 0
    %3292 = vmatpush1.bf16.msra.mxu0 %v3257
    %3293 = vmatprep.subr.bf16.mxu0 0
    %3294 = vmatpush1.bf16.msra.mxu0 %v3258
    %3295 = vmatprep.subr.bf16.mxu0 0
    %3296 = vmatpush1.bf16.msra.mxu0 %v3259
    %3297 = vmatprep.subr.bf16.mxu0 0
    %3298 = vmatpush1.bf16.msra.mxu0 %v3260
    %3299 = vmatprep.subr.bf16.mxu0 0
    %3300 = vmatpush1.bf16.msra.mxu0 %v3261
    %3301 = vmatprep.subr.bf16.mxu0 0
    %3302 = vmatpush1.bf16.msra.mxu0 0
    %3303 = vmatprep.subr.bf16.mxu0 0
    %3304 = vmatpush1.bf16.msra.mxu0 0
    %3305 = vmatprep.subr.bf16.mxu0 0
    %3306 = vmatpush1.bf16.msra.mxu0 0
    %3307 = vmatprep.subr.bf16.mxu0 0
    %3308 = vmatpush1.bf16.msra.mxu0 0
    %3309 = vmatprep.mubr.bf16.mxu0 %v3275
    %3310 = vmatmul.mubr.bf16.gmra.mrb[0].mxu0 %v2179
    %v3311 = vpop.f32.mrb[0].mxu0
    %v3312 = vadd.f32 %v2345, %v3311
    %v3313 = vpop.f32.mrb[0].mxu0
    %v3314 = vpop.f32.mrb[0].mxu0
    %v3315 = vpop.f32.mrb[0].mxu0
    %3316 = vdwg.mxu0
    %v3317 = vrot.slane %v2179, 2
    %v3318 = vrot.slane %v2180, 2
    %v3344 = vunpack.c.l.b16 %v2351
    %v3345 = vunpack.c.l.b16 %v2352
    %v3346 = vunpack.c.l.b16 %v2353
    %v3347 = vunpack.c.l.b16 %v2354
    %v3348 = vunpack.c.l.b16 %v2355
    %v3349 = vunpack.c.l.b16 %v2356
    %v3350 = vunpack.c.l.b16 %v2357
    %v3351 = vunpack.c.l.b16 %v2358
    %v3352 = vunpack.c.l.b16 %v2359
    %v3353 = vunpack.c.l.b16 %v2360
    %v3354 = vunpack.c.l.b16 %v2361
    %v3355 = vunpack.c.l.b16 %v2362
    %v3356 = vunpack.c.l.b16 %v2363
    %v3357 = vunpack.c.l.b16 %v2364
    %v3358 = vunpack.c.l.b16 %v2365
    %v3359 = vunpack.c.l.b16 %v2366
    %v3360 = vunpack.c.l.b16 %v2367
    %v3361 = vunpack.c.l.b16 %v2368
    %v3362 = vunpack.c.l.b16 %v2369
    %v3363 = vunpack.c.l.b16 %v2370
    %v3364 = vunpack.c.l.b16 %v2371
    %v3365 = vunpack.c.l.b16 %v2372
    %v3366 = vunpack.c.l.b16 %v2373
    %v3367 = vunpack.c.l.b16 %v2374
    %v3368 = vpack.c.b16 %v3345, %v3344
    %v3369 = vpack.c.b16 %v3347, %v3346
    %v3370 = vpack.c.b16 %v3349, %v3348
    %v3371 = vpack.c.b16 %v3351, %v3350
    %v3372 = vpack.c.b16 %v3353, %v3352
    %v3373 = vpack.c.b16 %v3355, %v3354
    %v3374 = vpack.c.b16 %v3357, %v3356
    %v3375 = vpack.c.b16 %v3359, %v3358
    %v3376 = vpack.c.b16 %v3361, %v3360
    %v3377 = vpack.c.b16 %v3363, %v3362
    %v3378 = vpack.c.b16 %v3365, %v3364
    %v3379 = vpack.c.b16 %v3367, %v3366
    %v3393 = vsel %vm2165, %v3318, 0
    %3395 = vmatprep.subr.bf16.mxu0 0
    %3396 = vmatpush1.bf16.msra.mxu0 %v3368
    %3397 = vmatprep.subr.bf16.mxu0 0
    %3398 = vmatpush1.bf16.msra.mxu0 %v3369
    %3399 = vmatprep.subr.bf16.mxu0 0
    %3400 = vmatpush1.bf16.msra.mxu0 %v3370
    %3401 = vmatprep.subr.bf16.mxu0 0
    %3402 = vmatpush1.bf16.msra.mxu0 %v3371
    %3403 = vmatprep.subr.bf16.mxu0 0
    %3404 = vmatpush1.bf16.msra.mxu0 %v3372
    %3405 = vmatprep.subr.bf16.mxu0 0
    %3406 = vmatpush1.bf16.msra.mxu0 %v3373
    %3407 = vmatprep.subr.bf16.mxu0 0
    %3408 = vmatpush1.bf16.msra.mxu0 %v3374
    %3409 = vmatprep.subr.bf16.mxu0 0
    %3410 = vmatpush1.bf16.msra.mxu0 %v3375
    %3411 = vmatprep.subr.bf16.mxu0 0
    %3412 = vmatpush1.bf16.msra.mxu0 %v3376
    %3413 = vmatprep.subr.bf16.mxu0 0
    %3414 = vmatpush1.bf16.msra.mxu0 %v3377
    %3415 = vmatprep.subr.bf16.mxu0 0
    %3416 = vmatpush1.bf16.msra.mxu0 %v3378
    %3417 = vmatprep.subr.bf16.mxu0 0
    %3418 = vmatpush1.bf16.msra.mxu0 %v3379
    %3419 = vmatprep.subr.bf16.mxu0 0
    %3420 = vmatpush1.bf16.msra.mxu0 0
    %3421 = vmatprep.subr.bf16.mxu0 0
    %3422 = vmatpush1.bf16.msra.mxu0 0
    %3423 = vmatprep.subr.bf16.mxu0 0
    %3424 = vmatpush1.bf16.msra.mxu0 0
    %3425 = vmatprep.subr.bf16.mxu0 0
    %3426 = vmatpush1.bf16.msra.mxu0 0
    %3427 = vmatprep.mubr.bf16.mxu0 %v3393
    %3428 = vmatmul.mubr.bf16.gmra.mrb[0].mxu0 %v3317
    %v3429 = vpop.f32.mrb[0].mxu0
    %v3430 = vadd.f32 %v2513, %v3429
    %v3431 = vpop.f32.mrb[0].mxu0
    %v3432 = vpop.f32.mrb[0].mxu0
    %v3433 = vpop.f32.mrb[0].mxu0
    %3434 = vdwg.mxu0
    %v3459 = vunpack.c.l.b16 %v2521
    %v3460 = vunpack.c.l.b16 %v2522
    %v3461 = vunpack.c.l.b16 %v2523
    %v3462 = vunpack.c.l.b16 %v2524
    %v3463 = vunpack.c.l.b16 %v2525
    %v3464 = vunpack.c.l.b16 %v2526
    %v3465 = vunpack.c.l.b16 %v2527
    %v3466 = vunpack.c.l.b16 %v2528
    %v3467 = vunpack.c.l.b16 %v2529
    %v3468 = vunpack.c.l.b16 %v2530
    %v3469 = vunpack.c.l.b16 %v2531
    %v3470 = vunpack.c.l.b16 %v2532
    %v3471 = vunpack.c.l.b16 %v2533
    %v3472 = vunpack.c.l.b16 %v2534
    %v3473 = vunpack.c.l.b16 %v2535
    %v3474 = vunpack.c.l.b16 %v2536
    %v3475 = vunpack.c.l.b16 %v2537
    %v3476 = vunpack.c.l.b16 %v2538
    %v3477 = vunpack.c.l.b16 %v2539
    %v3478 = vunpack.c.l.b16 %v2540
    %v3479 = vunpack.c.l.b16 %v2541
    %v3480 = vunpack.c.l.b16 %v2542
    %v3481 = vunpack.c.l.b16 %v2543
    %v3482 = vunpack.c.l.b16 %v2544
    %v3483 = vpack.c.b16 %v3460, %v3459
    %v3484 = vpack.c.b16 %v3462, %v3461
    %v3485 = vpack.c.b16 %v3464, %v3463
    %v3486 = vpack.c.b16 %v3466, %v3465
    %v3487 = vpack.c.b16 %v3468, %v3467
    %v3488 = vpack.c.b16 %v3470, %v3469
    %v3489 = vpack.c.b16 %v3472, %v3471
    %v3490 = vpack.c.b16 %v3474, %v3473
    %v3491 = vpack.c.b16 %v3476, %v3475
    %v3492 = vpack.c.b16 %v3478, %v3477
    %v3493 = vpack.c.b16 %v3480, %v3479
    %v3494 = vpack.c.b16 %v3482, %v3481
    %v3508 = vsel %vm2165, %v2519, 0
    %3510 = vmatprep.subr.bf16.mxu0 0
    %3511 = vmatpush1.bf16.msra.mxu0 %v3483
    %3512 = vmatprep.subr.bf16.mxu0 0
    %3513 = vmatpush1.bf16.msra.mxu0 %v3484
    %3514 = vmatprep.subr.bf16.mxu0 0
    %3515 = vmatpush1.bf16.msra.mxu0 %v3485
    %3516 = vmatprep.subr.bf16.mxu0 0
    %3517 = vmatpush1.bf16.msra.mxu0 %v3486
    %3518 = vmatprep.subr.bf16.mxu0 0
    %3519 = vmatpush1.bf16.msra.mxu0 %v3487
    %3520 = vmatprep.subr.bf16.mxu0 0
    %3521 = vmatpush1.bf16.msra.mxu0 %v3488
    %3522 = vmatprep.subr.bf16.mxu0 0
    %3523 = vmatpush1.bf16.msra.mxu0 %v3489
    %3524 = vmatprep.subr.bf16.mxu0 0
    %3525 = vmatpush1.bf16.msra.mxu0 %v3490
    %3526 = vmatprep.subr.bf16.mxu0 0
    %3527 = vmatpush1.bf16.msra.mxu0 %v3491
    %3528 = vmatprep.subr.bf16.mxu0 0
    %3529 = vmatpush1.bf16.msra.mxu0 %v3492
    %3530 = vmatprep.subr.bf16.mxu0 0
    %3531 = vmatpush1.bf16.msra.mxu0 %v3493
    %3532 = vmatprep.subr.bf16.mxu0 0
    %3533 = vmatpush1.bf16.msra.mxu0 %v3494
    %3534 = vmatprep.subr.bf16.mxu0 0
    %3535 = vmatpush1.bf16.msra.mxu0 0
    %3536 = vmatprep.subr.bf16.mxu0 0
    %3537 = vmatpush1.bf16.msra.mxu0 0
    %3538 = vmatprep.subr.bf16.mxu0 0
    %3539 = vmatpush1.bf16.msra.mxu0 0
    %3540 = vmatprep.subr.bf16.mxu0 0
    %3541 = vmatpush1.bf16.msra.mxu0 0
    %3542 = vmatprep.mubr.bf16.mxu0 %v3508
    %3543 = vmatmul.mubr.bf16.gmra.mrb[0].mxu0 %v2518
    %v3544 = vpop.f32.mrb[0].mxu0
    %v3545 = vadd.f32 %v2685, %v3544
    %v3546 = vpop.f32.mrb[0].mxu0
    %v3547 = vpop.f32.mrb[0].mxu0
    %v3548 = vpop.f32.mrb[0].mxu0
    %3549 = vdwg.mxu0
    %v3574 = vunpack.c.l.b16 %v2693
    %v3575 = vunpack.c.l.b16 %v2694
    %v3576 = vunpack.c.l.b16 %v2695
    %v3577 = vunpack.c.l.b16 %v2696
    %v3578 = vunpack.c.l.b16 %v2697
    %v3579 = vunpack.c.l.b16 %v2698
    %v3580 = vunpack.c.l.b16 %v2699
    %v3581 = vunpack.c.l.b16 %v2700
    %v3582 = vunpack.c.l.b16 %v2701
    %v3583 = vunpack.c.l.b16 %v2702
    %v3584 = vunpack.c.l.b16 %v2703
    %v3585 = vunpack.c.l.b16 %v2704
    %v3586 = vunpack.c.l.b16 %v2705
    %v3587 = vunpack.c.l.b16 %v2706
    %v3588 = vunpack.c.l.b16 %v2707
    %v3589 = vunpack.c.l.b16 %v2708
    %v3590 = vunpack.c.l.b16 %v2709
    %v3591 = vunpack.c.l.b16 %v2710
    %v3592 = vunpack.c.l.b16 %v2711
    %v3593 = vunpack.c.l.b16 %v2712
    %v3594 = vunpack.c.l.b16 %v2713
    %v3595 = vunpack.c.l.b16 %v2714
    %v3596 = vunpack.c.l.b16 %v2715
    %v3597 = vunpack.c.l.b16 %v2716
    %v3598 = vpack.c.b16 %v3575, %v3574
    %v3599 = vpack.c.b16 %v3577, %v3576
    %v3600 = vpack.c.b16 %v3579, %v3578
    %v3601 = vpack.c.b16 %v3581, %v3580
    %v3602 = vpack.c.b16 %v3583, %v3582
    %v3603 = vpack.c.b16 %v3585, %v3584
    %v3604 = vpack.c.b16 %v3587, %v3586
    %v3605 = vpack.c.b16 %v3589, %v3588
    %v3606 = vpack.c.b16 %v3591, %v3590
    %v3607 = vpack.c.b16 %v3593, %v3592
    %v3608 = vpack.c.b16 %v3595, %v3594
    %v3609 = vpack.c.b16 %v3597, %v3596
    %v3623 = vsel %vm2165, %v2691, 0
    %3625 = vmatprep.subr.bf16.mxu0 0
    %3626 = vmatpush1.bf16.msra.mxu0 %v3598
    %3627 = vmatprep.subr.bf16.mxu0 0
    %3628 = vmatpush1.bf16.msra.mxu0 %v3599
    %3629 = vmatprep.subr.bf16.mxu0 0
    %3630 = vmatpush1.bf16.msra.mxu0 %v3600
    %3631 = vmatprep.subr.bf16.mxu0 0
    %3632 = vmatpush1.bf16.msra.mxu0 %v3601
    %3633 = vmatprep.subr.bf16.mxu0 0
    %3634 = vmatpush1.bf16.msra.mxu0 %v3602
    %3635 = vmatprep.subr.bf16.mxu0 0
    %3636 = vmatpush1.bf16.msra.mxu0 %v3603
    %3637 = vmatprep.subr.bf16.mxu0 0
    %3638 = vmatpush1.bf16.msra.mxu0 %v3604
    %3639 = vmatprep.subr.bf16.mxu0 0
    %3640 = vmatpush1.bf16.msra.mxu0 %v3605
    %3641 = vmatprep.subr.bf16.mxu0 0
    %3642 = vmatpush1.bf16.msra.mxu0 %v3606
    %3643 = vmatprep.subr.bf16.mxu0 0
    %3644 = vmatpush1.bf16.msra.mxu0 %v3607
    %3645 = vmatprep.subr.bf16.mxu0 0
    %3646 = vmatpush1.bf16.msra.mxu0 %v3608
    %3647 = vmatprep.subr.bf16.mxu0 0
    %3648 = vmatpush1.bf16.msra.mxu0 %v3609
    %3649 = vmatprep.subr.bf16.mxu0 0
    %3650 = vmatpush1.bf16.msra.mxu0 0
    %3651 = vmatprep.subr.bf16.mxu0 0
    %3652 = vmatpush1.bf16.msra.mxu0 0
    %3653 = vmatprep.subr.bf16.mxu0 0
    %3654 = vmatpush1.bf16.msra.mxu0 0
    %3655 = vmatprep.subr.bf16.mxu0 0
    %3656 = vmatpush1.bf16.msra.mxu0 0
    %3657 = vmatprep.mubr.bf16.mxu0 %v3623
    %3658 = vmatmul.mubr.bf16.gmra.mrb[0].mxu0 %v2690
    %v3659 = vpop.f32.mrb[0].mxu0
    %v3660 = vadd.f32 %v2857, %v3659
    %v3661 = vpop.f32.mrb[0].mxu0
    %v3662 = vpop.f32.mrb[0].mxu0
    %v3663 = vpop.f32.mrb[0].mxu0
    %3664 = vdwg.mxu0
    %v3665 = vrot.slane %v2690, 2
    %v3666 = vrot.slane %v2691, 2
    %v3692 = vunpack.c.l.b16 %v2863
    %v3693 = vunpack.c.l.b16 %v2864
    %v3694 = vunpack.c.l.b16 %v2865
    %v3695 = vunpack.c.l.b16 %v2866
    %v3696 = vunpack.c.l.b16 %v2867
    %v3697 = vunpack.c.l.b16 %v2868
    %v3698 = vunpack.c.l.b16 %v2869
    %v3699 = vunpack.c.l.b16 %v2870
    %v3700 = vunpack.c.l.b16 %v2871
    %v3701 = vunpack.c.l.b16 %v2872
    %v3702 = vunpack.c.l.b16 %v2873
    %v3703 = vunpack.c.l.b16 %v2874
    %v3704 = vunpack.c.l.b16 %v2875
    %v3705 = vunpack.c.l.b16 %v2876
    %v3706 = vunpack.c.l.b16 %v2877
    %v3707 = vunpack.c.l.b16 %v2878
    %v3708 = vunpack.c.l.b16 %v2879
    %v3709 = vunpack.c.l.b16 %v2880
    %v3710 = vunpack.c.l.b16 %v2881
    %v3711 = vunpack.c.l.b16 %v2882
    %v3712 = vunpack.c.l.b16 %v2883
    %v3713 = vunpack.c.l.b16 %v2884
    %v3714 = vunpack.c.l.b16 %v2885
    %v3715 = vunpack.c.l.b16 %v2886
    %v3716 = vpack.c.b16 %v3693, %v3692
    %v3717 = vpack.c.b16 %v3695, %v3694
    %v3718 = vpack.c.b16 %v3697, %v3696
    %v3719 = vpack.c.b16 %v3699, %v3698
    %v3720 = vpack.c.b16 %v3701, %v3700
    %v3721 = vpack.c.b16 %v3703, %v3702
    %v3722 = vpack.c.b16 %v3705, %v3704
    %v3723 = vpack.c.b16 %v3707, %v3706
    %v3724 = vpack.c.b16 %v3709, %v3708
    %v3725 = vpack.c.b16 %v3711, %v3710
    %v3726 = vpack.c.b16 %v3713, %v3712
    %v3727 = vpack.c.b16 %v3715, %v3714
    %v3741 = vsel %vm2165, %v3666, 0
    %3743 = vmatprep.subr.bf16.mxu0 0
    %3744 = vmatpush1.bf16.msra.mxu0 %v3716
    %3745 = vmatprep.subr.bf16.mxu0 0
    %3746 = vmatpush1.bf16.msra.mxu0 %v3717
    %3747 = vmatprep.subr.bf16.mxu0 0
    %3748 = vmatpush1.bf16.msra.mxu0 %v3718
    %3749 = vmatprep.subr.bf16.mxu0 0
    %3750 = vmatpush1.bf16.msra.mxu0 %v3719
    %3751 = vmatprep.subr.bf16.mxu0 0
    %3752 = vmatpush1.bf16.msra.mxu0 %v3720
    %3753 = vmatprep.subr.bf16.mxu0 0
    %3754 = vmatpush1.bf16.msra.mxu0 %v3721
    %3755 = vmatprep.subr.bf16.mxu0 0
    %3756 = vmatpush1.bf16.msra.mxu0 %v3722
    %3757 = vmatprep.subr.bf16.mxu0 0
    %3758 = vmatpush1.bf16.msra.mxu0 %v3723
    %3759 = vmatprep.subr.bf16.mxu0 0
    %3760 = vmatpush1.bf16.msra.mxu0 %v3724
    %3761 = vmatprep.subr.bf16.mxu0 0
    %3762 = vmatpush1.bf16.msra.mxu0 %v3725
    %3763 = vmatprep.subr.bf16.mxu0 0
    %3764 = vmatpush1.bf16.msra.mxu0 %v3726
    %3765 = vmatprep.subr.bf16.mxu0 0
    %3766 = vmatpush1.bf16.msra.mxu0 %v3727
    %3767 = vmatprep.subr.bf16.mxu0 0
    %3768 = vmatpush1.bf16.msra.mxu0 0
    %3769 = vmatprep.subr.bf16.mxu0 0
    %3770 = vmatpush1.bf16.msra.mxu0 0
    %3771 = vmatprep.subr.bf16.mxu0 0
    %3772 = vmatpush1.bf16.msra.mxu0 0
    %3773 = vmatprep.subr.bf16.mxu0 0
    %3774 = vmatpush1.bf16.msra.mxu0 0
    %3775 = vmatprep.mubr.bf16.mxu0 %v3741
    %3776 = vmatmul.mubr.bf16.gmra.mrb[0].mxu0 %v3665
    %v3777 = vpop.f32.mrb[0].mxu0
    %v3778 = vadd.f32 %v3025, %v3777
    %v3779 = vpop.f32.mrb[0].mxu0
    %v3780 = vpop.f32.mrb[0].mxu0
    %v3781 = vpop.f32.mrb[0].mxu0
    %3782 = vdwg.mxu0
    %v3807 = vunpack.c.l.b16 %v3033
    %v3808 = vunpack.c.l.b16 %v3034
    %v3809 = vunpack.c.l.b16 %v3035
    %v3810 = vunpack.c.l.b16 %v3036
    %v3811 = vunpack.c.l.b16 %v3037
    %v3812 = vunpack.c.l.b16 %v3038
    %v3813 = vunpack.c.l.b16 %v3039
    %v3814 = vunpack.c.l.b16 %v3040
    %v3815 = vunpack.c.l.b16 %v3041
    %v3816 = vunpack.c.l.b16 %v3042
    %v3817 = vunpack.c.l.b16 %v3043
    %v3818 = vunpack.c.l.b16 %v3044
    %v3819 = vunpack.c.l.b16 %v3045
    %v3820 = vunpack.c.l.b16 %v3046
    %v3821 = vunpack.c.l.b16 %v3047
    %v3822 = vunpack.c.l.b16 %v3048
    %v3823 = vunpack.c.l.b16 %v3049
    %v3824 = vunpack.c.l.b16 %v3050
    %v3825 = vunpack.c.l.b16 %v3051
    %v3826 = vunpack.c.l.b16 %v3052
    %v3827 = vunpack.c.l.b16 %v3053
    %v3828 = vunpack.c.l.b16 %v3054
    %v3829 = vunpack.c.l.b16 %v3055
    %v3830 = vunpack.c.l.b16 %v3056
    %v3831 = vpack.c.b16 %v3808, %v3807
    %v3832 = vpack.c.b16 %v3810, %v3809
    %v3833 = vpack.c.b16 %v3812, %v3811
    %v3834 = vpack.c.b16 %v3814, %v3813
    %v3835 = vpack.c.b16 %v3816, %v3815
    %v3836 = vpack.c.b16 %v3818, %v3817
    %v3837 = vpack.c.b16 %v3820, %v3819
    %v3838 = vpack.c.b16 %v3822, %v3821
    %v3839 = vpack.c.b16 %v3824, %v3823
    %v3840 = vpack.c.b16 %v3826, %v3825
    %v3841 = vpack.c.b16 %v3828, %v3827
    %v3842 = vpack.c.b16 %v3830, %v3829
    %v3856 = vsel %vm2165, %v3031, 0
    %3858 = vmatprep.subr.bf16.mxu0 0
    %3859 = vmatpush1.bf16.msra.mxu0 %v3831
    %3860 = vmatprep.subr.bf16.mxu0 0
    %3861 = vmatpush1.bf16.msra.mxu0 %v3832
    %3862 = vmatprep.subr.bf16.mxu0 0
    %3863 = vmatpush1.bf16.msra.mxu0 %v3833
    %3864 = vmatprep.subr.bf16.mxu0 0
    %3865 = vmatpush1.bf16.msra.mxu0 %v3834
    %3866 = vmatprep.subr.bf16.mxu0 0
    %3867 = vmatpush1.bf16.msra.mxu0 %v3835
    %3868 = vmatprep.subr.bf16.mxu0 0
    %3869 = vmatpush1.bf16.msra.mxu0 %v3836
    %3870 = vmatprep.subr.bf16.mxu0 0
    %3871 = vmatpush1.bf16.msra.mxu0 %v3837
    %3872 = vmatprep.subr.bf16.mxu0 0
    %3873 = vmatpush1.bf16.msra.mxu0 %v3838
    %3874 = vmatprep.subr.bf16.mxu0 0
    %3875 = vmatpush1.bf16.msra.mxu0 %v3839
    %3876 = vmatprep.subr.bf16.mxu0 0
    %3877 = vmatpush1.bf16.msra.mxu0 %v3840
    %3878 = vmatprep.subr.bf16.mxu0 0
    %3879 = vmatpush1.bf16.msra.mxu0 %v3841
    %3880 = vmatprep.subr.bf16.mxu0 0
    %3881 = vmatpush1.bf16.msra.mxu0 %v3842
    %3882 = vmatprep.subr.bf16.mxu0 0
    %3883 = vmatpush1.bf16.msra.mxu0 0
    %3884 = vmatprep.subr.bf16.mxu0 0
    %3885 = vmatpush1.bf16.msra.mxu0 0
    %3886 = vmatprep.subr.bf16.mxu0 0
    %3887 = vmatpush1.bf16.msra.mxu0 0
    %3888 = vmatprep.subr.bf16.mxu0 0
    %3889 = vmatpush1.bf16.msra.mxu0 0
    %3890 = vmatprep.mubr.bf16.mxu0 %v3856
    %3891 = vmatmul.mubr.bf16.gmra.mrb[0].mxu0 %v3030
    %v3892 = vpop.f32.mrb[0].mxu0
    %v3893 = vadd.f32 %v3197, %v3892
    %v3894 = vpop.f32.mrb[0].mxu0
    %v3895 = vpop.f32.mrb[0].mxu0
    %v3896 = vpop.f32.mrb[0].mxu0
    %3897 = vdwg.mxu0
    %v3898 = vadd.f32 %v3312, %v3430
    %v3899 = vadd.f32 %v3545, %v3660
    %v3900 = vadd.f32 %v3778, %v3893
    %v3901 = vadd.f32 %v3898, %v3899
    %v3902 = vadd.f32 %v3901, %v3900
    %v3903 = vld [vmem:[%s6] sm:$0x1]
    %v3904 = vadd.f32 %v3902, %v3903
    %v3905 = vmax.f32 %v3904, 0.0
    %v3906 = vld [vmem:[%s7] sm:$0xff]
    %v3907 = vld [vmem:[%s7 + $0x8] sm:$0xff]
    %v3908 = vld [vmem:[%s7 + $0x10] sm:$0xff]
    %v3909 = vld [vmem:[%s7 + $0x18] sm:$0xff]
    %v3910 = vld [vmem:[%s7 + $0x20] sm:$0xff]
    %v3911 = vld [vmem:[%s7 + $0x28] sm:$0xff]
    %v3912 = vld [vmem:[%s7 + $0x30] sm:$0xff]
    %v3913 = vld [vmem:[%s7 + $0x38] sm:$0xff]
    %v3914 = vld [vmem:[%s7 + $0x40] sm:$0xff]
    %v3915 = vld [vmem:[%s7 + $0x48] sm:$0xff]
    %v3916 = vld [vmem:[%s7 + $0x50] sm:$0xff]
    %v3917 = vld [vmem:[%s7 + $0x58] sm:$0xff]
    %v3918 = vld [vmem:[%s7 + $0x60] sm:$0xff]
    %v3919 = vld [vmem:[%s7 + $0x68] sm:$0xff]
    %v3920 = vld [vmem:[%s7 + $0x70] sm:$0xff]
    %v3921 = vld [vmem:[%s7 + $0x78] sm:$0xff]
    %v3922 = vld [vmem:[%s8] sm:$0x1]
    %3923 = vmatprep.subr.mxu0 0.0
    %3924 = vmatpush1.msra.mxu0 %v3906
    %3925 = vmatprep.subr.mxu0 0.0
    %3926 = vmatpush1.msra.mxu0 %v3907
    %3927 = vmatprep.subr.mxu0 0.0
    %3928 = vmatpush1.msra.mxu0 %v3908
    %3929 = vmatprep.subr.mxu0 0.0
    %3930 = vmatpush1.msra.mxu0 %v3909
    %3931 = vmatprep.subr.mxu0 0.0
    %3932 = vmatpush1.msra.mxu0 %v3910
    %3933 = vmatprep.subr.mxu0 0.0
    %3934 = vmatpush1.msra.mxu0 %v3911
    %3935 = vmatprep.subr.mxu0 0.0
    %3936 = vmatpush1.msra.mxu0 %v3912
    %3937 = vmatprep.subr.mxu0 0.0
    %3938 = vmatpush1.msra.mxu0 %v3913
    %3939 = vmatprep.subr.mxu0 0.0
    %3940 = vmatpush1.msra.mxu0 %v3914
    %3941 = vmatprep.subr.mxu0 0.0
    %3942 = vmatpush1.msra.mxu0 %v3915
    %3943 = vmatprep.subr.mxu0 0.0
    %3944 = vmatpush1.msra.mxu0 %v3916
    %3945 = vmatprep.subr.mxu0 0.0
    %3946 = vmatpush1.msra.mxu0 %v3917
    %3947 = vmatprep.subr.mxu0 0.0
    %3948 = vmatpush1.msra.mxu0 %v3918
    %3949 = vmatprep.subr.mxu0 0.0
    %3950 = vmatpush1.msra.mxu0 %v3919
    %3951 = vmatprep.subr.mxu0 0.0
    %3952 = vmatpush1.msra.mxu0 %v3920
    %3953 = vmatprep.subr.mxu0 0.0
    %3954 = vmatpush1.msra.mxu0 %v3921
    %3955 = vmatprep.subr.mxu0 0.0
    %3956 = vmatpush1.msra.mxu0 0.0
    %3957 = vmatprep.subr.mxu0 0.0
    %3958 = vmatpush1.msra.mxu0 0.0
    %3959 = vmatprep.subr.mxu0 0.0
    %3960 = vmatpush1.msra.mxu0 0.0
    %3961 = vmatprep.subr.mxu0 0.0
    %3962 = vmatpush1.msra.mxu0 0.0
    %3963 = vmatprep.subr.mxu0 0.0
    %3964 = vmatpush1.msra.mxu0 0.0
    %3965 = vmatprep.subr.mxu0 0.0
    %3966 = vmatpush1.msra.mxu0 0.0
    %3967 = vmatprep.subr.mxu0 0.0
    %3968 = vmatpush1.msra.mxu0 0.0
    %3969 = vmatprep.subr.mxu0 0.0
    %3970 = vmatpush1.msra.mxu0 0.0
    %3971 = vmatprep.subr.mxu0 0.0
    %3972 = vmatpush1.msra.mxu0 0.0
    %3973 = vmatprep.subr.mxu0 0.0
    %3974 = vmatpush1.msra.mxu0 0.0
    %3975 = vmatprep.subr.mxu0 0.0
    %3976 = vmatpush1.msra.mxu0 0.0
    %3977 = vmatprep.subr.mxu0 0.0
    %3978 = vmatpush1.msra.mxu0 0.0
    %3979 = vmatprep.subr.mxu0 0.0
    %3980 = vmatpush1.msra.mxu0 0.0
    %3981 = vmatprep.subr.mxu0 0.0
    %3982 = vmatpush1.msra.mxu0 0.0
    %3983 = vmatprep.subr.mxu0 0.0
    %3984 = vmatpush1.msra.mxu0 0.0
    %3985 = vmatprep.subr.mxu0 0.0
    %3986 = vmatpush1.msra.mxu0 0.0
    %3987 = vmatprep.mubr.f32.mxu0 0.0
    %3988 = vmatmul.mubr.f32.gmra.mrb[0].mxu0 %v3905
    %v3989 = vpop.f32.mrb[0].mxu0
    %v3990 = vadd.f32 %v3922, %v3989
    %v3991 = vpop.f32.mrb[0].mxu0
    %3992 = vdwg.mxu0
    %vm3993 = vcmask 73728
    %3994 = vst.msk [vmem:[#allocation9] sm:$0x1] %vm3993, %v3990
    // Predicated region
    $region46: #{net_forward.1} parent=1 // pred_check
      _
    $region47: #{net_forward.1} parent=1 // pred_check_branch
      %3996 = sbr.rel (0) target = $region49
    $region48: #{net_forward.1} parent=1 // pred_region
      %s3998 = ssub.s32 16, 16
      %3999 = vsyncadd [#allocation6], %s3998
      %s4001 = sshll.u32 [#allocation9], 4
      %s4002 = int_to_ptr.vmem [resolvable:$true] %s4001
      %4004 = dma.vmem_to_hbm [thread:$0]  %s4002, 16, %s9, [#allocation6]
    $region49: #{net_forward.1} parent=1 // pred_fallthru
      _
    // Predicated region
    $region50: #{net_forward.1} parent=1 // pred_check
      _
    $region51: #{net_forward.1} parent=1 // pred_check_branch
      %4006 = sbr.rel (0) target = $region53
    $region52: #{net_forward.1} parent=1 // pred_region
      %4007 = dma.done [#allocation6], 16
    $region53: #{net_forward.1} parent=1 // pred_fallthru
      _
    %4008 = vsyncpa [#allocation5], 1
    %4009 = vsyncpa [#allocation8], 1
    %4010 = vsyncpa [#allocation6], 1

</llo_original>
